<compile_context>
chip_gen: v5e
topology: v5e:2x2
jax: 0.10.0
libtpu: 0.0.40
codegen_flags: <defaults>
</compile_context>

<pallas_src>
import functools

import jax
import jax.numpy as jnp
from jax.experimental import pallas as pl
from jax.experimental.pallas import tpu as pltpu

_LANE = 128                           # channel padding target (TPU lane width)
_VMEM_LIMIT = 48 * 1024 * 1024        # < 64 MiB (v7x physical); safe on v5e/v6e


def _round_up(x, m):
    return ((x + m - 1) // m) * m


def _compiler_params():
    return pltpu.CompilerParams(
        dimension_semantics=("parallel",),
        vmem_limit_bytes=_VMEM_LIMIT,
    )


# ---------------------------------------------------------------------------
# Kernel bodies
# ---------------------------------------------------------------------------
def _mish_f32(y):
    # mish(y) = y * tanh(softplus(y));
    # tanh(softplus(y)) == ((1+e^y)^2 - 1) / ((1+e^y)^2 + 1)  -> a single exp.
    e = jnp.exp(jnp.minimum(y, 20.0))   # for y >= 20, tanh(softplus(y)) == 1 in f32
    n = e * (e + 2.0)
    return y * (n / (n + 2.0))


def _conv_taps_kernel(x_ref, w_ref, b_ref, o_ref, *, offsets, rows):
    """o[r] = mish( sum_t x[r + offsets[t]] @ w[t] + b ),  r in [0, rows)."""
    acc = jnp.zeros((rows, o_ref.shape[-1]), jnp.float32)
    for t, off in enumerate(offsets):
        acc = acc + jnp.dot(x_ref[off:off + rows, :], w_ref[t],
                            preferred_element_type=jnp.float32)
    o_ref[...] = _mish_f32(acc + b_ref[...]).astype(o_ref.dtype)


def _preadd_conv1x1_kernel(x_ref, r_ref, w_ref, b_ref, o_ref):
    """o = mish( (x + r) @ w[0] + b )  — residual add fused into the 1x1 conv."""
    s = x_ref[...] + r_ref[...]
    y = jnp.dot(s, w_ref[0], preferred_element_type=jnp.float32) + b_ref[...]
    o_ref[...] = _mish_f32(y).astype(o_ref.dtype)


def _concat_conv1x1_kernel(x1_ref, x0_ref, w_ref, b_ref, o_ref):
    """o = mish( x1 @ w[0] + x0 @ w[1] + b ) == 1x1 conv over cat([x1, x0], C)."""
    y = jnp.dot(x1_ref[...], w_ref[0], preferred_element_type=jnp.float32)
    y = y + jnp.dot(x0_ref[...], w_ref[1], preferred_element_type=jnp.float32)
    o_ref[...] = _mish_f32(y + b_ref[...]).astype(o_ref.dtype)


# ---------------------------------------------------------------------------
# pallas_call wrappers
# ---------------------------------------------------------------------------
def _choose_tm(M):
    # Largest tile dividing M while keeping the grid >= 2 steps (v7x has 2 TCs);
    # fall back to a single full tile.
    for tm in (1024, 512, 256, 128, 64, 32, 16):
        if M % tm == 0 and M // tm >= 2:
            return tm
    for tm in (1024, 512, 256, 128, 64, 32, 16):
        if M % tm == 0:
            return tm
    raise ValueError(f"M={M} must be a multiple of 16 (N*H/2*W/2)")


def _conv1x1(x, col_block, w, b):
    """Fused 1x1 conv + bias + Mish.

    x: (M, 128*n_blocks) bf16 — the kernel reads 128-lane column block `col_block`.
    w: (1, 128, Coutp) bf16 (BN scale folded in);  b: (1, Coutp) f32.
    Returns (M, Coutp) bf16.
    """
    M = x.shape[0]
    coutp = w.shape[-1]
    tm = _choose_tm(M)
    kern = functools.partial(_conv_taps_kernel, offsets=(0,), rows=tm)
    return pl.pallas_call(
        kern,
        out_shape=jax.ShapeDtypeStruct((M, coutp), jnp.bfloat16),
        grid=(M // tm,),
        in_specs=[pl.BlockSpec((tm, _LANE), lambda i: (i, col_block)),
                  pl.BlockSpec(w.shape, lambda i: (0, 0, 0)),
                  pl.BlockSpec((1, coutp), lambda i: (0, 0))],
        out_specs=pl.BlockSpec((tm, coutp), lambda i: (i, 0)),
        compiler_params=_compiler_params(),
    )(x, w, b)


def _conv1x1_preadd(x, x_cb, r, r_cb, w, b):
    """mish((x + r) @ w + b) — residual add fused into the following 1x1 conv."""
    M = x.shape[0]
    coutp = w.shape[-1]
    tm = _choose_tm(M)
    return pl.pallas_call(
        _preadd_conv1x1_kernel,
        out_shape=jax.ShapeDtypeStruct((M, coutp), jnp.bfloat16),
        grid=(M // tm,),
        in_specs=[pl.BlockSpec((tm, _LANE), lambda i: (i, x_cb)),
                  pl.BlockSpec((tm, _LANE), lambda i: (i, r_cb)),
                  pl.BlockSpec(w.shape, lambda i: (0, 0, 0)),
                  pl.BlockSpec((1, coutp), lambda i: (0, 0))],
        out_specs=pl.BlockSpec((tm, coutp), lambda i: (i, 0)),
        compiler_params=_compiler_params(),
    )(x, r, w, b)


def _conv1x1_concat(x1, x1_cb, x0, x0_cb, w, b):
    """mish(x1 @ w[0] + x0 @ w[1] + b) — channel concat + 1x1 conv in one kernel."""
    M = x1.shape[0]
    coutp = w.shape[-1]
    tm = _choose_tm(M)
    return pl.pallas_call(
        _concat_conv1x1_kernel,
        out_shape=jax.ShapeDtypeStruct((M, coutp), jnp.bfloat16),
        grid=(M // tm,),
        in_specs=[pl.BlockSpec((tm, _LANE), lambda i: (i, x1_cb)),
                  pl.BlockSpec((tm, _LANE), lambda i: (i, x0_cb)),
                  pl.BlockSpec(w.shape, lambda i: (0, 0, 0)),
                  pl.BlockSpec((1, coutp), lambda i: (0, 0))],
        out_specs=pl.BlockSpec((tm, coutp), lambda i: (i, 0)),
        compiler_params=_compiler_params(),
    )(x1, x0, w, b)


def _conv_spatial(x_nhwc, w, b):
    """Stride-1 'valid' KxK conv + bias + Mish over a spatially pre-padded NHWC
    image with 128-padded channels.  Computed in-kernel as K*K accumulating
    MXU dots over row-shifted views of the per-image flattened rows — no HBM
    im2col.  The flat rows use the padded width Wp, so a few wrap-around
    columns/rows are computed as garbage and sliced off here.

    x_nhwc: (N, Hp, Wp, 128) bf16;  w: (K*K, 128, Coutp) bf16;  b: (1, Coutp) f32.
    Returns (N, Hp-K+1, Wp-K+1, Coutp) bf16.
    """
    N, Hp, Wp, Cp = x_nhwc.shape
    kk, _, coutp = w.shape
    k = int(round(kk ** 0.5))
    assert k * k == kk
    Ho, Wo = Hp - k + 1, Wp - k + 1

    offsets = tuple(dy * Wp + dx for dy in range(k) for dx in range(k))
    rows = _round_up(Ho * Wp, 16)                           # output rows per image
    fin = _round_up(max(Hp * Wp, rows + max(offsets)), 16)  # input rows per image

    xf = x_nhwc.reshape(N, Hp * Wp, Cp)
    if fin > Hp * Wp:
        xf = jnp.pad(xf, ((0, 0), (0, fin - Hp * Wp), (0, 0)))
    xf = xf.reshape(N * fin, Cp)

    # TODO(synk): for very large spatial extents, row-tile with a manual halo
    # DMA instead of one full image per grid step.
    kern = functools.partial(_conv_taps_kernel, offsets=offsets, rows=rows)
    out = pl.pallas_call(
        kern,
        out_shape=jax.ShapeDtypeStruct((N * rows, coutp), jnp.bfloat16),
        grid=(N,),
        in_specs=[pl.BlockSpec((fin, Cp), lambda n: (n, 0)),
                  pl.BlockSpec(w.shape, lambda n: (0, 0, 0)),
                  pl.BlockSpec((1, coutp), lambda n: (0, 0))],
        out_specs=pl.BlockSpec((rows, coutp), lambda n: (n, 0)),
        compiler_params=_compiler_params(),
    )(xf, w, b)

    out = out.reshape(N, rows, coutp)[:, :Ho * Wp, :]
    out = out.reshape(N, Ho, Wp, coutp)[:, :, :Wo, :]
    return out


# ---------------------------------------------------------------------------
# Parameter construction (synthetic, deterministic) + BN folding + padding
# ---------------------------------------------------------------------------
def _fold_bn(w, gamma, beta, mean, var, eps=1e-5):
    scale = gamma / jnp.sqrt(var + eps)
    return w * scale.reshape(1, 1, 1, -1), beta - mean * scale


def _make_raw_conv(key, cin, cout, k):
    kw, kg, kb, km, kv = jax.random.split(key, 5)
    w = jax.random.normal(kw, (k, k, cin, cout), jnp.float32) * 0.1
    gamma = 1.0 + 0.1 * jax.random.normal(kg, (cout,), jnp.float32)
    beta = 0.1 * jax.random.normal(kb, (cout,), jnp.float32)
    mean = 0.1 * jax.random.normal(km, (cout,), jnp.float32)
    var = 0.5 + jnp.abs(jax.random.normal(kv, (cout,), jnp.float32))
    return _fold_bn(w, gamma, beta, mean, var)


def _pad_wb(w2d, bias, cin_pad=_LANE, cout_pad=_LANE):
    cin, cout = w2d.shape
    wp = jnp.pad(w2d, ((0, cin_pad - cin), (0, cout_pad - cout))).astype(jnp.bfloat16)
    bp = jnp.pad(bias, (0, cout_pad - cout)).reshape(1, cout_pad).astype(jnp.float32)
    return wp, bp


def make_resblock_body_params(key, in_channels, out_channels):
    """Synthetic Conv+BN params, folded, channel-padded to 128 lanes and laid out
    in kernel-ready (taps, Cin_pad, Cout_pad) bf16 form."""
    keys = jax.random.split(key, 7)
    oc = out_channels

    # downsample: 3x3 stride-2 conv rewritten as a stride-1 2x2 conv over the
    # space-to-depth image (channel order: (py, px, ci)).
    w_ds, b_ds = _make_raw_conv(keys[0], in_channels, oc, 3)
    w2 = jnp.zeros((2, 2, 2, 2, in_channels, oc), jnp.float32)
    for dy in range(3):
        for dx in range(3):
            w2 = w2.at[dy // 2, dx // 2, dy % 2, dx % 2].set(w_ds[dy, dx])
    w2 = w2.reshape(2, 2, 4 * in_channels, oc)
    w2 = jnp.pad(w2, ((0, 0), (0, 0), (0, _LANE - 4 * in_channels), (0, _LANE - oc)))
    ds_w = w2.reshape(4, _LANE, _LANE).astype(jnp.bfloat16)
    ds_b = jnp.pad(b_ds, (0, _LANE - oc)).reshape(1, _LANE).astype(jnp.float32)

    # split_conv1 | split_conv0 fused along Cout (column block 0 -> x1, 1 -> x0)
    w_s0, b_s0 = _make_raw_conv(keys[1], oc, oc, 1)
    w_s1, b_s1 = _make_raw_conv(keys[2], oc, oc, 1)
    w_s1p, b_s1p = _pad_wb(w_s1.reshape(oc, oc), b_s1)
    w_s0p, b_s0p = _pad_wb(w_s0.reshape(oc, oc), b_s0)
    split_w = jnp.concatenate([w_s1p, w_s0p], axis=1).reshape(1, _LANE, 2 * _LANE)
    split_b = jnp.concatenate([b_s1p, b_s0p], axis=1)

    # Resblock: 1x1 (oc -> oc//2), 3x3 (oc//2 -> oc)
    hc = oc // 2
    w_r1, b_r1 = _make_raw_conv(keys[3], oc, hc, 1)
    r1_w, r1_b = _pad_wb(w_r1.reshape(oc, hc), b_r1)
    r1_w = r1_w.reshape(1, _LANE, _LANE)

    w_r2, b_r2 = _make_raw_conv(keys[4], hc, oc, 3)
    w_r2p = jnp.pad(w_r2, ((0, 0), (0, 0), (0, _LANE - hc), (0, _LANE - oc)))
    r2_w = w_r2p.reshape(9, _LANE, _LANE).astype(jnp.bfloat16)
    r2_b = jnp.pad(b_r2, (0, _LANE - oc)).reshape(1, _LANE).astype(jnp.float32)

    # blocks_conv tail 1x1 (oc -> oc)
    w_bo, b_bo = _make_raw_conv(keys[5], oc, oc, 1)
    bo_w, bo_b = _pad_wb(w_bo.reshape(oc, oc), b_bo)
    bo_w = bo_w.reshape(1, _LANE, _LANE)

    # concat_conv 1x1 (2*oc -> oc): split K rows into the x1 part and x0 part
    w_cc, b_cc = _make_raw_conv(keys[6], 2 * oc, oc, 1)
    w_cc = w_cc.reshape(2 * oc, oc)
    cc_w1, cc_b = _pad_wb(w_cc[:oc], b_cc)
    cc_w0, _ = _pad_wb(w_cc[oc:], b_cc)
    cc_w = jnp.stack([cc_w1, cc_w0], axis=0)

    return {
        "ds_w": ds_w, "ds_b": ds_b,
        "split_w": split_w, "split_b": split_b,
        "r1_w": r1_w, "r1_b": r1_b,
        "r2_w": r2_w, "r2_b": r2_b,
        "bo_w": bo_w, "bo_b": bo_b,
        "cc_w": cc_w, "cc_b": cc_b,
    }


# ---------------------------------------------------------------------------
# Resblock_body forward (first=True)
# ---------------------------------------------------------------------------
@functools.partial(jax.jit, static_argnames=("out_channels",))
def resblock_body_forward(x_nchw, params, *, out_channels):
    N, Cin, H, W = x_nchw.shape
    assert H % 2 == 0 and W % 2 == 0, "even spatial dims expected"
    oc = out_channels

    x = jnp.transpose(x_nchw, (0, 2, 3, 1)).astype(jnp.bfloat16)        # NHWC bf16

    # downsample_conv (3x3, stride 2): space-to-depth + 2x2 stride-1 conv kernel
    xp = jnp.pad(x, ((0, 0), (1, 1), (1, 1), (0, 0)))                   # pad = 1
    Hh, Wh = (H + 2) // 2, (W + 2) // 2
    s2d = xp.reshape(N, Hh, 2, Wh, 2, Cin).transpose(0, 1, 3, 2, 4, 5)
    s2d = s2d.reshape(N, Hh, Wh, 4 * Cin)
    s2d = jnp.pad(s2d, ((0, 0), (0, 0), (0, 0), (0, _LANE - 4 * Cin)))
    x_ds = _conv_spatial(s2d, params["ds_w"], params["ds_b"])           # (N,H/2,W/2,128)

    Ho, Wo = H // 2, W // 2
    M = N * Ho * Wo
    x_ds_f = x_ds.reshape(M, _LANE)

    # split_conv1 | split_conv0 (fused): column block 0 -> x1, block 1 -> x0
    split = _conv1x1(x_ds_f, 0, params["split_w"], params["split_b"])   # (M, 256)

    # Resblock: 1x1 -> 3x3, residual add fused into the blocks tail conv
    h = _conv1x1(split, 0, params["r1_w"], params["r1_b"])              # (M, 128)
    h_sp = jnp.pad(h.reshape(N, Ho, Wo, _LANE), ((0, 0), (1, 1), (1, 1), (0, 0)))
    r2 = _conv_spatial(h_sp, params["r2_w"], params["r2_b"])            # (N,Ho,Wo,128)
    r2_f = r2.reshape(M, _LANE)

    # blocks_conv tail: mish((x1 + resblock(x1)) @ W + b)
    x1 = _conv1x1_preadd(r2_f, 0, split, 0, params["bo_w"], params["bo_b"])

    # torch.cat([x1, x0], dim=1) + concat_conv, fused into one kernel
    out = _conv1x1_concat(x1, 0, split, 1, params["cc_w"], params["cc_b"])  # (M, 128)

    out = out.reshape(N, Ho, Wo, _LANE)[..., :oc].astype(jnp.float32)
    return jnp.transpose(out, (0, 3, 1, 2))                             # NCHW


if __name__ == "__main__":
    key = jax.random.PRNGKey(0)
    k_x, k_p = jax.random.split(key)

    N, C_in, H, W = 2, 4, 16, 16
    C_out = 8
    x = jax.random.normal(k_x, (N, C_in, H, W), jnp.float32)
    params = make_resblock_body_params(k_p, C_in, C_out)

    out = resblock_body_forward(x, params, out_channels=C_out)
    out = jax.block_until_ready(out)

    assert out.shape == (N, C_out, H // 2, W // 2), out.shape
    assert bool(jnp.all(jnp.isfinite(out)))
    print("KERNEL_OK")
</pallas_src>

<mosaic_0001>
module attributes {stable_mosaic.version = 11 : i64} {
  func.func @_conv_taps_kernel(%arg0: i32, %arg1: memref<96x128xbf16, #tpu.memory_space<vmem>>, %arg2: memref<4x128x128xbf16, #tpu.memory_space<vmem>>, %arg3: memref<1x128xf32, #tpu.memory_space<vmem>>, %arg4: memref<80x128xbf16, #tpu.memory_space<vmem>>) attributes {dimension_semantics = [#tpu.dimension_semantics<parallel>], iteration_bounds = array<i64: 2>, scalar_prefetch = 0 : i64, scratch_operands = 0 : i64, tpu.core_type = #tpu.core_type<tc>, window_params = [{transform_indices = @transform_0, window_bounds = array<i64: 96, 128>}, {pipeline_mode = #tpu.pipeline_mode<synchronous>, transform_indices = @transform_1, window_bounds = array<i64: 4, 128, 128>}, {pipeline_mode = #tpu.pipeline_mode<synchronous>, transform_indices = @transform_2, window_bounds = array<i64: 1, 128>}, {transform_indices = @transform_3, window_bounds = array<i64: 80, 128>}]} {
    %cst = arith.constant 0.000000e+00 : f32
    %0 = vector.broadcast %cst : f32 to vector<80x128xf32>
    %c0 = arith.constant 0 : index
    %c0_0 = arith.constant 0 : index
    %1 = vector.load %arg1[%c0, %c0_0] : memref<96x128xbf16, #tpu.memory_space<vmem>>, vector<80x128xbf16>
    %c0_1 = arith.constant 0 : index
    %c0_2 = arith.constant 0 : index
    %c0_3 = arith.constant 0 : index
    %2 = vector.load %arg2[%c0_1, %c0_2, %c0_3] : memref<4x128x128xbf16, #tpu.memory_space<vmem>>, vector<1x128x128xbf16>
    %3 = vector.shape_cast %2 : vector<1x128x128xbf16> to vector<128x128xbf16>
    %cst_4 = arith.constant dense<0.000000e+00> : vector<80x128xf32>
    %4 = tpu.matmul %1, %3, %cst_4 {dimension_numbers = #tpu.dot_dimension_numbers<[1], [0], [0], [1], [0, 0, 1, 1], [], []>} : vector<80x128xbf16>, vector<128x128xbf16>, vector<80x128xf32> -> vector<80x128xf32>
    %5 = arith.addf %0, %4 : vector<80x128xf32>
    %c1 = arith.constant 1 : index
    %c0_5 = arith.constant 0 : index
    %6 = vector.load %arg1[%c1, %c0_5] : memref<96x128xbf16, #tpu.memory_space<vmem>>, vector<80x128xbf16>
    %c1_6 = arith.constant 1 : index
    %c0_7 = arith.constant 0 : index
    %c0_8 = arith.constant 0 : index
    %7 = vector.load %arg2[%c1_6, %c0_7, %c0_8] : memref<4x128x128xbf16, #tpu.memory_space<vmem>>, vector<1x128x128xbf16>
    %8 = vector.shape_cast %7 : vector<1x128x128xbf16> to vector<128x128xbf16>
    %cst_9 = arith.constant dense<0.000000e+00> : vector<80x128xf32>
    %9 = tpu.matmul %6, %8, %cst_9 {dimension_numbers = #tpu.dot_dimension_numbers<[1], [0], [0], [1], [0, 0, 1, 1], [], []>} : vector<80x128xbf16>, vector<128x128xbf16>, vector<80x128xf32> -> vector<80x128xf32>
    %10 = arith.addf %5, %9 : vector<80x128xf32>
    %c9 = arith.constant 9 : index
    %c0_10 = arith.constant 0 : index
    %11 = vector.load %arg1[%c9, %c0_10] : memref<96x128xbf16, #tpu.memory_space<vmem>>, vector<80x128xbf16>
    %c2 = arith.constant 2 : index
    %c0_11 = arith.constant 0 : index
    %c0_12 = arith.constant 0 : index
    %12 = vector.load %arg2[%c2, %c0_11, %c0_12] : memref<4x128x128xbf16, #tpu.memory_space<vmem>>, vector<1x128x128xbf16>
    %13 = vector.shape_cast %12 : vector<1x128x128xbf16> to vector<128x128xbf16>
    %cst_13 = arith.constant dense<0.000000e+00> : vector<80x128xf32>
    %14 = tpu.matmul %11, %13, %cst_13 {dimension_numbers = #tpu.dot_dimension_numbers<[1], [0], [0], [1], [0, 0, 1, 1], [], []>} : vector<80x128xbf16>, vector<128x128xbf16>, vector<80x128xf32> -> vector<80x128xf32>
    %15 = arith.addf %10, %14 : vector<80x128xf32>
    %c10 = arith.constant 10 : index
    %c0_14 = arith.constant 0 : index
    %16 = vector.load %arg1[%c10, %c0_14] : memref<96x128xbf16, #tpu.memory_space<vmem>>, vector<80x128xbf16>
    %c3 = arith.constant 3 : index
    %c0_15 = arith.constant 0 : index
    %c0_16 = arith.constant 0 : index
    %17 = vector.load %arg2[%c3, %c0_15, %c0_16] : memref<4x128x128xbf16, #tpu.memory_space<vmem>>, vector<1x128x128xbf16>
    %18 = vector.shape_cast %17 : vector<1x128x128xbf16> to vector<128x128xbf16>
    %cst_17 = arith.constant dense<0.000000e+00> : vector<80x128xf32>
    %19 = tpu.matmul %16, %18, %cst_17 {dimension_numbers = #tpu.dot_dimension_numbers<[1], [0], [0], [1], [0, 0, 1, 1], [], []>} : vector<80x128xbf16>, vector<128x128xbf16>, vector<80x128xf32> -> vector<80x128xf32>
    %20 = arith.addf %15, %19 : vector<80x128xf32>
    %c0_18 = arith.constant 0 : index
    %c0_19 = arith.constant 0 : index
    %21 = vector.load %arg3[%c0_18, %c0_19] : memref<1x128xf32, #tpu.memory_space<vmem>>, vector<1x128xf32>
    %22 = vector.broadcast %21 : vector<1x128xf32> to vector<80x128xf32>
    %23 = arith.addf %20, %22 : vector<80x128xf32>
    %cst_20 = arith.constant 2.000000e+01 : f32
    %24 = vector.broadcast %cst_20 : f32 to vector<80x128xf32>
    %25 = arith.minimumf %23, %24 : vector<80x128xf32>
    %26 = math.exp %25 : vector<80x128xf32>
    %cst_21 = arith.constant 2.000000e+00 : f32
    %27 = vector.broadcast %cst_21 : f32 to vector<80x128xf32>
    %28 = arith.addf %26, %27 : vector<80x128xf32>
    %29 = arith.mulf %26, %28 : vector<80x128xf32>
    %cst_22 = arith.constant 2.000000e+00 : f32
    %30 = vector.broadcast %cst_22 : f32 to vector<80x128xf32>
    %31 = arith.addf %29, %30 : vector<80x128xf32>
    %32 = arith.divf %29, %31 : vector<80x128xf32>
    %33 = arith.mulf %23, %32 : vector<80x128xf32>
    %34 = arith.truncf %33 : vector<80x128xf32> to vector<80x128xbf16>
    %c0_23 = arith.constant 0 : index
    %c0_24 = arith.constant 0 : index
    %35 = vector.load %arg4[%c0_23, %c0_24] : memref<80x128xbf16, #tpu.memory_space<vmem>>, vector<80x128xbf16>
    tpu.vector_store %arg4[%c0_23, %c0_24], %34 {strides = array<i32>} : memref<80x128xbf16, #tpu.memory_space<vmem>>, vector<80x128xbf16>,
    return
  }
  func.func @transform_0(%arg0: i32) -> (i32, i32) {
    %c0_i32 = arith.constant 0 : i32
    %c0_i32_0 = arith.constant 0 : i32
    return %arg0, %c0_i32 : i32, i32
  }
  func.func @transform_1(%arg0: i32) -> (i32, i32, i32) {
    %c0_i32 = arith.constant 0 : i32
    %c0_i32_0 = arith.constant 0 : i32
    %c0_i32_1 = arith.constant 0 : i32
    %c0_i32_2 = arith.constant 0 : i32
    return %c0_i32, %c0_i32_0, %c0_i32_1 : i32, i32, i32
  }
  func.func @transform_2(%arg0: i32) -> (i32, i32) {
    %c0_i32 = arith.constant 0 : i32
    %c0_i32_0 = arith.constant 0 : i32
    %c0_i32_1 = arith.constant 0 : i32
    return %c0_i32, %c0_i32_0 : i32, i32
  }
  func.func @transform_3(%arg0: i32) -> (i32, i32) {
    %c0_i32 = arith.constant 0 : i32
    %c0_i32_0 = arith.constant 0 : i32
    return %arg0, %c0_i32 : i32, i32
  }
}

module attributes {stable_mosaic.version = 11 : i64} {
  func.func @_conv_taps_kernel(%arg0: i32, %arg1: memref<64x128xbf16, #tpu.memory_space<vmem>>, %arg2: memref<1x128x128xbf16, #tpu.memory_space<vmem>>, %arg3: memref<1x128xf32, #tpu.memory_space<vmem>>, %arg4: memref<64x128xbf16, #tpu.memory_space<vmem>>) attributes {dimension_semantics = [#tpu.dimension_semantics<parallel>], iteration_bounds = array<i64: 2>, scalar_prefetch = 0 : i64, scratch_operands = 0 : i64, tpu.core_type = #tpu.core_type<tc>, window_params = [{transform_indices = @transform_0, window_bounds = array<i64: 64, 128>}, {pipeline_mode = #tpu.pipeline_mode<synchronous>, transform_indices = @transform_1, window_bounds = array<i64: 1, 128, 128>}, {pipeline_mode = #tpu.pipeline_mode<synchronous>, transform_indices = @transform_2, window_bounds = array<i64: 1, 128>}, {transform_indices = @transform_3, window_bounds = array<i64: 64, 128>}]} {
    %cst = arith.constant 0.000000e+00 : f32
    %0 = vector.broadcast %cst : f32 to vector<64x128xf32>
    %c0 = arith.constant 0 : index
    %c0_0 = arith.constant 0 : index
    %1 = vector.load %arg1[%c0, %c0_0] : memref<64x128xbf16, #tpu.memory_space<vmem>>, vector<64x128xbf16>
    %c0_1 = arith.constant 0 : index
    %c0_2 = arith.constant 0 : index
    %c0_3 = arith.constant 0 : index
    %2 = vector.load %arg2[%c0_1, %c0_2, %c0_3] : memref<1x128x128xbf16, #tpu.memory_space<vmem>>, vector<1x128x128xbf16>
    %3 = vector.shape_cast %2 : vector<1x128x128xbf16> to vector<128x128xbf16>
    %cst_4 = arith.constant dense<0.000000e+00> : vector<64x128xf32>
    %4 = tpu.matmul %1, %3, %cst_4 {dimension_numbers = #tpu.dot_dimension_numbers<[1], [0], [0], [1], [0, 0, 1, 1], [], []>} : vector<64x128xbf16>, vector<128x128xbf16>, vector<64x128xf32> -> vector<64x128xf32>
    %5 = arith.addf %0, %4 : vector<64x128xf32>
    %c0_5 = arith.constant 0 : index
    %c0_6 = arith.constant 0 : index
    %6 = vector.load %arg3[%c0_5, %c0_6] : memref<1x128xf32, #tpu.memory_space<vmem>>, vector<1x128xf32>
    %7 = vector.broadcast %6 : vector<1x128xf32> to vector<64x128xf32>
    %8 = arith.addf %5, %7 : vector<64x128xf32>
    %cst_7 = arith.constant 2.000000e+01 : f32
    %9 = vector.broadcast %cst_7 : f32 to vector<64x128xf32>
    %10 = arith.minimumf %8, %9 : vector<64x128xf32>
    %11 = math.exp %10 : vector<64x128xf32>
    %cst_8 = arith.constant 2.000000e+00 : f32
    %12 = vector.broadcast %cst_8 : f32 to vector<64x128xf32>
    %13 = arith.addf %11, %12 : vector<64x128xf32>
    %14 = arith.mulf %11, %13 : vector<64x128xf32>
    %cst_9 = arith.constant 2.000000e+00 : f32
    %15 = vector.broadcast %cst_9 : f32 to vector<64x128xf32>
    %16 = arith.addf %14, %15 : vector<64x128xf32>
    %17 = arith.divf %14, %16 : vector<64x128xf32>
    %18 = arith.mulf %8, %17 : vector<64x128xf32>
    %19 = arith.truncf %18 : vector<64x128xf32> to vector<64x128xbf16>
    %c0_10 = arith.constant 0 : index
    %c0_11 = arith.constant 0 : index
    %20 = vector.load %arg4[%c0_10, %c0_11] : memref<64x128xbf16, #tpu.memory_space<vmem>>, vector<64x128xbf16>
    tpu.vector_store %arg4[%c0_10, %c0_11], %19 {strides = array<i32>} : memref<64x128xbf16, #tpu.memory_space<vmem>>, vector<64x128xbf16>,
    return
  }
  func.func @transform_0(%arg0: i32) -> (i32, i32) {
    %c0_i32 = arith.constant 0 : i32
    %c0_i32_0 = arith.constant 0 : i32
    return %arg0, %c0_i32 : i32, i32
  }
  func.func @transform_1(%arg0: i32) -> (i32, i32, i32) {
    %c0_i32 = arith.constant 0 : i32
    %c0_i32_0 = arith.constant 0 : i32
    %c0_i32_1 = arith.constant 0 : i32
    %c0_i32_2 = arith.constant 0 : i32
    return %c0_i32, %c0_i32_0, %c0_i32_1 : i32, i32, i32
  }
  func.func @transform_2(%arg0: i32) -> (i32, i32) {
    %c0_i32 = arith.constant 0 : i32
    %c0_i32_0 = arith.constant 0 : i32
    %c0_i32_1 = arith.constant 0 : i32
    return %c0_i32, %c0_i32_0 : i32, i32
  }
  func.func @transform_3(%arg0: i32) -> (i32, i32) {
    %c0_i32 = arith.constant 0 : i32
    %c0_i32_0 = arith.constant 0 : i32
    return %arg0, %c0_i32 : i32, i32
  }
}

module attributes {stable_mosaic.version = 11 : i64} {
  func.func @_conv_taps_kernel(%arg0: i32, %arg1: memref<64x128xbf16, #tpu.memory_space<vmem>>, %arg2: memref<1x128x256xbf16, #tpu.memory_space<vmem>>, %arg3: memref<1x256xf32, #tpu.memory_space<vmem>>, %arg4: memref<64x256xbf16, #tpu.memory_space<vmem>>) attributes {dimension_semantics = [#tpu.dimension_semantics<parallel>], iteration_bounds = array<i64: 2>, scalar_prefetch = 0 : i64, scratch_operands = 0 : i64, tpu.core_type = #tpu.core_type<tc>, window_params = [{transform_indices = @transform_0, window_bounds = array<i64: 64, 128>}, {pipeline_mode = #tpu.pipeline_mode<synchronous>, transform_indices = @transform_1, window_bounds = array<i64: 1, 128, 256>}, {pipeline_mode = #tpu.pipeline_mode<synchronous>, transform_indices = @transform_2, window_bounds = array<i64: 1, 256>}, {transform_indices = @transform_3, window_bounds = array<i64: 64, 256>}]} {
    %cst = arith.constant 0.000000e+00 : f32
    %0 = vector.broadcast %cst : f32 to vector<64x256xf32>
    %c0 = arith.constant 0 : index
    %c0_0 = arith.constant 0 : index
    %1 = vector.load %arg1[%c0, %c0_0] : memref<64x128xbf16, #tpu.memory_space<vmem>>, vector<64x128xbf16>
    %c0_1 = arith.constant 0 : index
    %c0_2 = arith.constant 0 : index
    %c0_3 = arith.constant 0 : index
    %2 = vector.load %arg2[%c0_1, %c0_2, %c0_3] : memref<1x128x256xbf16, #tpu.memory_space<vmem>>, vector<1x128x256xbf16>
    %3 = vector.shape_cast %2 : vector<1x128x256xbf16> to vector<128x256xbf16>
    %cst_4 = arith.constant dense<0.000000e+00> : vector<64x256xf32>
    %4 = tpu.matmul %1, %3, %cst_4 {dimension_numbers = #tpu.dot_dimension_numbers<[1], [0], [0], [1], [0, 0, 1, 1], [], []>} : vector<64x128xbf16>, vector<128x256xbf16>, vector<64x256xf32> -> vector<64x256xf32>
    %5 = arith.addf %0, %4 : vector<64x256xf32>
    %c0_5 = arith.constant 0 : index
    %c0_6 = arith.constant 0 : index
    %6 = vector.load %arg3[%c0_5, %c0_6] : memref<1x256xf32, #tpu.memory_space<vmem>>, vector<1x256xf32>
    %7 = vector.broadcast %6 : vector<1x256xf32> to vector<64x256xf32>
    %8 = arith.addf %5, %7 : vector<64x256xf32>
    %cst_7 = arith.constant 2.000000e+01 : f32
    %9 = vector.broadcast %cst_7 : f32 to vector<64x256xf32>
    %10 = arith.minimumf %8, %9 : vector<64x256xf32>
    %11 = math.exp %10 : vector<64x256xf32>
    %cst_8 = arith.constant 2.000000e+00 : f32
    %12 = vector.broadcast %cst_8 : f32 to vector<64x256xf32>
    %13 = arith.addf %11, %12 : vector<64x256xf32>
    %14 = arith.mulf %11, %13 : vector<64x256xf32>
    %cst_9 = arith.constant 2.000000e+00 : f32
    %15 = vector.broadcast %cst_9 : f32 to vector<64x256xf32>
    %16 = arith.addf %14, %15 : vector<64x256xf32>
    %17 = arith.divf %14, %16 : vector<64x256xf32>
    %18 = arith.mulf %8, %17 : vector<64x256xf32>
    %19 = arith.truncf %18 : vector<64x256xf32> to vector<64x256xbf16>
    %c0_10 = arith.constant 0 : index
    %c0_11 = arith.constant 0 : index
    %20 = vector.load %arg4[%c0_10, %c0_11] : memref<64x256xbf16, #tpu.memory_space<vmem>>, vector<64x256xbf16>
    tpu.vector_store %arg4[%c0_10, %c0_11], %19 {strides = array<i32>} : memref<64x256xbf16, #tpu.memory_space<vmem>>, vector<64x256xbf16>,
    return
  }
  func.func @transform_0(%arg0: i32) -> (i32, i32) {
    %c0_i32 = arith.constant 0 : i32
    %c0_i32_0 = arith.constant 0 : i32
    return %arg0, %c0_i32 : i32, i32
  }
  func.func @transform_1(%arg0: i32) -> (i32, i32, i32) {
    %c0_i32 = arith.constant 0 : i32
    %c0_i32_0 = arith.constant 0 : i32
    %c0_i32_1 = arith.constant 0 : i32
    %c0_i32_2 = arith.constant 0 : i32
    return %c0_i32, %c0_i32_0, %c0_i32_1 : i32, i32, i32
  }
  func.func @transform_2(%arg0: i32) -> (i32, i32) {
    %c0_i32 = arith.constant 0 : i32
    %c0_i32_0 = arith.constant 0 : i32
    %c0_i32_1 = arith.constant 0 : i32
    return %c0_i32, %c0_i32_0 : i32, i32
  }
  func.func @transform_3(%arg0: i32) -> (i32, i32) {
    %c0_i32 = arith.constant 0 : i32
    %c0_i32_0 = arith.constant 0 : i32
    return %arg0, %c0_i32 : i32, i32
  }
}

module attributes {stable_mosaic.version = 11 : i64} {
  func.func @_conv_taps_kernel(%arg0: i32, %arg1: memref<112x128xbf16, #tpu.memory_space<vmem>>, %arg2: memref<9x128x128xbf16, #tpu.memory_space<vmem>>, %arg3: memref<1x128xf32, #tpu.memory_space<vmem>>, %arg4: memref<80x128xbf16, #tpu.memory_space<vmem>>) attributes {dimension_semantics = [#tpu.dimension_semantics<parallel>], iteration_bounds = array<i64: 2>, scalar_prefetch = 0 : i64, scratch_operands = 0 : i64, tpu.core_type = #tpu.core_type<tc>, window_params = [{transform_indices = @transform_0, window_bounds = array<i64: 112, 128>}, {pipeline_mode = #tpu.pipeline_mode<synchronous>, transform_indices = @transform_1, window_bounds = array<i64: 9, 128, 128>}, {pipeline_mode = #tpu.pipeline_mode<synchronous>, transform_indices = @transform_2, window_bounds = array<i64: 1, 128>}, {transform_indices = @transform_3, window_bounds = array<i64: 80, 128>}]} {
    %cst = arith.constant 0.000000e+00 : f32
    %0 = vector.broadcast %cst : f32 to vector<80x128xf32>
    %c0 = arith.constant 0 : index
    %c0_0 = arith.constant 0 : index
    %1 = vector.load %arg1[%c0, %c0_0] : memref<112x128xbf16, #tpu.memory_space<vmem>>, vector<80x128xbf16>
    %c0_1 = arith.constant 0 : index
    %c0_2 = arith.constant 0 : index
    %c0_3 = arith.constant 0 : index
    %2 = vector.load %arg2[%c0_1, %c0_2, %c0_3] : memref<9x128x128xbf16, #tpu.memory_space<vmem>>, vector<1x128x128xbf16>
    %3 = vector.shape_cast %2 : vector<1x128x128xbf16> to vector<128x128xbf16>
    %cst_4 = arith.constant dense<0.000000e+00> : vector<80x128xf32>
    %4 = tpu.matmul %1, %3, %cst_4 {dimension_numbers = #tpu.dot_dimension_numbers<[1], [0], [0], [1], [0, 0, 1, 1], [], []>} : vector<80x128xbf16>, vector<128x128xbf16>, vector<80x128xf32> -> vector<80x128xf32>
    %5 = arith.addf %0, %4 : vector<80x128xf32>
    %c1 = arith.constant 1 : index
    %c0_5 = arith.constant 0 : index
    %6 = vector.load %arg1[%c1, %c0_5] : memref<112x128xbf16, #tpu.memory_space<vmem>>, vector<80x128xbf16>
    %c1_6 = arith.constant 1 : index
    %c0_7 = arith.constant 0 : index
    %c0_8 = arith.constant 0 : index
    %7 = vector.load %arg2[%c1_6, %c0_7, %c0_8] : memref<9x128x128xbf16, #tpu.memory_space<vmem>>, vector<1x128x128xbf16>
    %8 = vector.shape_cast %7 : vector<1x128x128xbf16> to vector<128x128xbf16>
    %cst_9 = arith.constant dense<0.000000e+00> : vector<80x128xf32>
    %9 = tpu.matmul %6, %8, %cst_9 {dimension_numbers = #tpu.dot_dimension_numbers<[1], [0], [0], [1], [0, 0, 1, 1], [], []>} : vector<80x128xbf16>, vector<128x128xbf16>, vector<80x128xf32> -> vector<80x128xf32>
    %10 = arith.addf %5, %9 : vector<80x128xf32>
    %c2 = arith.constant 2 : index
    %c0_10 = arith.constant 0 : index
    %11 = vector.load %arg1[%c2, %c0_10] : memref<112x128xbf16, #tpu.memory_space<vmem>>, vector<80x128xbf16>
    %c2_11 = arith.constant 2 : index
    %c0_12 = arith.constant 0 : index
    %c0_13 = arith.constant 0 : index
    %12 = vector.load %arg2[%c2_11, %c0_12, %c0_13] : memref<9x128x128xbf16, #tpu.memory_space<vmem>>, vector<1x128x128xbf16>
    %13 = vector.shape_cast %12 : vector<1x128x128xbf16> to vector<128x128xbf16>
    %cst_14 = arith.constant dense<0.000000e+00> : vector<80x128xf32>
    %14 = tpu.matmul %11, %13, %cst_14 {dimension_numbers = #tpu.dot_dimension_numbers<[1], [0], [0], [1], [0, 0, 1, 1], [], []>} : vector<80x128xbf16>, vector<128x128xbf16>, vector<80x128xf32> -> vector<80x128xf32>
    %15 = arith.addf %10, %14 : vector<80x128xf32>
    %c10 = arith.constant 10 : index
    %c0_15 = arith.constant 0 : index
    %16 = vector.load %arg1[%c10, %c0_15] : memref<112x128xbf16, #tpu.memory_space<vmem>>, vector<80x128xbf16>
    %c3 = arith.constant 3 : index
    %c0_16 = arith.constant 0 : index
    %c0_17 = arith.constant 0 : index
    %17 = vector.load %arg2[%c3, %c0_16, %c0_17] : memref<9x128x128xbf16, #tpu.memory_space<vmem>>, vector<1x128x128xbf16>
    %18 = vector.shape_cast %17 : vector<1x128x128xbf16> to vector<128x128xbf16>
    %cst_18 = arith.constant dense<0.000000e+00> : vector<80x128xf32>
    %19 = tpu.matmul %16, %18, %cst_18 {dimension_numbers = #tpu.dot_dimension_numbers<[1], [0], [0], [1], [0, 0, 1, 1], [], []>} : vector<80x128xbf16>, vector<128x128xbf16>, vector<80x128xf32> -> vector<80x128xf32>
    %20 = arith.addf %15, %19 : vector<80x128xf32>
    %c11 = arith.constant 11 : index
    %c0_19 = arith.constant 0 : index
    %21 = vector.load %arg1[%c11, %c0_19] : memref<112x128xbf16, #tpu.memory_space<vmem>>, vector<80x128xbf16>
    %c4 = arith.constant 4 : index
    %c0_20 = arith.constant 0 : index
    %c0_21 = arith.constant 0 : index
    %22 = vector.load %arg2[%c4, %c0_20, %c0_21] : memref<9x128x128xbf16, #tpu.memory_space<vmem>>, vector<1x128x128xbf16>
    %23 = vector.shape_cast %22 : vector<1x128x128xbf16> to vector<128x128xbf16>
    %cst_22 = arith.constant dense<0.000000e+00> : vector<80x128xf32>
    %24 = tpu.matmul %21, %23, %cst_22 {dimension_numbers = #tpu.dot_dimension_numbers<[1], [0], [0], [1], [0, 0, 1, 1], [], []>} : vector<80x128xbf16>, vector<128x128xbf16>, vector<80x128xf32> -> vector<80x128xf32>
    %25 = arith.addf %20, %24 : vector<80x128xf32>
    %c12 = arith.constant 12 : index
    %c0_23 = arith.constant 0 : index
    %26 = vector.load %arg1[%c12, %c0_23] : memref<112x128xbf16, #tpu.memory_space<vmem>>, vector<80x128xbf16>
    %c5 = arith.constant 5 : index
    %c0_24 = arith.constant 0 : index
    %c0_25 = arith.constant 0 : index
    %27 = vector.load %arg2[%c5, %c0_24, %c0_25] : memref<9x128x128xbf16, #tpu.memory_space<vmem>>, vector<1x128x128xbf16>
    %28 = vector.shape_cast %27 : vector<1x128x128xbf16> to vector<128x128xbf16>
    %cst_26 = arith.constant dense<0.000000e+00> : vector<80x128xf32>
    %29 = tpu.matmul %26, %28, %cst_26 {dimension_numbers = #tpu.dot_dimension_numbers<[1], [0], [0], [1], [0, 0, 1, 1], [], []>} : vector<80x128xbf16>, vector<128x128xbf16>, vector<80x128xf32> -> vector<80x128xf32>
    %30 = arith.addf %25, %29 : vector<80x128xf32>
    %c20 = arith.constant 20 : index
    %c0_27 = arith.constant 0 : index
    %31 = vector.load %arg1[%c20, %c0_27] : memref<112x128xbf16, #tpu.memory_space<vmem>>, vector<80x128xbf16>
    %c6 = arith.constant 6 : index
    %c0_28 = arith.constant 0 : index
    %c0_29 = arith.constant 0 : index
    %32 = vector.load %arg2[%c6, %c0_28, %c0_29] : memref<9x128x128xbf16, #tpu.memory_space<vmem>>, vector<1x128x128xbf16>
    %33 = vector.shape_cast %32 : vector<1x128x128xbf16> to vector<128x128xbf16>
    %cst_30 = arith.constant dense<0.000000e+00> : vector<80x128xf32>
    %34 = tpu.matmul %31, %33, %cst_30 {dimension_numbers = #tpu.dot_dimension_numbers<[1], [0], [0], [1], [0, 0, 1, 1], [], []>} : vector<80x128xbf16>, vector<128x128xbf16>, vector<80x128xf32> -> vector<80x128xf32>
    %35 = arith.addf %30, %34 : vector<80x128xf32>
    %c21 = arith.constant 21 : index
    %c0_31 = arith.constant 0 : index
    %36 = vector.load %arg1[%c21, %c0_31] : memref<112x128xbf16, #tpu.memory_space<vmem>>, vector<80x128xbf16>
    %c7 = arith.constant 7 : index
    %c0_32 = arith.constant 0 : index
    %c0_33 = arith.constant 0 : index
    %37 = vector.load %arg2[%c7, %c0_32, %c0_33] : memref<9x128x128xbf16, #tpu.memory_space<vmem>>, vector<1x128x128xbf16>
    %38 = vector.shape_cast %37 : vector<1x128x128xbf16> to vector<128x128xbf16>
    %cst_34 = arith.constant dense<0.000000e+00> : vector<80x128xf32>
    %39 = tpu.matmul %36, %38, %cst_34 {dimension_numbers = #tpu.dot_dimension_numbers<[1], [0], [0], [1], [0, 0, 1, 1], [], []>} : vector<80x128xbf16>, vector<128x128xbf16>, vector<80x128xf32> -> vector<80x128xf32>
    %40 = arith.addf %35, %39 : vector<80x128xf32>
    %c22 = arith.constant 22 : index
    %c0_35 = arith.constant 0 : index
    %41 = vector.load %arg1[%c22, %c0_35] : memref<112x128xbf16, #tpu.memory_space<vmem>>, vector<80x128xbf16>
    %c8 = arith.constant 8 : index
    %c0_36 = arith.constant 0 : index
    %c0_37 = arith.constant 0 : index
    %42 = vector.load %arg2[%c8, %c0_36, %c0_37] : memref<9x128x128xbf16, #tpu.memory_space<vmem>>, vector<1x128x128xbf16>
    %43 = vector.shape_cast %42 : vector<1x128x128xbf16> to vector<128x128xbf16>
    %cst_38 = arith.constant dense<0.000000e+00> : vector<80x128xf32>
    %44 = tpu.matmul %41, %43, %cst_38 {dimension_numbers = #tpu.dot_dimension_numbers<[1], [0], [0], [1], [0, 0, 1, 1], [], []>} : vector<80x128xbf16>, vector<128x128xbf16>, vector<80x128xf32> -> vector<80x128xf32>
    %45 = arith.addf %40, %44 : vector<80x128xf32>
    %c0_39 = arith.constant 0 : index
    %c0_40 = arith.constant 0 : index
    %46 = vector.load %arg3[%c0_39, %c0_40] : memref<1x128xf32, #tpu.memory_space<vmem>>, vector<1x128xf32>
    %47 = vector.broadcast %46 : vector<1x128xf32> to vector<80x128xf32>
    %48 = arith.addf %45, %47 : vector<80x128xf32>
    %cst_41 = arith.constant 2.000000e+01 : f32
    %49 = vector.broadcast %cst_41 : f32 to vector<80x128xf32>
    %50 = arith.minimumf %48, %49 : vector<80x128xf32>
    %51 = math.exp %50 : vector<80x128xf32>
    %cst_42 = arith.constant 2.000000e+00 : f32
    %52 = vector.broadcast %cst_42 : f32 to vector<80x128xf32>
    %53 = arith.addf %51, %52 : vector<80x128xf32>
    %54 = arith.mulf %51, %53 : vector<80x128xf32>
    %cst_43 = arith.constant 2.000000e+00 : f32
    %55 = vector.broadcast %cst_43 : f32 to vector<80x128xf32>
    %56 = arith.addf %54, %55 : vector<80x128xf32>
    %57 = arith.divf %54, %56 : vector<80x128xf32>
    %58 = arith.mulf %48, %57 : vector<80x128xf32>
    %59 = arith.truncf %58 : vector<80x128xf32> to vector<80x128xbf16>
    %c0_44 = arith.constant 0 : index
    %c0_45 = arith.constant 0 : index
    %60 = vector.load %arg4[%c0_44, %c0_45] : memref<80x128xbf16, #tpu.memory_space<vmem>>, vector<80x128xbf16>
    tpu.vector_store %arg4[%c0_44, %c0_45], %59 {strides = array<i32>} : memref<80x128xbf16, #tpu.memory_space<vmem>>, vector<80x128xbf16>,
    return
  }
  func.func @transform_0(%arg0: i32) -> (i32, i32) {
    %c0_i32 = arith.constant 0 : i32
    %c0_i32_0 = arith.constant 0 : i32
    return %arg0, %c0_i32 : i32, i32
  }
  func.func @transform_1(%arg0: i32) -> (i32, i32, i32) {
    %c0_i32 = arith.constant 0 : i32
    %c0_i32_0 = arith.constant 0 : i32
    %c0_i32_1 = arith.constant 0 : i32
    %c0_i32_2 = arith.constant 0 : i32
    return %c0_i32, %c0_i32_0, %c0_i32_1 : i32, i32, i32
  }
  func.func @transform_2(%arg0: i32) -> (i32, i32) {
    %c0_i32 = arith.constant 0 : i32
    %c0_i32_0 = arith.constant 0 : i32
    %c0_i32_1 = arith.constant 0 : i32
    return %c0_i32, %c0_i32_0 : i32, i32
  }
  func.func @transform_3(%arg0: i32) -> (i32, i32) {
    %c0_i32 = arith.constant 0 : i32
    %c0_i32_0 = arith.constant 0 : i32
    return %arg0, %c0_i32 : i32, i32
  }
}

module attributes {stable_mosaic.version = 11 : i64} {
  func.func @_preadd_conv1x1_kernel(%arg0: i32, %arg1: memref<64x128xbf16, #tpu.memory_space<vmem>>, %arg2: memref<64x128xbf16, #tpu.memory_space<vmem>>, %arg3: memref<1x128x128xbf16, #tpu.memory_space<vmem>>, %arg4: memref<1x128xf32, #tpu.memory_space<vmem>>, %arg5: memref<64x128xbf16, #tpu.memory_space<vmem>>) attributes {dimension_semantics = [#tpu.dimension_semantics<parallel>], iteration_bounds = array<i64: 2>, scalar_prefetch = 0 : i64, scratch_operands = 0 : i64, tpu.core_type = #tpu.core_type<tc>, window_params = [{transform_indices = @transform_0, window_bounds = array<i64: 64, 128>}, {transform_indices = @transform_1, window_bounds = array<i64: 64, 128>}, {pipeline_mode = #tpu.pipeline_mode<synchronous>, transform_indices = @transform_2, window_bounds = array<i64: 1, 128, 128>}, {pipeline_mode = #tpu.pipeline_mode<synchronous>, transform_indices = @transform_3, window_bounds = array<i64: 1, 128>}, {transform_indices = @transform_4, window_bounds = array<i64: 64, 128>}]} {
    %c0 = arith.constant 0 : index
    %c0_0 = arith.constant 0 : index
    %0 = vector.load %arg1[%c0, %c0_0] : memref<64x128xbf16, #tpu.memory_space<vmem>>, vector<64x128xbf16>
    %c0_1 = arith.constant 0 : index
    %c0_2 = arith.constant 0 : index
    %1 = vector.load %arg2[%c0_1, %c0_2] : memref<64x128xbf16, #tpu.memory_space<vmem>>, vector<64x128xbf16>
    %2 = arith.addf %0, %1 : vector<64x128xbf16>
    %c0_3 = arith.constant 0 : index
    %c0_4 = arith.constant 0 : index
    %c0_5 = arith.constant 0 : index
    %3 = vector.load %arg3[%c0_3, %c0_4, %c0_5] : memref<1x128x128xbf16, #tpu.memory_space<vmem>>, vector<1x128x128xbf16>
    %4 = vector.shape_cast %3 : vector<1x128x128xbf16> to vector<128x128xbf16>
    %cst = arith.constant dense<0.000000e+00> : vector<64x128xf32>
    %5 = tpu.matmul %2, %4, %cst {dimension_numbers = #tpu.dot_dimension_numbers<[1], [0], [0], [1], [0, 0, 1, 1], [], []>} : vector<64x128xbf16>, vector<128x128xbf16>, vector<64x128xf32> -> vector<64x128xf32>
    %c0_6 = arith.constant 0 : index
    %c0_7 = arith.constant 0 : index
    %6 = vector.load %arg4[%c0_6, %c0_7] : memref<1x128xf32, #tpu.memory_space<vmem>>, vector<1x128xf32>
    %7 = vector.broadcast %6 : vector<1x128xf32> to vector<64x128xf32>
    %8 = arith.addf %5, %7 : vector<64x128xf32>
    %cst_8 = arith.constant 2.000000e+01 : f32
    %9 = vector.broadcast %cst_8 : f32 to vector<64x128xf32>
    %10 = arith.minimumf %8, %9 : vector<64x128xf32>
    %11 = math.exp %10 : vector<64x128xf32>
    %cst_9 = arith.constant 2.000000e+00 : f32
    %12 = vector.broadcast %cst_9 : f32 to vector<64x128xf32>
    %13 = arith.addf %11, %12 : vector<64x128xf32>
    %14 = arith.mulf %11, %13 : vector<64x128xf32>
    %cst_10 = arith.constant 2.000000e+00 : f32
    %15 = vector.broadcast %cst_10 : f32 to vector<64x128xf32>
    %16 = arith.addf %14, %15 : vector<64x128xf32>
    %17 = arith.divf %14, %16 : vector<64x128xf32>
    %18 = arith.mulf %8, %17 : vector<64x128xf32>
    %19 = arith.truncf %18 : vector<64x128xf32> to vector<64x128xbf16>
    %c0_11 = arith.constant 0 : index
    %c0_12 = arith.constant 0 : index
    %20 = vector.load %arg5[%c0_11, %c0_12] : memref<64x128xbf16, #tpu.memory_space<vmem>>, vector<64x128xbf16>
    tpu.vector_store %arg5[%c0_11, %c0_12], %19 {strides = array<i32>} : memref<64x128xbf16, #tpu.memory_space<vmem>>, vector<64x128xbf16>,
    return
  }
  func.func @transform_0(%arg0: i32) -> (i32, i32) {
    %c0_i32 = arith.constant 0 : i32
    %c0_i32_0 = arith.constant 0 : i32
    return %arg0, %c0_i32 : i32, i32
  }
  func.func @transform_1(%arg0: i32) -> (i32, i32) {
    %c0_i32 = arith.constant 0 : i32
    %c0_i32_0 = arith.constant 0 : i32
    return %arg0, %c0_i32 : i32, i32
  }
  func.func @transform_2(%arg0: i32) -> (i32, i32, i32) {
    %c0_i32 = arith.constant 0 : i32
    %c0_i32_0 = arith.constant 0 : i32
    %c0_i32_1 = arith.constant 0 : i32
    %c0_i32_2 = arith.constant 0 : i32
    return %c0_i32, %c0_i32_0, %c0_i32_1 : i32, i32, i32
  }
  func.func @transform_3(%arg0: i32) -> (i32, i32) {
    %c0_i32 = arith.constant 0 : i32
    %c0_i32_0 = arith.constant 0 : i32
    %c0_i32_1 = arith.constant 0 : i32
    return %c0_i32, %c0_i32_0 : i32, i32
  }
  func.func @transform_4(%arg0: i32) -> (i32, i32) {
    %c0_i32 = arith.constant 0 : i32
    %c0_i32_0 = arith.constant 0 : i32
    return %arg0, %c0_i32 : i32, i32
  }
}

module attributes {stable_mosaic.version = 11 : i64} {
  func.func @_concat_conv1x1_kernel(%arg0: i32, %arg1: memref<64x128xbf16, #tpu.memory_space<vmem>>, %arg2: memref<64x128xbf16, #tpu.memory_space<vmem>>, %arg3: memref<2x128x128xbf16, #tpu.memory_space<vmem>>, %arg4: memref<1x128xf32, #tpu.memory_space<vmem>>, %arg5: memref<64x128xbf16, #tpu.memory_space<vmem>>) attributes {dimension_semantics = [#tpu.dimension_semantics<parallel>], iteration_bounds = array<i64: 2>, scalar_prefetch = 0 : i64, scratch_operands = 0 : i64, tpu.core_type = #tpu.core_type<tc>, window_params = [{transform_indices = @transform_0, window_bounds = array<i64: 64, 128>}, {transform_indices = @transform_1, window_bounds = array<i64: 64, 128>}, {pipeline_mode = #tpu.pipeline_mode<synchronous>, transform_indices = @transform_2, window_bounds = array<i64: 2, 128, 128>}, {pipeline_mode = #tpu.pipeline_mode<synchronous>, transform_indices = @transform_3, window_bounds = array<i64: 1, 128>}, {transform_indices = @transform_4, window_bounds = array<i64: 64, 128>}]} {
    %c0 = arith.constant 0 : index
    %c0_0 = arith.constant 0 : index
    %0 = vector.load %arg1[%c0, %c0_0] : memref<64x128xbf16, #tpu.memory_space<vmem>>, vector<64x128xbf16>
    %c0_1 = arith.constant 0 : index
    %c0_2 = arith.constant 0 : index
    %c0_3 = arith.constant 0 : index
    %1 = vector.load %arg3[%c0_1, %c0_2, %c0_3] : memref<2x128x128xbf16, #tpu.memory_space<vmem>>, vector<1x128x128xbf16>
    %2 = vector.shape_cast %1 : vector<1x128x128xbf16> to vector<128x128xbf16>
    %cst = arith.constant dense<0.000000e+00> : vector<64x128xf32>
    %3 = tpu.matmul %0, %2, %cst {dimension_numbers = #tpu.dot_dimension_numbers<[1], [0], [0], [1], [0, 0, 1, 1], [], []>} : vector<64x128xbf16>, vector<128x128xbf16>, vector<64x128xf32> -> vector<64x128xf32>
    %c0_4 = arith.constant 0 : index
    %c0_5 = arith.constant 0 : index
    %4 = vector.load %arg2[%c0_4, %c0_5] : memref<64x128xbf16, #tpu.memory_space<vmem>>, vector<64x128xbf16>
    %c1 = arith.constant 1 : index
    %c0_6 = arith.constant 0 : index
    %c0_7 = arith.constant 0 : index
    %5 = vector.load %arg3[%c1, %c0_6, %c0_7] : memref<2x128x128xbf16, #tpu.memory_space<vmem>>, vector<1x128x128xbf16>
    %6 = vector.shape_cast %5 : vector<1x128x128xbf16> to vector<128x128xbf16>
    %cst_8 = arith.constant dense<0.000000e+00> : vector<64x128xf32>
    %7 = tpu.matmul %4, %6, %cst_8 {dimension_numbers = #tpu.dot_dimension_numbers<[1], [0], [0], [1], [0, 0, 1, 1], [], []>} : vector<64x128xbf16>, vector<128x128xbf16>, vector<64x128xf32> -> vector<64x128xf32>
    %8 = arith.addf %3, %7 : vector<64x128xf32>
    %c0_9 = arith.constant 0 : index
    %c0_10 = arith.constant 0 : index
    %9 = vector.load %arg4[%c0_9, %c0_10] : memref<1x128xf32, #tpu.memory_space<vmem>>, vector<1x128xf32>
    %10 = vector.broadcast %9 : vector<1x128xf32> to vector<64x128xf32>
    %11 = arith.addf %8, %10 : vector<64x128xf32>
    %cst_11 = arith.constant 2.000000e+01 : f32
    %12 = vector.broadcast %cst_11 : f32 to vector<64x128xf32>
    %13 = arith.minimumf %11, %12 : vector<64x128xf32>
    %14 = math.exp %13 : vector<64x128xf32>
    %cst_12 = arith.constant 2.000000e+00 : f32
    %15 = vector.broadcast %cst_12 : f32 to vector<64x128xf32>
    %16 = arith.addf %14, %15 : vector<64x128xf32>
    %17 = arith.mulf %14, %16 : vector<64x128xf32>
    %cst_13 = arith.constant 2.000000e+00 : f32
    %18 = vector.broadcast %cst_13 : f32 to vector<64x128xf32>
    %19 = arith.addf %17, %18 : vector<64x128xf32>
    %20 = arith.divf %17, %19 : vector<64x128xf32>
    %21 = arith.mulf %11, %20 : vector<64x128xf32>
    %22 = arith.truncf %21 : vector<64x128xf32> to vector<64x128xbf16>
    %c0_14 = arith.constant 0 : index
    %c0_15 = arith.constant 0 : index
    %23 = vector.load %arg5[%c0_14, %c0_15] : memref<64x128xbf16, #tpu.memory_space<vmem>>, vector<64x128xbf16>
    tpu.vector_store %arg5[%c0_14, %c0_15], %22 {strides = array<i32>} : memref<64x128xbf16, #tpu.memory_space<vmem>>, vector<64x128xbf16>,
    return
  }
  func.func @transform_0(%arg0: i32) -> (i32, i32) {
    %c0_i32 = arith.constant 0 : i32
    %c0_i32_0 = arith.constant 0 : i32
    return %arg0, %c0_i32 : i32, i32
  }
  func.func @transform_1(%arg0: i32) -> (i32, i32) {
    %c1_i32 = arith.constant 1 : i32
    %c0_i32 = arith.constant 0 : i32
    return %arg0, %c1_i32 : i32, i32
  }
  func.func @transform_2(%arg0: i32) -> (i32, i32, i32) {
    %c0_i32 = arith.constant 0 : i32
    %c0_i32_0 = arith.constant 0 : i32
    %c0_i32_1 = arith.constant 0 : i32
    %c0_i32_2 = arith.constant 0 : i32
    return %c0_i32, %c0_i32_0, %c0_i32_1 : i32, i32, i32
  }
  func.func @transform_3(%arg0: i32) -> (i32, i32) {
    %c0_i32 = arith.constant 0 : i32
    %c0_i32_0 = arith.constant 0 : i32
    %c0_i32_1 = arith.constant 0 : i32
    return %c0_i32, %c0_i32_0 : i32, i32
  }
  func.func @transform_4(%arg0: i32) -> (i32, i32) {
    %c0_i32 = arith.constant 0 : i32
    %c0_i32_0 = arith.constant 0 : i32
    return %arg0, %c0_i32 : i32, i32
  }
}

</mosaic_0001>

<llo_original>
// kernel: resblock_body_forward.8
$region0: #{resblock_body_forward.8}
  #allocation0 [shape = 'u32[]', space=smem, size = 0x4, offset = 0x4, fixed_abs, tag = 'smem constant byte address 0x4 - core index']
  #allocation1 [shape = 'u32[72,128]{1,0:T(1,128)}', space=vmem, size = 0x9000, scoped, tag = 'internal scratch']
  %s0 = inlined_call_operand.vmem [shape: bf16[128,256], index: 0, kind: input, shape index: {}]
  %s1 = inlined_call_operand.vmem [shape: bf16[1,128,128], index: 1, kind: input, shape index: {}]
  %s2 = inlined_call_operand.vmem [shape: f32[1,128], index: 2, kind: input, shape index: {}]
  %s3 = inlined_call_operand.vmem [shape: bf16[128,128], index: 3, kind: output, shape index: {}]
  %s4 = sld [smem:[#allocation0]]
  $region86: #{resblock_body_forward.8} parent=0
    _
  %s6 = ssub.s32 1, %s4
  %s7 = scalar_select 0, %s6, %s4
  $region1: #{resblock_body_forward.8} parent=0
    #allocation2 [shape = 'u8[32768]{0}', space=vmem, size = 0x8000, scoped, tag = 'input window, operand 0']
    loop: start=0, step=1, limit=4
    $region2: #{resblock_body_forward.8} parent=1 // loop_pre_header
      _
    $region3: #{resblock_body_forward.8} parent=1 // loop_header
      %s9 = sphi 0, %s13
      %p10 = scmp.ge.s32.totalorder %s9, 4
      %s19 = sphi 0, %s21
      %s22 = sphi 0, %s19
      %s23 = sphi 0, %s22
      %s39 = sphi 0, %s23
      %s43 = sphi 0, %s43
      %s45 = sphi 0, %s43
      %s46 = sphi 0, %s45
      %s60 = sphi 0, %s46
      %s64 = sphi 0, %s64
      %s66 = sphi 0, %s64
      %s67 = sphi 0, %s66
      %s81 = sphi 0, %s67
      %s87 = sphi 0, %s89
      %s90 = sphi 0, %s87
      %s91 = sphi 0, %s90
      %s107 = sphi 0, %s91
    $region4: #{resblock_body_forward.8} parent=1 // loop_header_branch
      %12 = sbr.rel (%p10) target = $region8
    $region5: #{resblock_body_forward.8} parent=1 // loop_body
      %s14 = ssub.s32 %s9, 1
      %s15 = ssub.s32 %s9, 2
      %s16 = sadd.s32 %s9, 1
      %s17 = ssub.s32 %s9, %s16
      %p18 = scmp.eq.s32.totalorder %s17, 0
      %s20 = sadd.s32 %s19, 1
      %s21 = scalar_select %p18, %s19, %s20
      %p24 = pneg %p18
      %p25 = scmp.eq.s32.totalorder %s9, 1
      %p26 = por %p24, %p25
      %p27 = scmp.ne.s32.totalorder %s19, %s22
      %p28 = scmp.eq.s32.totalorder %s9, 0
      %p29 = por %p27, %p28
      %p30 = scmp.ne.s32.totalorder %s19, %s22
      %p31 = scmp.eq.s32.totalorder %s14, 1
      %p32 = por %p30, %p31
      %p33 = scmp.ne.s32.totalorder %s22, %s23
      %p34 = scmp.eq.s32.totalorder %s14, 0
      %p35 = por %p33, %p34
      %p36 = scmp.ne.s32.totalorder %s22, %s23
      %p37 = scmp.eq.s32.totalorder %s15, 1
      %p38 = por %p36, %p37
      %p40 = scmp.ne.s32.totalorder %s23, %s39
      %p41 = scmp.eq.s32.totalorder %s15, 0
      %p42 = por %p40, %p41
      %s44 = sadd.s32 %s43, 1
      %p47 = scmp.eq.s32.totalorder %s9, 1
      %p48 = scmp.ne.s32.totalorder %s43, %s45
      %p49 = scmp.eq.s32.totalorder %s9, 0
      %p50 = por %p48, %p49
      %p51 = scmp.ne.s32.totalorder %s43, %s45
      %p52 = scmp.eq.s32.totalorder %s14, 1
      %p53 = por %p51, %p52
      %p54 = scmp.ne.s32.totalorder %s45, %s46
      %p55 = scmp.eq.s32.totalorder %s14, 0
      %p56 = por %p54, %p55
      %p57 = scmp.ne.s32.totalorder %s45, %s46
      %p58 = scmp.eq.s32.totalorder %s15, 1
      %p59 = por %p57, %p58
      %p61 = scmp.ne.s32.totalorder %s46, %s60
      %p62 = scmp.eq.s32.totalorder %s15, 0
      %p63 = por %p61, %p62
      %s65 = sadd.s32 %s64, 1
      %p68 = scmp.eq.s32.totalorder %s9, 1
      %p69 = scmp.ne.s32.totalorder %s64, %s66
      %p70 = scmp.eq.s32.totalorder %s9, 0
      %p71 = por %p69, %p70
      %p72 = scmp.ne.s32.totalorder %s64, %s66
      %p73 = scmp.eq.s32.totalorder %s14, 1
      %p74 = por %p72, %p73
      %p75 = scmp.ne.s32.totalorder %s66, %s67
      %p76 = scmp.eq.s32.totalorder %s14, 0
      %p77 = por %p75, %p76
      %p78 = scmp.ne.s32.totalorder %s66, %s67
      %p79 = scmp.eq.s32.totalorder %s15, 1
      %p80 = por %p78, %p79
      %p82 = scmp.ne.s32.totalorder %s67, %s81
      %p83 = scmp.eq.s32.totalorder %s15, 0
      %p84 = por %p82, %p83
      %s85 = ssub.s32 %s9, %s16
      %p86 = scmp.eq.s32.totalorder %s85, 0
      %s88 = sadd.s32 %s87, 1
      %s89 = scalar_select %p86, %s87, %s88
      %p92 = pneg %p86
      %p93 = scmp.eq.s32.totalorder %s9, 1
      %p94 = por %p92, %p93
      %p95 = scmp.ne.s32.totalorder %s87, %s90
      %p96 = scmp.eq.s32.totalorder %s9, 0
      %p97 = por %p95, %p96
      %p98 = scmp.ne.s32.totalorder %s87, %s90
      %p99 = scmp.eq.s32.totalorder %s14, 1
      %p100 = por %p98, %p99
      %p101 = scmp.ne.s32.totalorder %s90, %s91
      %p102 = scmp.eq.s32.totalorder %s14, 0
      %p103 = por %p101, %p102
      %p104 = scmp.ne.s32.totalorder %s90, %s91
      %p105 = scmp.eq.s32.totalorder %s15, 1
      %p106 = por %p104, %p105
      %p108 = scmp.ne.s32.totalorder %s91, %s107
      %p109 = scmp.eq.s32.totalorder %s15, 0
      %p110 = por %p108, %p109
      %p111 = scmp.le.s32.totalorder 1, %s9
      %p112 = scmp.lt.s32.totalorder %s9, 3
      %p113 = pnand %p111, %p112
      %p114 = pneg %p113
      // Predicated region
      $region9: #{resblock_body_forward.8} parent=5 // pred_check
        _
      $region10: #{resblock_body_forward.8} parent=5 // pred_check_branch
        %116 = sbr.rel (%p113) target = $region12
      $region11: #{resblock_body_forward.8} parent=5 // pred_region
        %s117 = ssub.s32 %s9, 1
        // Predicated region
        $region13: #{resblock_body_forward.8} parent=11 // pred_check
          %p118 = pneg %p56
        $region14: #{resblock_body_forward.8} parent=11 // pred_check_branch
          %120 = sbr.rel (%p118) target = $region16
        $region15: #{resblock_body_forward.8} parent=11 // pred_region
          _
        $region16: #{resblock_body_forward.8} parent=11 // pred_fallthru
          _
        // Predicated region
        $region17: #{resblock_body_forward.8} parent=11 // pred_check
          %p121 = pneg %p77
        $region18: #{resblock_body_forward.8} parent=11 // pred_check_branch
          %123 = sbr.rel (%p121) target = $region20
        $region19: #{resblock_body_forward.8} parent=11 // pred_region
          _
        $region20: #{resblock_body_forward.8} parent=11 // pred_fallthru
          _
      $region12: #{resblock_body_forward.8} parent=5 // pred_fallthru
        _
      %p124 = scmp.lt.s32.totalorder %s9, 2
      // Predicated region
      $region21: #{resblock_body_forward.8} parent=5 // pred_check
        %p125 = pneg %p124
      $region22: #{resblock_body_forward.8} parent=5 // pred_check_branch
        %127 = sbr.rel (%p125) target = $region24
      $region23: #{resblock_body_forward.8} parent=5 // pred_region
        // Predicated region
        $region25: #{resblock_body_forward.8} parent=23 // pred_check
          %p128 = pneg %p29
        $region26: #{resblock_body_forward.8} parent=23 // pred_check_branch
          %130 = sbr.rel (%p128) target = $region28
        $region27: #{resblock_body_forward.8} parent=23 // pred_region
          %s131 = sand.u32 %s19, 1
          %s132 = sand.u32 %s19, 1
          %s133 = smul.addr %s132, 32
          %s134 = scalar_lea.vmem [#allocation2], %s133
          %s135 = smul.u32 8, %s9
          %s136 = smul.addr %s135, 2
          %s137 = smul.addr %s136, 4
          %s138 = scalar_lea.vmem %s0, %s137
          // Predicated region
          $region29: #{resblock_body_forward.8} parent=27 // pred_check
            _
          $region30: #{resblock_body_forward.8} parent=27 // pred_check_branch
            %140 = sbr.rel (0) target = $region32
          $region31: #{resblock_body_forward.8} parent=27 // pred_region
            // Predicated region
            $region33: #{resblock_body_forward.8} parent=31 // pred_check
              _
            $region34: #{resblock_body_forward.8} parent=31 // pred_check_branch
              %142 = sbr.rel target = $region36
            $region35: #{resblock_body_forward.8} parent=31 // pred_region
              // Predicated region
              $region48: #{resblock_body_forward.8} parent=35 // pred_check
                _
              $region49: #{resblock_body_forward.8} parent=35 // pred_check_branch
                %172 = sbr.rel (0) target = $region51
              $region50: #{resblock_body_forward.8} parent=35 // pred_region
                loop: start=0, step=1, limit=1
                $region52: #{resblock_body_forward.8} parent=50 // loop_pre_header
                  _
                $region53: #{resblock_body_forward.8} parent=50 // loop_header
                  %s174 = sphi 0, %s178
                  %p175 = scmp.ge.s32.totalorder %s174, 1
                  %s179 = sphi %s138, %s138
                  %s180 = sphi %s134, %s134
                $region54: #{resblock_body_forward.8} parent=50 // loop_header_branch
                  %177 = sbr.rel (%p175) target = $region58
                $region55: #{resblock_body_forward.8} parent=50 // loop_body
                  _
                $region56: #{resblock_body_forward.8} parent=50 // loop_footer
                  %s178 = sadd.s32 1, %s174
                $region57: #{resblock_body_forward.8} parent=50 // loop_footer_branch
                  %173 = sbr.rel target = $region53
                $region58: #{resblock_body_forward.8} parent=50 // loop_exit
                  _
                %s182 = ssub.s32 16, 1
                loop: start=0, step=1, limit=1
                $region59: #{resblock_body_forward.8} parent=50 // loop_pre_header
                  _
                $region60: #{resblock_body_forward.8} parent=50 // loop_header
                  %s184 = sphi 0, %s188
                  %p185 = scmp.ge.s32.totalorder %s184, 1
                  %s189 = sphi %s138, %s138
                  %s190 = sphi %s134, %s134
                $region61: #{resblock_body_forward.8} parent=50 // loop_header_branch
                  %187 = sbr.rel (%p185) target = $region65
                $region62: #{resblock_body_forward.8} parent=50 // loop_body
                  %v191 = vld [vmem:[%s189] sm:%s182]
                  %192 = vst [vmem:[%s190] sm:%s182] %v191
                  %v193 = vld [vmem:[%s189 + $0x8] sm:%s182]
                  %194 = vst [vmem:[%s190 + $0x4] sm:%s182] %v193
                  %v195 = vld [vmem:[%s189 + $0x10] sm:%s182]
                  %196 = vst [vmem:[%s190 + $0x8] sm:%s182] %v195
                  %v197 = vld [vmem:[%s189 + $0x18] sm:%s182]
                  %198 = vst [vmem:[%s190 + $0xc] sm:%s182] %v197
                  %v199 = vld [vmem:[%s189 + $0x20] sm:%s182]
                  %200 = vst [vmem:[%s190 + $0x10] sm:%s182] %v199
                  %v201 = vld [vmem:[%s189 + $0x28] sm:%s182]
                  %202 = vst [vmem:[%s190 + $0x14] sm:%s182] %v201
                  %v203 = vld [vmem:[%s189 + $0x30] sm:%s182]
                  %204 = vst [vmem:[%s190 + $0x18] sm:%s182] %v203
                  %v205 = vld [vmem:[%s189 + $0x38] sm:%s182]
                  %206 = vst [vmem:[%s190 + $0x1c] sm:%s182] %v205
                $region63: #{resblock_body_forward.8} parent=50 // loop_footer
                  %s188 = sadd.s32 1, %s184
                $region64: #{resblock_body_forward.8} parent=50 // loop_footer_branch
                  %183 = sbr.rel target = $region60
                $region65: #{resblock_body_forward.8} parent=50 // loop_exit
                  _
              $region51: #{resblock_body_forward.8} parent=35 // pred_fallthru
                _
            $region36: #{resblock_body_forward.8} parent=31 // pred_fallthru
              _
            // Predicated region
            $region37: #{resblock_body_forward.8} parent=31 // pred_check
              _
            $region38: #{resblock_body_forward.8} parent=31 // pred_check_branch
              %144 = sbr.rel (0) target = $region40
            $region39: #{resblock_body_forward.8} parent=31 // pred_region
              %s146 = ssub.s32 16, 1
              loop: start=0, step=1, limit=1
              $region41: #{resblock_body_forward.8} parent=39 // loop_pre_header
                _
              $region42: #{resblock_body_forward.8} parent=39 // loop_header
                %s148 = sphi 0, %s152
                %p149 = scmp.ge.s32.totalorder %s148, 1
                %s153 = sphi %s138, %s138
                %s154 = sphi %s134, %s134
              $region43: #{resblock_body_forward.8} parent=39 // loop_header_branch
                %151 = sbr.rel (%p149) target = $region47
              $region44: #{resblock_body_forward.8} parent=39 // loop_body
                %v155 = vld [vmem:[%s153] sm:%s146]
                %156 = vst [vmem:[%s154] sm:%s146] %v155
                %v157 = vld [vmem:[%s153 + $0x8] sm:%s146]
                %158 = vst [vmem:[%s154 + $0x4] sm:%s146] %v157
                %v159 = vld [vmem:[%s153 + $0x10] sm:%s146]
                %160 = vst [vmem:[%s154 + $0x8] sm:%s146] %v159
                %v161 = vld [vmem:[%s153 + $0x18] sm:%s146]
                %162 = vst [vmem:[%s154 + $0xc] sm:%s146] %v161
                %v163 = vld [vmem:[%s153 + $0x20] sm:%s146]
                %164 = vst [vmem:[%s154 + $0x10] sm:%s146] %v163
                %v165 = vld [vmem:[%s153 + $0x28] sm:%s146]
                %166 = vst [vmem:[%s154 + $0x14] sm:%s146] %v165
                %v167 = vld [vmem:[%s153 + $0x30] sm:%s146]
                %168 = vst [vmem:[%s154 + $0x18] sm:%s146] %v167
                %v169 = vld [vmem:[%s153 + $0x38] sm:%s146]
                %170 = vst [vmem:[%s154 + $0x1c] sm:%s146] %v169
              $region45: #{resblock_body_forward.8} parent=39 // loop_footer
                %s152 = sadd.s32 1, %s148
              $region46: #{resblock_body_forward.8} parent=39 // loop_footer_branch
                %147 = sbr.rel target = $region42
              $region47: #{resblock_body_forward.8} parent=39 // loop_exit
                _
            $region40: #{resblock_body_forward.8} parent=31 // pred_fallthru
              _
          $region32: #{resblock_body_forward.8} parent=27 // pred_fallthru
            _
          %207 = vnop
        $region28: #{resblock_body_forward.8} parent=23 // pred_fallthru
          _
      $region24: #{resblock_body_forward.8} parent=5 // pred_fallthru
        _
      %p208 = scmp.le.s32.totalorder 1, %s9
      %p209 = scmp.lt.s32.totalorder %s9, 3
      %p210 = pnand %p208, %p209
      %p211 = pneg %p210
      // Predicated region
      $region66: #{resblock_body_forward.8} parent=5 // pred_check
        _
      $region67: #{resblock_body_forward.8} parent=5 // pred_check_branch
        %213 = sbr.rel (%p210) target = $region69
      $region68: #{resblock_body_forward.8} parent=5 // pred_region
        %s214 = ssub.s32 %s9, 1
        %s215 = sand.u32 %s22, 1
        %s216 = sand.u32 %s22, 1
        %s217 = smul.addr %s216, 32
        %s218 = scalar_lea.vmem [#allocation2], %s217
        // Predicated region
        $region70: #{resblock_body_forward.8} parent=68 // pred_check
          %p219 = pneg %p35
        $region71: #{resblock_body_forward.8} parent=68 // pred_check_branch
          %221 = sbr.rel (%p219) target = $region73
        $region72: #{resblock_body_forward.8} parent=68 // pred_region
          _
        $region73: #{resblock_body_forward.8} parent=68 // pred_fallthru
          _
        %s222 = sand.u32 %s22, 1
        %s223 = sand.u32 %s22, 1
        %s224 = smul.addr %s223, 32
        %s225 = scalar_lea.vmem [#allocation2], %s224
        %p226 = pneg %p35
        %p227 = pneg %p32
        %p228 = pneg %p56
        %p229 = pneg %p53
        %p230 = pneg %p77
        %p231 = pneg %p74
        %p232 = pneg %p103
        %p233 = pneg %p100
        %s234 = smul.u32 8, %s14
        %p235 = scmp.lt.s32.totalorder %s234, 15
        %s236 = scalar_select %p235, %s234, 15
        %s237 = smul.addr %s236, 4
        %s238 = scalar_lea.vmem %s3, %s237
        %s239 = smul.u32 8, %s14
        %s240 = smul.u32 8, %s14
        %p241 = scmp.lt.s32.totalorder %s240, 15
        %s242 = scalar_select %p241, %s240, 15
        %s243 = smul.addr %s242, 4
        %s244 = scalar_lea.vmem %s3, %s243
        %s245 = smul.u32 8, %s14
        %v246 = vld [vmem:[%s218] sm:$0xf]
        %v247 = vld [vmem:[%s218 + $0x4] sm:$0xf]
        %v248 = vld [vmem:[%s218 + $0x8] sm:$0xf]
        %v249 = vld [vmem:[%s218 + $0xc] sm:$0xf]
        %v250 = vld [vmem:[%s218 + $0x10] sm:$0xf]
        %v251 = vld [vmem:[%s218 + $0x14] sm:$0xf]
        %v252 = vld [vmem:[%s218 + $0x18] sm:$0xf]
        %v253 = vld [vmem:[%s218 + $0x1c] sm:$0xf]
        %v254 = vld [vmem:[%s1] sm:$0xf]
        %v255 = vld [vmem:[%s1 + $0x4] sm:$0xf]
        %v256 = vld [vmem:[%s1 + $0x8] sm:$0xf]
        %v257 = vld [vmem:[%s1 + $0xc] sm:$0xf]
        %v258 = vld [vmem:[%s1 + $0x10] sm:$0xf]
        %v259 = vld [vmem:[%s1 + $0x14] sm:$0xf]
        %v260 = vld [vmem:[%s1 + $0x18] sm:$0xf]
        %v261 = vld [vmem:[%s1 + $0x1c] sm:$0xf]
        %v262 = vld [vmem:[%s1 + $0x20] sm:$0xf]
        %v263 = vld [vmem:[%s1 + $0x24] sm:$0xf]
        %v264 = vld [vmem:[%s1 + $0x28] sm:$0xf]
        %v265 = vld [vmem:[%s1 + $0x2c] sm:$0xf]
        %v266 = vld [vmem:[%s1 + $0x30] sm:$0xf]
        %v267 = vld [vmem:[%s1 + $0x34] sm:$0xf]
        %v268 = vld [vmem:[%s1 + $0x38] sm:$0xf]
        %v269 = vld [vmem:[%s1 + $0x3c] sm:$0xf]
        %v270 = vld [vmem:[%s2] sm:$0x1]
        %v272 = vperm.slane %v270, 0
        %v282 = vunpack.c.l.b16 %v246
        %v283 = vunpack.c.l.b16 %v247
        %v284 = vunpack.c.l.b16 %v248
        %v285 = vunpack.c.l.b16 %v249
        %v286 = vunpack.c.l.b16 %v250
        %v287 = vunpack.c.l.b16 %v251
        %v288 = vunpack.c.l.b16 %v252
        %v289 = vunpack.c.l.b16 %v253
        %v290 = vpack.c.b16 %v283, %v282
        %v291 = vpack.c.b16 %v285, %v284
        %v292 = vpack.c.b16 %v287, %v286
        %v293 = vpack.c.b16 %v289, %v288
        %v314 = vunpack.c.l.b16 %v254
        %v315 = vunpack.c.l.b16 %v255
        %v316 = vunpack.c.l.b16 %v256
        %v317 = vunpack.c.l.b16 %v257
        %v318 = vunpack.c.l.b16 %v258
        %v319 = vunpack.c.l.b16 %v259
        %v320 = vunpack.c.l.b16 %v260
        %v321 = vunpack.c.l.b16 %v261
        %v322 = vunpack.c.l.b16 %v262
        %v323 = vunpack.c.l.b16 %v263
        %v324 = vunpack.c.l.b16 %v264
        %v325 = vunpack.c.l.b16 %v265
        %v326 = vunpack.c.l.b16 %v266
        %v327 = vunpack.c.l.b16 %v267
        %v328 = vunpack.c.l.b16 %v268
        %v329 = vunpack.c.l.b16 %v269
        %v330 = vpack.c.b16 %v315, %v314
        %v331 = vpack.c.b16 %v317, %v316
        %v332 = vpack.c.b16 %v319, %v318
        %v333 = vpack.c.b16 %v321, %v320
        %v334 = vpack.c.b16 %v323, %v322
        %v335 = vpack.c.b16 %v325, %v324
        %v336 = vpack.c.b16 %v327, %v326
        %v337 = vpack.c.b16 %v329, %v328
        %346 = vmatpush.bf16.msra.mxu0 %v337
        %347 = vmatpush.bf16.msra.mxu0 %v336
        %348 = vmatpush.bf16.msra.mxu0 %v335
        %349 = vmatpush.bf16.msra.mxu0 %v334
        %350 = vmatpush.bf16.msra.mxu0 %v333
        %351 = vmatpush.bf16.msra.mxu0 %v332
        %352 = vmatpush.bf16.msra.mxu0 %v331
        %353 = vmatpush.bf16.msra.mxu0 %v330
        %354 = vmatmul.bf16.gmra.mxu0 %v290
        %v355 = vpop.f32.mrf.mxu0
        %v356 = vadd.f32 %v272, %v355
        %v357 = vpop.f32.mrf.mxu0
        %v358 = vadd.f32 %v272, %v357
        %359 = vmatmul.bf16.gmra.mxu0 %v291
        %v360 = vpop.f32.mrf.mxu0
        %v361 = vadd.f32 %v272, %v360
        %v362 = vpop.f32.mrf.mxu0
        %v363 = vadd.f32 %v272, %v362
        %364 = vmatmul.bf16.gmra.mxu0 %v292
        %v365 = vpop.f32.mrf.mxu0
        %v366 = vadd.f32 %v272, %v365
        %v367 = vpop.f32.mrf.mxu0
        %v368 = vadd.f32 %v272, %v367
        %369 = vmatmul.bf16.gmra.mxu0 %v293
        %v370 = vpop.f32.mrf.mxu0
        %v371 = vadd.f32 %v272, %v370
        %v372 = vpop.f32.mrf.mxu0
        %v373 = vadd.f32 %v272, %v372
        %374 = vdwg.mxu0
        %v375 = vmin.f32 %v356, 20.0
        %v376 = vmin.f32 %v358, 20.0
        %v377 = vmin.f32 %v361, 20.0
        %v378 = vmin.f32 %v363, 20.0
        %v379 = vmin.f32 %v366, 20.0
        %v380 = vmin.f32 %v368, 20.0
        %v381 = vmin.f32 %v371, 20.0
        %v382 = vmin.f32 %v373, 20.0
        %v383 = vmul.f32 %v375, 1.442695
        %v384 = vpow.pop %v383
        %v385 = vmul.f32 %v376, 1.442695
        %v386 = vpow.pop %v385
        %v387 = vmul.f32 %v377, 1.442695
        %v388 = vpow.pop %v387
        %v389 = vmul.f32 %v378, 1.442695
        %v390 = vpow.pop %v389
        %v391 = vmul.f32 %v379, 1.442695
        %v392 = vpow.pop %v391
        %v393 = vmul.f32 %v380, 1.442695
        %v394 = vpow.pop %v393
        %v395 = vmul.f32 %v381, 1.442695
        %v396 = vpow.pop %v395
        %v397 = vmul.f32 %v382, 1.442695
        %v398 = vpow.pop %v397
        %v399 = vadd.f32 %v384, 2.0
        %v400 = vadd.f32 %v386, 2.0
        %v401 = vadd.f32 %v388, 2.0
        %v402 = vadd.f32 %v390, 2.0
        %v403 = vadd.f32 %v392, 2.0
        %v404 = vadd.f32 %v394, 2.0
        %v405 = vadd.f32 %v396, 2.0
        %v406 = vadd.f32 %v398, 2.0
        %v407 = vmul.f32 %v384, %v399
        %v408 = vmul.f32 %v386, %v400
        %v409 = vmul.f32 %v388, %v401
        %v410 = vmul.f32 %v390, %v402
        %v411 = vmul.f32 %v392, %v403
        %v412 = vmul.f32 %v394, %v404
        %v413 = vmul.f32 %v396, %v405
        %v414 = vmul.f32 %v398, %v406
        %v415 = vadd.f32 %v407, 2.0
        %v416 = vadd.f32 %v408, 2.0
        %v417 = vadd.f32 %v409, 2.0
        %v418 = vadd.f32 %v410, 2.0
        %v419 = vadd.f32 %v411, 2.0
        %v420 = vadd.f32 %v412, 2.0
        %v421 = vadd.f32 %v413, 2.0
        %v422 = vadd.f32 %v414, 2.0
        %v423 = vrcp.pop %v415
        %v424 = vmul.f32 %v415, %v423
        %v425 = vsub.f32 1.0, %v424
        %v426 = vmul.f32 %v423, %v425
        %v427 = vadd.f32 %v423, %v426
        %vm428 = vweird.f32 %v415
        %vm429 = vweird.f32 %v423
        %vm430 = vmor %vm428, %vm429
        %v431 = vsel %vm430, %v423, %v427
        %v432 = vand.u32 2147483647, %v415
        %vm433 = vcmp.eq.f32.partialorder %v432, 8.507059e+37
        %v434 = vand.u32 %v415, 2147483648
        %v435 = vor.u32 1.1754944e-38, %v434
        %v436 = vsel %vm433, %v435, %v431
        %v437 = vmul.f32 %v407, %v436
        %v438 = vrcp.pop %v416
        %v439 = vmul.f32 %v416, %v438
        %v440 = vsub.f32 1.0, %v439
        %v441 = vmul.f32 %v438, %v440
        %v442 = vadd.f32 %v438, %v441
        %vm443 = vweird.f32 %v416
        %vm444 = vweird.f32 %v438
        %vm445 = vmor %vm443, %vm444
        %v446 = vsel %vm445, %v438, %v442
        %v447 = vand.u32 2147483647, %v416
        %vm448 = vcmp.eq.f32.partialorder %v447, 8.507059e+37
        %v449 = vand.u32 %v416, 2147483648
        %v450 = vor.u32 1.1754944e-38, %v449
        %v451 = vsel %vm448, %v450, %v446
        %v452 = vmul.f32 %v408, %v451
        %v453 = vrcp.pop %v417
        %v454 = vmul.f32 %v417, %v453
        %v455 = vsub.f32 1.0, %v454
        %v456 = vmul.f32 %v453, %v455
        %v457 = vadd.f32 %v453, %v456
        %vm458 = vweird.f32 %v417
        %vm459 = vweird.f32 %v453
        %vm460 = vmor %vm458, %vm459
        %v461 = vsel %vm460, %v453, %v457
        %v462 = vand.u32 2147483647, %v417
        %vm463 = vcmp.eq.f32.partialorder %v462, 8.507059e+37
        %v464 = vand.u32 %v417, 2147483648
        %v465 = vor.u32 1.1754944e-38, %v464
        %v466 = vsel %vm463, %v465, %v461
        %v467 = vmul.f32 %v409, %v466
        %v468 = vrcp.pop %v418
        %v469 = vmul.f32 %v418, %v468
        %v470 = vsub.f32 1.0, %v469
        %v471 = vmul.f32 %v468, %v470
        %v472 = vadd.f32 %v468, %v471
        %vm473 = vweird.f32 %v418
        %vm474 = vweird.f32 %v468
        %vm475 = vmor %vm473, %vm474
        %v476 = vsel %vm475, %v468, %v472
        %v477 = vand.u32 2147483647, %v418
        %vm478 = vcmp.eq.f32.partialorder %v477, 8.507059e+37
        %v479 = vand.u32 %v418, 2147483648
        %v480 = vor.u32 1.1754944e-38, %v479
        %v481 = vsel %vm478, %v480, %v476
        %v482 = vmul.f32 %v410, %v481
        %v483 = vrcp.pop %v419
        %v484 = vmul.f32 %v419, %v483
        %v485 = vsub.f32 1.0, %v484
        %v486 = vmul.f32 %v483, %v485
        %v487 = vadd.f32 %v483, %v486
        %vm488 = vweird.f32 %v419
        %vm489 = vweird.f32 %v483
        %vm490 = vmor %vm488, %vm489
        %v491 = vsel %vm490, %v483, %v487
        %v492 = vand.u32 2147483647, %v419
        %vm493 = vcmp.eq.f32.partialorder %v492, 8.507059e+37
        %v494 = vand.u32 %v419, 2147483648
        %v495 = vor.u32 1.1754944e-38, %v494
        %v496 = vsel %vm493, %v495, %v491
        %v497 = vmul.f32 %v411, %v496
        %v498 = vrcp.pop %v420
        %v499 = vmul.f32 %v420, %v498
        %v500 = vsub.f32 1.0, %v499
        %v501 = vmul.f32 %v498, %v500
        %v502 = vadd.f32 %v498, %v501
        %vm503 = vweird.f32 %v420
        %vm504 = vweird.f32 %v498
        %vm505 = vmor %vm503, %vm504
        %v506 = vsel %vm505, %v498, %v502
        %v507 = vand.u32 2147483647, %v420
        %vm508 = vcmp.eq.f32.partialorder %v507, 8.507059e+37
        %v509 = vand.u32 %v420, 2147483648
        %v510 = vor.u32 1.1754944e-38, %v509
        %v511 = vsel %vm508, %v510, %v506
        %v512 = vmul.f32 %v412, %v511
        %v513 = vrcp.pop %v421
        %v514 = vmul.f32 %v421, %v513
        %v515 = vsub.f32 1.0, %v514
        %v516 = vmul.f32 %v513, %v515
        %v517 = vadd.f32 %v513, %v516
        %vm518 = vweird.f32 %v421
        %vm519 = vweird.f32 %v513
        %vm520 = vmor %vm518, %vm519
        %v521 = vsel %vm520, %v513, %v517
        %v522 = vand.u32 2147483647, %v421
        %vm523 = vcmp.eq.f32.partialorder %v522, 8.507059e+37
        %v524 = vand.u32 %v421, 2147483648
        %v525 = vor.u32 1.1754944e-38, %v524
        %v526 = vsel %vm523, %v525, %v521
        %v527 = vmul.f32 %v413, %v526
        %v528 = vrcp.pop %v422
        %v529 = vmul.f32 %v422, %v528
        %v530 = vsub.f32 1.0, %v529
        %v531 = vmul.f32 %v528, %v530
        %v532 = vadd.f32 %v528, %v531
        %vm533 = vweird.f32 %v422
        %vm534 = vweird.f32 %v528
        %vm535 = vmor %vm533, %vm534
        %v536 = vsel %vm535, %v528, %v532
        %v537 = vand.u32 2147483647, %v422
        %vm538 = vcmp.eq.f32.partialorder %v537, 8.507059e+37
        %v539 = vand.u32 %v422, 2147483648
        %v540 = vor.u32 1.1754944e-38, %v539
        %v541 = vsel %vm538, %v540, %v536
        %v542 = vmul.f32 %v414, %v541
        %v543 = vmul.f32 %v356, %v437
        %v544 = vmul.f32 %v358, %v452
        %v545 = vmul.f32 %v361, %v467
        %v546 = vmul.f32 %v363, %v482
        %v547 = vmul.f32 %v366, %v497
        %v548 = vmul.f32 %v368, %v512
        %v549 = vmul.f32 %v371, %v527
        %v550 = vmul.f32 %v373, %v542
        %v551 = vpack.c.bf16 %v543, %v543
        %v552 = vpack.c.bf16 %v544, %v544
        %v553 = vpack.c.bf16 %v545, %v545
        %v554 = vpack.c.bf16 %v546, %v546
        %v555 = vpack.c.bf16 %v547, %v547
        %v556 = vpack.c.bf16 %v548, %v548
        %v557 = vpack.c.bf16 %v549, %v549
        %v558 = vpack.c.bf16 %v550, %v550
        %559 = vst [vmem:[%s244] sm:$0xf] %v551
        %560 = vst [vmem:[%s244 + $0x4] sm:$0xf] %v552
        %561 = vst [vmem:[%s244 + $0x8] sm:$0xf] %v553
        %562 = vst [vmem:[%s244 + $0xc] sm:$0xf] %v554
        %563 = vst [vmem:[%s244 + $0x10] sm:$0xf] %v555
        %564 = vst [vmem:[%s244 + $0x14] sm:$0xf] %v556
        %565 = vst [vmem:[%s244 + $0x18] sm:$0xf] %v557
        %566 = vst [vmem:[%s244 + $0x1c] sm:$0xf] %v558
        %s567 = smul.u32 8, %s14
        %p568 = scmp.lt.s32.totalorder %s567, 15
        %s569 = scalar_select %p568, %s567, 15
        %s570 = smul.addr %s569, 4
        %s571 = scalar_lea.vmem %s3, %s570
        // Predicated region
        $region74: #{resblock_body_forward.8} parent=68 // pred_check
          %p572 = pneg %p100
        $region75: #{resblock_body_forward.8} parent=68 // pred_check_branch
          %574 = sbr.rel (%p572) target = $region77
        $region76: #{resblock_body_forward.8} parent=68 // pred_region
          %s575 = smul.u32 8, %s14
        $region77: #{resblock_body_forward.8} parent=68 // pred_fallthru
          _
      $region69: #{resblock_body_forward.8} parent=5 // pred_fallthru
        _
      %p576 = scmp.le.s32.totalorder 2, %s9
      // Predicated region
      $region78: #{resblock_body_forward.8} parent=5 // pred_check
        %p577 = pneg %p576
      $region79: #{resblock_body_forward.8} parent=5 // pred_check_branch
        %579 = sbr.rel (%p577) target = $region81
      $region80: #{resblock_body_forward.8} parent=5 // pred_region
        %s580 = ssub.s32 %s9, 2
        // Predicated region
        $region82: #{resblock_body_forward.8} parent=80 // pred_check
          %p581 = pneg %p106
        $region83: #{resblock_body_forward.8} parent=80 // pred_check_branch
          %583 = sbr.rel (%p581) target = $region85
        $region84: #{resblock_body_forward.8} parent=80 // pred_region
          %s584 = smul.u32 8, %s15
          %p585 = scmp.lt.s32.totalorder %s584, 15
          %s586 = scalar_select %p585, %s584, 15
          %s587 = smul.addr %s586, 4
          %s588 = scalar_lea.vmem %s3, %s587
        $region85: #{resblock_body_forward.8} parent=80 // pred_fallthru
          _
      $region81: #{resblock_body_forward.8} parent=5 // pred_fallthru
        _
    $region6: #{resblock_body_forward.8} parent=1 // loop_footer
      %s13 = sadd.s32 1, %s9
    $region7: #{resblock_body_forward.8} parent=1 // loop_footer_branch
      %8 = sbr.rel target = $region3
    $region8: #{resblock_body_forward.8} parent=1 // loop_exit
      _

// kernel: resblock_body_forward.7
$region0: #{resblock_body_forward.7}
  #allocation0 [shape = 'u32[]', space=smem, size = 0x4, offset = 0x4, fixed_abs, tag = 'smem constant byte address 0x4 - core index']
  #allocation1 [shape = 'u32[72,128]{1,0:T(1,128)}', space=vmem, size = 0x9000, scoped, tag = 'internal scratch']
  %s0 = inlined_call_operand.vmem [shape: bf16[128,128], index: 0, kind: input, shape index: {}]
  %s1 = inlined_call_operand.vmem [shape: bf16[1,128,256], index: 1, kind: input, shape index: {}]
  %s2 = inlined_call_operand.vmem [shape: f32[1,256], index: 2, kind: input, shape index: {}]
  %s3 = inlined_call_operand.vmem [shape: bf16[128,256], index: 3, kind: output, shape index: {}]
  %s4 = sld [smem:[#allocation0]]
  $region45: #{resblock_body_forward.7} parent=0
    _
  %s6 = ssub.s32 1, %s4
  %s7 = scalar_select 0, %s6, %s4
  loop: start=0, step=1, limit=4
  $region2: #{resblock_body_forward.7} parent=0 // loop_pre_header
    _
  $region3: #{resblock_body_forward.7} parent=0 // loop_header
    %s9 = sphi 0, %s13
    %p10 = scmp.ge.s32.totalorder %s9, 4
    %s19 = sphi 0, %s21
    %s22 = sphi 0, %s19
    %s23 = sphi 0, %s22
    %s39 = sphi 0, %s23
    %s43 = sphi 0, %s43
    %s45 = sphi 0, %s43
    %s46 = sphi 0, %s45
    %s60 = sphi 0, %s46
    %s64 = sphi 0, %s64
    %s66 = sphi 0, %s64
    %s67 = sphi 0, %s66
    %s81 = sphi 0, %s67
    %s87 = sphi 0, %s89
    %s90 = sphi 0, %s87
    %s91 = sphi 0, %s90
    %s107 = sphi 0, %s91
  $region4: #{resblock_body_forward.7} parent=0 // loop_header_branch
    %12 = sbr.rel (%p10) target = $region8
  $region5: #{resblock_body_forward.7} parent=0 // loop_body
    %s14 = ssub.s32 %s9, 1
    %s15 = ssub.s32 %s9, 2
    %s16 = sadd.s32 %s9, 1
    %s17 = ssub.s32 %s9, %s16
    %p18 = scmp.eq.s32.totalorder %s17, 0
    %s20 = sadd.s32 %s19, 1
    %s21 = scalar_select %p18, %s19, %s20
    %p24 = pneg %p18
    %p25 = scmp.eq.s32.totalorder %s9, 1
    %p26 = por %p24, %p25
    %p27 = scmp.ne.s32.totalorder %s19, %s22
    %p28 = scmp.eq.s32.totalorder %s9, 0
    %p29 = por %p27, %p28
    %p30 = scmp.ne.s32.totalorder %s19, %s22
    %p31 = scmp.eq.s32.totalorder %s14, 1
    %p32 = por %p30, %p31
    %p33 = scmp.ne.s32.totalorder %s22, %s23
    %p34 = scmp.eq.s32.totalorder %s14, 0
    %p35 = por %p33, %p34
    %p36 = scmp.ne.s32.totalorder %s22, %s23
    %p37 = scmp.eq.s32.totalorder %s15, 1
    %p38 = por %p36, %p37
    %p40 = scmp.ne.s32.totalorder %s23, %s39
    %p41 = scmp.eq.s32.totalorder %s15, 0
    %p42 = por %p40, %p41
    %s44 = sadd.s32 %s43, 1
    %p47 = scmp.eq.s32.totalorder %s9, 1
    %p48 = scmp.ne.s32.totalorder %s43, %s45
    %p49 = scmp.eq.s32.totalorder %s9, 0
    %p50 = por %p48, %p49
    %p51 = scmp.ne.s32.totalorder %s43, %s45
    %p52 = scmp.eq.s32.totalorder %s14, 1
    %p53 = por %p51, %p52
    %p54 = scmp.ne.s32.totalorder %s45, %s46
    %p55 = scmp.eq.s32.totalorder %s14, 0
    %p56 = por %p54, %p55
    %p57 = scmp.ne.s32.totalorder %s45, %s46
    %p58 = scmp.eq.s32.totalorder %s15, 1
    %p59 = por %p57, %p58
    %p61 = scmp.ne.s32.totalorder %s46, %s60
    %p62 = scmp.eq.s32.totalorder %s15, 0
    %p63 = por %p61, %p62
    %s65 = sadd.s32 %s64, 1
    %p68 = scmp.eq.s32.totalorder %s9, 1
    %p69 = scmp.ne.s32.totalorder %s64, %s66
    %p70 = scmp.eq.s32.totalorder %s9, 0
    %p71 = por %p69, %p70
    %p72 = scmp.ne.s32.totalorder %s64, %s66
    %p73 = scmp.eq.s32.totalorder %s14, 1
    %p74 = por %p72, %p73
    %p75 = scmp.ne.s32.totalorder %s66, %s67
    %p76 = scmp.eq.s32.totalorder %s14, 0
    %p77 = por %p75, %p76
    %p78 = scmp.ne.s32.totalorder %s66, %s67
    %p79 = scmp.eq.s32.totalorder %s15, 1
    %p80 = por %p78, %p79
    %p82 = scmp.ne.s32.totalorder %s67, %s81
    %p83 = scmp.eq.s32.totalorder %s15, 0
    %p84 = por %p82, %p83
    %s85 = ssub.s32 %s9, %s16
    %p86 = scmp.eq.s32.totalorder %s85, 0
    %s88 = sadd.s32 %s87, 1
    %s89 = scalar_select %p86, %s87, %s88
    %p92 = pneg %p86
    %p93 = scmp.eq.s32.totalorder %s9, 1
    %p94 = por %p92, %p93
    %p95 = scmp.ne.s32.totalorder %s87, %s90
    %p96 = scmp.eq.s32.totalorder %s9, 0
    %p97 = por %p95, %p96
    %p98 = scmp.ne.s32.totalorder %s87, %s90
    %p99 = scmp.eq.s32.totalorder %s14, 1
    %p100 = por %p98, %p99
    %p101 = scmp.ne.s32.totalorder %s90, %s91
    %p102 = scmp.eq.s32.totalorder %s14, 0
    %p103 = por %p101, %p102
    %p104 = scmp.ne.s32.totalorder %s90, %s91
    %p105 = scmp.eq.s32.totalorder %s15, 1
    %p106 = por %p104, %p105
    %p108 = scmp.ne.s32.totalorder %s91, %s107
    %p109 = scmp.eq.s32.totalorder %s15, 0
    %p110 = por %p108, %p109
    %p111 = scmp.le.s32.totalorder 1, %s9
    %p112 = scmp.lt.s32.totalorder %s9, 3
    %p113 = pnand %p111, %p112
    %p114 = pneg %p113
    // Predicated region
    $region9: #{resblock_body_forward.7} parent=5 // pred_check
      _
    $region10: #{resblock_body_forward.7} parent=5 // pred_check_branch
      %116 = sbr.rel (%p113) target = $region12
    $region11: #{resblock_body_forward.7} parent=5 // pred_region
      %s117 = ssub.s32 %s9, 1
      // Predicated region
      $region13: #{resblock_body_forward.7} parent=11 // pred_check
        %p118 = pneg %p56
      $region14: #{resblock_body_forward.7} parent=11 // pred_check_branch
        %120 = sbr.rel (%p118) target = $region16
      $region15: #{resblock_body_forward.7} parent=11 // pred_region
        _
      $region16: #{resblock_body_forward.7} parent=11 // pred_fallthru
        _
      // Predicated region
      $region17: #{resblock_body_forward.7} parent=11 // pred_check
        %p121 = pneg %p77
      $region18: #{resblock_body_forward.7} parent=11 // pred_check_branch
        %123 = sbr.rel (%p121) target = $region20
      $region19: #{resblock_body_forward.7} parent=11 // pred_region
        _
      $region20: #{resblock_body_forward.7} parent=11 // pred_fallthru
        _
    $region12: #{resblock_body_forward.7} parent=5 // pred_fallthru
      _
    %p124 = scmp.lt.s32.totalorder %s9, 2
    // Predicated region
    $region21: #{resblock_body_forward.7} parent=5 // pred_check
      %p125 = pneg %p124
    $region22: #{resblock_body_forward.7} parent=5 // pred_check_branch
      %127 = sbr.rel (%p125) target = $region24
    $region23: #{resblock_body_forward.7} parent=5 // pred_region
      // Predicated region
      $region25: #{resblock_body_forward.7} parent=23 // pred_check
        %p128 = pneg %p29
      $region26: #{resblock_body_forward.7} parent=23 // pred_check_branch
        %130 = sbr.rel (%p128) target = $region28
      $region27: #{resblock_body_forward.7} parent=23 // pred_region
        %s131 = smul.u32 8, %s9
        %p132 = scmp.lt.s32.totalorder %s131, 15
        %s133 = scalar_select %p132, %s131, 15
        %s134 = smul.addr %s133, 4
        %s135 = scalar_lea.vmem %s0, %s134
        %s136 = smul.u32 8, %s9
      $region28: #{resblock_body_forward.7} parent=23 // pred_fallthru
        _
    $region24: #{resblock_body_forward.7} parent=5 // pred_fallthru
      _
    %p137 = scmp.le.s32.totalorder 1, %s9
    %p138 = scmp.lt.s32.totalorder %s9, 3
    %p139 = pnand %p137, %p138
    %p140 = pneg %p139
    // Predicated region
    $region29: #{resblock_body_forward.7} parent=5 // pred_check
      _
    $region30: #{resblock_body_forward.7} parent=5 // pred_check_branch
      %142 = sbr.rel (%p139) target = $region32
    $region31: #{resblock_body_forward.7} parent=5 // pred_region
      %s143 = ssub.s32 %s9, 1
      %s144 = smul.u32 8, %s14
      %p145 = scmp.lt.s32.totalorder %s144, 15
      %s146 = scalar_select %p145, %s144, 15
      %s147 = smul.addr %s146, 4
      %s148 = scalar_lea.vmem %s0, %s147
      %p149 = pneg %p35
      %p150 = pneg %p32
      %p151 = pneg %p56
      %p152 = pneg %p53
      %p153 = pneg %p77
      %p154 = pneg %p74
      %p155 = pneg %p103
      %p156 = pneg %p100
      %s157 = smul.u32 8, %s14
      %p158 = scmp.lt.s32.totalorder %s157, 15
      %s159 = scalar_select %p158, %s157, 15
      %s160 = smul.addr %s159, 2
      %s161 = smul.addr %s160, 4
      %s162 = scalar_lea.vmem %s3, %s161
      %s163 = smul.u32 8, %s14
      %p164 = scmp.lt.s32.totalorder %s163, 15
      %s165 = scalar_select %p164, %s163, 15
      %s166 = smul.addr %s165, 4
      %s167 = scalar_lea.vmem %s0, %s166
      %s168 = smul.u32 8, %s14
      %s169 = smul.u32 8, %s14
      %p170 = scmp.lt.s32.totalorder %s169, 15
      %s171 = scalar_select %p170, %s169, 15
      %s172 = smul.addr %s171, 2
      %s173 = smul.addr %s172, 4
      %s174 = scalar_lea.vmem %s3, %s173
      %s175 = smul.u32 8, %s14
      %v176 = vld [vmem:[%s167] sm:$0xf]
      %v177 = vld [vmem:[%s167 + $0x4] sm:$0xf]
      %v178 = vld [vmem:[%s167 + $0x8] sm:$0xf]
      %v179 = vld [vmem:[%s167 + $0xc] sm:$0xf]
      %v180 = vld [vmem:[%s167 + $0x10] sm:$0xf]
      %v181 = vld [vmem:[%s167 + $0x14] sm:$0xf]
      %v182 = vld [vmem:[%s167 + $0x18] sm:$0xf]
      %v183 = vld [vmem:[%s167 + $0x1c] sm:$0xf]
      %v184 = vld [vmem:[%s1] sm:$0xff]
      %v185 = vld [vmem:[%s1 + $0x8] sm:$0xff]
      %v186 = vld [vmem:[%s1 + $0x10] sm:$0xff]
      %v187 = vld [vmem:[%s1 + $0x18] sm:$0xff]
      %v188 = vld [vmem:[%s1 + $0x20] sm:$0xff]
      %v189 = vld [vmem:[%s1 + $0x28] sm:$0xff]
      %v190 = vld [vmem:[%s1 + $0x30] sm:$0xff]
      %v191 = vld [vmem:[%s1 + $0x38] sm:$0xff]
      %v192 = vld [vmem:[%s1 + $0x40] sm:$0xff]
      %v193 = vld [vmem:[%s1 + $0x48] sm:$0xff]
      %v194 = vld [vmem:[%s1 + $0x50] sm:$0xff]
      %v195 = vld [vmem:[%s1 + $0x58] sm:$0xff]
      %v196 = vld [vmem:[%s1 + $0x60] sm:$0xff]
      %v197 = vld [vmem:[%s1 + $0x68] sm:$0xff]
      %v198 = vld [vmem:[%s1 + $0x70] sm:$0xff]
      %v199 = vld [vmem:[%s1 + $0x78] sm:$0xff]
      %v200 = vld [vmem:[%s2] sm:$0x3]
      %v202 = vperm.slane %v200, 0
      %v203 = vperm.slane %v200, 1
      %v214 = vunpack.c.l.b16 %v176
      %v215 = vunpack.c.l.b16 %v177
      %v216 = vunpack.c.l.b16 %v178
      %v217 = vunpack.c.l.b16 %v179
      %v218 = vunpack.c.l.b16 %v180
      %v219 = vunpack.c.l.b16 %v181
      %v220 = vunpack.c.l.b16 %v182
      %v221 = vunpack.c.l.b16 %v183
      %v222 = vpack.c.b16 %v215, %v214
      %v223 = vpack.c.b16 %v217, %v216
      %v224 = vpack.c.b16 %v219, %v218
      %v225 = vpack.c.b16 %v221, %v220
      %v246 = vunpack.c.l.b16 %v184
      %v247 = vunpack.c.h.b16 %v184
      %v248 = vunpack.c.l.b16 %v185
      %v249 = vunpack.c.h.b16 %v185
      %v250 = vunpack.c.l.b16 %v186
      %v251 = vunpack.c.h.b16 %v186
      %v252 = vunpack.c.l.b16 %v187
      %v253 = vunpack.c.h.b16 %v187
      %v254 = vunpack.c.l.b16 %v188
      %v255 = vunpack.c.h.b16 %v188
      %v256 = vunpack.c.l.b16 %v189
      %v257 = vunpack.c.h.b16 %v189
      %v258 = vunpack.c.l.b16 %v190
      %v259 = vunpack.c.h.b16 %v190
      %v260 = vunpack.c.l.b16 %v191
      %v261 = vunpack.c.h.b16 %v191
      %v262 = vunpack.c.l.b16 %v192
      %v263 = vunpack.c.h.b16 %v192
      %v264 = vunpack.c.l.b16 %v193
      %v265 = vunpack.c.h.b16 %v193
      %v266 = vunpack.c.l.b16 %v194
      %v267 = vunpack.c.h.b16 %v194
      %v268 = vunpack.c.l.b16 %v195
      %v269 = vunpack.c.h.b16 %v195
      %v270 = vunpack.c.l.b16 %v196
      %v271 = vunpack.c.h.b16 %v196
      %v272 = vunpack.c.l.b16 %v197
      %v273 = vunpack.c.h.b16 %v197
      %v274 = vunpack.c.l.b16 %v198
      %v275 = vunpack.c.h.b16 %v198
      %v276 = vunpack.c.l.b16 %v199
      %v277 = vunpack.c.h.b16 %v199
      %v278 = vpack.c.b16 %v248, %v246
      %v279 = vpack.c.b16 %v249, %v247
      %v280 = vpack.c.b16 %v252, %v250
      %v281 = vpack.c.b16 %v253, %v251
      %v282 = vpack.c.b16 %v256, %v254
      %v283 = vpack.c.b16 %v257, %v255
      %v284 = vpack.c.b16 %v260, %v258
      %v285 = vpack.c.b16 %v261, %v259
      %v286 = vpack.c.b16 %v264, %v262
      %v287 = vpack.c.b16 %v265, %v263
      %v288 = vpack.c.b16 %v268, %v266
      %v289 = vpack.c.b16 %v269, %v267
      %v290 = vpack.c.b16 %v272, %v270
      %v291 = vpack.c.b16 %v273, %v271
      %v292 = vpack.c.b16 %v276, %v274
      %v293 = vpack.c.b16 %v277, %v275
      %310 = vmatpush.bf16.msra.mxu0 %v292
      %311 = vmatpush.bf16.msra.mxu0 %v290
      %312 = vmatpush.bf16.msra.mxu0 %v288
      %313 = vmatpush.bf16.msra.mxu0 %v286
      %314 = vmatpush.bf16.msra.mxu0 %v284
      %315 = vmatpush.bf16.msra.mxu0 %v282
      %316 = vmatpush.bf16.msra.mxu0 %v280
      %317 = vmatpush.bf16.msra.mxu0 %v278
      %318 = vmatmul.bf16.gmra.mxu0 %v222
      %v319 = vpop.f32.mrf.mxu0
      %v320 = vadd.f32 %v202, %v319
      %v321 = vpop.f32.mrf.mxu0
      %v322 = vadd.f32 %v202, %v321
      %323 = vmatmul.bf16.gmra.mxu0 %v223
      %v324 = vpop.f32.mrf.mxu0
      %v325 = vadd.f32 %v202, %v324
      %v326 = vpop.f32.mrf.mxu0
      %v327 = vadd.f32 %v202, %v326
      %328 = vmatmul.bf16.gmra.mxu0 %v224
      %v329 = vpop.f32.mrf.mxu0
      %v330 = vadd.f32 %v202, %v329
      %v331 = vpop.f32.mrf.mxu0
      %v332 = vadd.f32 %v202, %v331
      %333 = vmatmul.bf16.gmra.mxu0 %v225
      %v334 = vpop.f32.mrf.mxu0
      %v335 = vadd.f32 %v202, %v334
      %v336 = vpop.f32.mrf.mxu0
      %v337 = vadd.f32 %v202, %v336
      %338 = vdwg.mxu0
      %339 = vmatpush.bf16.msra.mxu0 %v293
      %340 = vmatpush.bf16.msra.mxu0 %v291
      %341 = vmatpush.bf16.msra.mxu0 %v289
      %342 = vmatpush.bf16.msra.mxu0 %v287
      %343 = vmatpush.bf16.msra.mxu0 %v285
      %344 = vmatpush.bf16.msra.mxu0 %v283
      %345 = vmatpush.bf16.msra.mxu0 %v281
      %346 = vmatpush.bf16.msra.mxu0 %v279
      %347 = vmatmul.bf16.gmra.mxu0 %v222
      %v348 = vpop.f32.mrf.mxu0
      %v349 = vadd.f32 %v203, %v348
      %v350 = vpop.f32.mrf.mxu0
      %v351 = vadd.f32 %v203, %v350
      %352 = vmatmul.bf16.gmra.mxu0 %v223
      %v353 = vpop.f32.mrf.mxu0
      %v354 = vadd.f32 %v203, %v353
      %v355 = vpop.f32.mrf.mxu0
      %v356 = vadd.f32 %v203, %v355
      %357 = vmatmul.bf16.gmra.mxu0 %v224
      %v358 = vpop.f32.mrf.mxu0
      %v359 = vadd.f32 %v203, %v358
      %v360 = vpop.f32.mrf.mxu0
      %v361 = vadd.f32 %v203, %v360
      %362 = vmatmul.bf16.gmra.mxu0 %v225
      %v363 = vpop.f32.mrf.mxu0
      %v364 = vadd.f32 %v203, %v363
      %v365 = vpop.f32.mrf.mxu0
      %v366 = vadd.f32 %v203, %v365
      %367 = vdwg.mxu0
      %v368 = vmin.f32 %v320, 20.0
      %v369 = vmin.f32 %v349, 20.0
      %v370 = vmin.f32 %v322, 20.0
      %v371 = vmin.f32 %v351, 20.0
      %v372 = vmin.f32 %v325, 20.0
      %v373 = vmin.f32 %v354, 20.0
      %v374 = vmin.f32 %v327, 20.0
      %v375 = vmin.f32 %v356, 20.0
      %v376 = vmin.f32 %v330, 20.0
      %v377 = vmin.f32 %v359, 20.0
      %v378 = vmin.f32 %v332, 20.0
      %v379 = vmin.f32 %v361, 20.0
      %v380 = vmin.f32 %v335, 20.0
      %v381 = vmin.f32 %v364, 20.0
      %v382 = vmin.f32 %v337, 20.0
      %v383 = vmin.f32 %v366, 20.0
      %v384 = vmul.f32 %v368, 1.442695
      %v385 = vpow.pop %v384
      %v386 = vmul.f32 %v369, 1.442695
      %v387 = vpow.pop %v386
      %v388 = vmul.f32 %v370, 1.442695
      %v389 = vpow.pop %v388
      %v390 = vmul.f32 %v371, 1.442695
      %v391 = vpow.pop %v390
      %v392 = vmul.f32 %v372, 1.442695
      %v393 = vpow.pop %v392
      %v394 = vmul.f32 %v373, 1.442695
      %v395 = vpow.pop %v394
      %v396 = vmul.f32 %v374, 1.442695
      %v397 = vpow.pop %v396
      %v398 = vmul.f32 %v375, 1.442695
      %v399 = vpow.pop %v398
      %v400 = vmul.f32 %v376, 1.442695
      %v401 = vpow.pop %v400
      %v402 = vmul.f32 %v377, 1.442695
      %v403 = vpow.pop %v402
      %v404 = vmul.f32 %v378, 1.442695
      %v405 = vpow.pop %v404
      %v406 = vmul.f32 %v379, 1.442695
      %v407 = vpow.pop %v406
      %v408 = vmul.f32 %v380, 1.442695
      %v409 = vpow.pop %v408
      %v410 = vmul.f32 %v381, 1.442695
      %v411 = vpow.pop %v410
      %v412 = vmul.f32 %v382, 1.442695
      %v413 = vpow.pop %v412
      %v414 = vmul.f32 %v383, 1.442695
      %v415 = vpow.pop %v414
      %v416 = vadd.f32 %v385, 2.0
      %v417 = vadd.f32 %v387, 2.0
      %v418 = vadd.f32 %v389, 2.0
      %v419 = vadd.f32 %v391, 2.0
      %v420 = vadd.f32 %v393, 2.0
      %v421 = vadd.f32 %v395, 2.0
      %v422 = vadd.f32 %v397, 2.0
      %v423 = vadd.f32 %v399, 2.0
      %v424 = vadd.f32 %v401, 2.0
      %v425 = vadd.f32 %v403, 2.0
      %v426 = vadd.f32 %v405, 2.0
      %v427 = vadd.f32 %v407, 2.0
      %v428 = vadd.f32 %v409, 2.0
      %v429 = vadd.f32 %v411, 2.0
      %v430 = vadd.f32 %v413, 2.0
      %v431 = vadd.f32 %v415, 2.0
      %v432 = vmul.f32 %v385, %v416
      %v433 = vmul.f32 %v387, %v417
      %v434 = vmul.f32 %v389, %v418
      %v435 = vmul.f32 %v391, %v419
      %v436 = vmul.f32 %v393, %v420
      %v437 = vmul.f32 %v395, %v421
      %v438 = vmul.f32 %v397, %v422
      %v439 = vmul.f32 %v399, %v423
      %v440 = vmul.f32 %v401, %v424
      %v441 = vmul.f32 %v403, %v425
      %v442 = vmul.f32 %v405, %v426
      %v443 = vmul.f32 %v407, %v427
      %v444 = vmul.f32 %v409, %v428
      %v445 = vmul.f32 %v411, %v429
      %v446 = vmul.f32 %v413, %v430
      %v447 = vmul.f32 %v415, %v431
      %v448 = vadd.f32 %v432, 2.0
      %v449 = vadd.f32 %v433, 2.0
      %v450 = vadd.f32 %v434, 2.0
      %v451 = vadd.f32 %v435, 2.0
      %v452 = vadd.f32 %v436, 2.0
      %v453 = vadd.f32 %v437, 2.0
      %v454 = vadd.f32 %v438, 2.0
      %v455 = vadd.f32 %v439, 2.0
      %v456 = vadd.f32 %v440, 2.0
      %v457 = vadd.f32 %v441, 2.0
      %v458 = vadd.f32 %v442, 2.0
      %v459 = vadd.f32 %v443, 2.0
      %v460 = vadd.f32 %v444, 2.0
      %v461 = vadd.f32 %v445, 2.0
      %v462 = vadd.f32 %v446, 2.0
      %v463 = vadd.f32 %v447, 2.0
      %v464 = vrcp.pop %v448
      %v465 = vmul.f32 %v448, %v464
      %v466 = vsub.f32 1.0, %v465
      %v467 = vmul.f32 %v464, %v466
      %v468 = vadd.f32 %v464, %v467
      %vm469 = vweird.f32 %v448
      %vm470 = vweird.f32 %v464
      %vm471 = vmor %vm469, %vm470
      %v472 = vsel %vm471, %v464, %v468
      %v473 = vand.u32 2147483647, %v448
      %vm474 = vcmp.eq.f32.partialorder %v473, 8.507059e+37
      %v475 = vand.u32 %v448, 2147483648
      %v476 = vor.u32 1.1754944e-38, %v475
      %v477 = vsel %vm474, %v476, %v472
      %v478 = vmul.f32 %v432, %v477
      %v479 = vrcp.pop %v449
      %v480 = vmul.f32 %v449, %v479
      %v481 = vsub.f32 1.0, %v480
      %v482 = vmul.f32 %v479, %v481
      %v483 = vadd.f32 %v479, %v482
      %vm484 = vweird.f32 %v449
      %vm485 = vweird.f32 %v479
      %vm486 = vmor %vm484, %vm485
      %v487 = vsel %vm486, %v479, %v483
      %v488 = vand.u32 2147483647, %v449
      %vm489 = vcmp.eq.f32.partialorder %v488, 8.507059e+37
      %v490 = vand.u32 %v449, 2147483648
      %v491 = vor.u32 1.1754944e-38, %v490
      %v492 = vsel %vm489, %v491, %v487
      %v493 = vmul.f32 %v433, %v492
      %v494 = vrcp.pop %v450
      %v495 = vmul.f32 %v450, %v494
      %v496 = vsub.f32 1.0, %v495
      %v497 = vmul.f32 %v494, %v496
      %v498 = vadd.f32 %v494, %v497
      %vm499 = vweird.f32 %v450
      %vm500 = vweird.f32 %v494
      %vm501 = vmor %vm499, %vm500
      %v502 = vsel %vm501, %v494, %v498
      %v503 = vand.u32 2147483647, %v450
      %vm504 = vcmp.eq.f32.partialorder %v503, 8.507059e+37
      %v505 = vand.u32 %v450, 2147483648
      %v506 = vor.u32 1.1754944e-38, %v505
      %v507 = vsel %vm504, %v506, %v502
      %v508 = vmul.f32 %v434, %v507
      %v509 = vrcp.pop %v451
      %v510 = vmul.f32 %v451, %v509
      %v511 = vsub.f32 1.0, %v510
      %v512 = vmul.f32 %v509, %v511
      %v513 = vadd.f32 %v509, %v512
      %vm514 = vweird.f32 %v451
      %vm515 = vweird.f32 %v509
      %vm516 = vmor %vm514, %vm515
      %v517 = vsel %vm516, %v509, %v513
      %v518 = vand.u32 2147483647, %v451
      %vm519 = vcmp.eq.f32.partialorder %v518, 8.507059e+37
      %v520 = vand.u32 %v451, 2147483648
      %v521 = vor.u32 1.1754944e-38, %v520
      %v522 = vsel %vm519, %v521, %v517
      %v523 = vmul.f32 %v435, %v522
      %v524 = vrcp.pop %v452
      %v525 = vmul.f32 %v452, %v524
      %v526 = vsub.f32 1.0, %v525
      %v527 = vmul.f32 %v524, %v526
      %v528 = vadd.f32 %v524, %v527
      %vm529 = vweird.f32 %v452
      %vm530 = vweird.f32 %v524
      %vm531 = vmor %vm529, %vm530
      %v532 = vsel %vm531, %v524, %v528
      %v533 = vand.u32 2147483647, %v452
      %vm534 = vcmp.eq.f32.partialorder %v533, 8.507059e+37
      %v535 = vand.u32 %v452, 2147483648
      %v536 = vor.u32 1.1754944e-38, %v535
      %v537 = vsel %vm534, %v536, %v532
      %v538 = vmul.f32 %v436, %v537
      %v539 = vrcp.pop %v453
      %v540 = vmul.f32 %v453, %v539
      %v541 = vsub.f32 1.0, %v540
      %v542 = vmul.f32 %v539, %v541
      %v543 = vadd.f32 %v539, %v542
      %vm544 = vweird.f32 %v453
      %vm545 = vweird.f32 %v539
      %vm546 = vmor %vm544, %vm545
      %v547 = vsel %vm546, %v539, %v543
      %v548 = vand.u32 2147483647, %v453
      %vm549 = vcmp.eq.f32.partialorder %v548, 8.507059e+37
      %v550 = vand.u32 %v453, 2147483648
      %v551 = vor.u32 1.1754944e-38, %v550
      %v552 = vsel %vm549, %v551, %v547
      %v553 = vmul.f32 %v437, %v552
      %v554 = vrcp.pop %v454
      %v555 = vmul.f32 %v454, %v554
      %v556 = vsub.f32 1.0, %v555
      %v557 = vmul.f32 %v554, %v556
      %v558 = vadd.f32 %v554, %v557
      %vm559 = vweird.f32 %v454
      %vm560 = vweird.f32 %v554
      %vm561 = vmor %vm559, %vm560
      %v562 = vsel %vm561, %v554, %v558
      %v563 = vand.u32 2147483647, %v454
      %vm564 = vcmp.eq.f32.partialorder %v563, 8.507059e+37
      %v565 = vand.u32 %v454, 2147483648
      %v566 = vor.u32 1.1754944e-38, %v565
      %v567 = vsel %vm564, %v566, %v562
      %v568 = vmul.f32 %v438, %v567
      %v569 = vrcp.pop %v455
      %v570 = vmul.f32 %v455, %v569
      %v571 = vsub.f32 1.0, %v570
      %v572 = vmul.f32 %v569, %v571
      %v573 = vadd.f32 %v569, %v572
      %vm574 = vweird.f32 %v455
      %vm575 = vweird.f32 %v569
      %vm576 = vmor %vm574, %vm575
      %v577 = vsel %vm576, %v569, %v573
      %v578 = vand.u32 2147483647, %v455
      %vm579 = vcmp.eq.f32.partialorder %v578, 8.507059e+37
      %v580 = vand.u32 %v455, 2147483648
      %v581 = vor.u32 1.1754944e-38, %v580
      %v582 = vsel %vm579, %v581, %v577
      %v583 = vmul.f32 %v439, %v582
      %v584 = vrcp.pop %v456
      %v585 = vmul.f32 %v456, %v584
      %v586 = vsub.f32 1.0, %v585
      %v587 = vmul.f32 %v584, %v586
      %v588 = vadd.f32 %v584, %v587
      %vm589 = vweird.f32 %v456
      %vm590 = vweird.f32 %v584
      %vm591 = vmor %vm589, %vm590
      %v592 = vsel %vm591, %v584, %v588
      %v593 = vand.u32 2147483647, %v456
      %vm594 = vcmp.eq.f32.partialorder %v593, 8.507059e+37
      %v595 = vand.u32 %v456, 2147483648
      %v596 = vor.u32 1.1754944e-38, %v595
      %v597 = vsel %vm594, %v596, %v592
      %v598 = vmul.f32 %v440, %v597
      %v599 = vrcp.pop %v457
      %v600 = vmul.f32 %v457, %v599
      %v601 = vsub.f32 1.0, %v600
      %v602 = vmul.f32 %v599, %v601
      %v603 = vadd.f32 %v599, %v602
      %vm604 = vweird.f32 %v457
      %vm605 = vweird.f32 %v599
      %vm606 = vmor %vm604, %vm605
      %v607 = vsel %vm606, %v599, %v603
      %v608 = vand.u32 2147483647, %v457
      %vm609 = vcmp.eq.f32.partialorder %v608, 8.507059e+37
      %v610 = vand.u32 %v457, 2147483648
      %v611 = vor.u32 1.1754944e-38, %v610
      %v612 = vsel %vm609, %v611, %v607
      %v613 = vmul.f32 %v441, %v612
      %v614 = vrcp.pop %v458
      %v615 = vmul.f32 %v458, %v614
      %v616 = vsub.f32 1.0, %v615
      %v617 = vmul.f32 %v614, %v616
      %v618 = vadd.f32 %v614, %v617
      %vm619 = vweird.f32 %v458
      %vm620 = vweird.f32 %v614
      %vm621 = vmor %vm619, %vm620
      %v622 = vsel %vm621, %v614, %v618
      %v623 = vand.u32 2147483647, %v458
      %vm624 = vcmp.eq.f32.partialorder %v623, 8.507059e+37
      %v625 = vand.u32 %v458, 2147483648
      %v626 = vor.u32 1.1754944e-38, %v625
      %v627 = vsel %vm624, %v626, %v622
      %v628 = vmul.f32 %v442, %v627
      %v629 = vrcp.pop %v459
      %v630 = vmul.f32 %v459, %v629
      %v631 = vsub.f32 1.0, %v630
      %v632 = vmul.f32 %v629, %v631
      %v633 = vadd.f32 %v629, %v632
      %vm634 = vweird.f32 %v459
      %vm635 = vweird.f32 %v629
      %vm636 = vmor %vm634, %vm635
      %v637 = vsel %vm636, %v629, %v633
      %v638 = vand.u32 2147483647, %v459
      %vm639 = vcmp.eq.f32.partialorder %v638, 8.507059e+37
      %v640 = vand.u32 %v459, 2147483648
      %v641 = vor.u32 1.1754944e-38, %v640
      %v642 = vsel %vm639, %v641, %v637
      %v643 = vmul.f32 %v443, %v642
      %v644 = vrcp.pop %v460
      %v645 = vmul.f32 %v460, %v644
      %v646 = vsub.f32 1.0, %v645
      %v647 = vmul.f32 %v644, %v646
      %v648 = vadd.f32 %v644, %v647
      %vm649 = vweird.f32 %v460
      %vm650 = vweird.f32 %v644
      %vm651 = vmor %vm649, %vm650
      %v652 = vsel %vm651, %v644, %v648
      %v653 = vand.u32 2147483647, %v460
      %vm654 = vcmp.eq.f32.partialorder %v653, 8.507059e+37
      %v655 = vand.u32 %v460, 2147483648
      %v656 = vor.u32 1.1754944e-38, %v655
      %v657 = vsel %vm654, %v656, %v652
      %v658 = vmul.f32 %v444, %v657
      %v659 = vrcp.pop %v461
      %v660 = vmul.f32 %v461, %v659
      %v661 = vsub.f32 1.0, %v660
      %v662 = vmul.f32 %v659, %v661
      %v663 = vadd.f32 %v659, %v662
      %vm664 = vweird.f32 %v461
      %vm665 = vweird.f32 %v659
      %vm666 = vmor %vm664, %vm665
      %v667 = vsel %vm666, %v659, %v663
      %v668 = vand.u32 2147483647, %v461
      %vm669 = vcmp.eq.f32.partialorder %v668, 8.507059e+37
      %v670 = vand.u32 %v461, 2147483648
      %v671 = vor.u32 1.1754944e-38, %v670
      %v672 = vsel %vm669, %v671, %v667
      %v673 = vmul.f32 %v445, %v672
      %v674 = vrcp.pop %v462
      %v675 = vmul.f32 %v462, %v674
      %v676 = vsub.f32 1.0, %v675
      %v677 = vmul.f32 %v674, %v676
      %v678 = vadd.f32 %v674, %v677
      %vm679 = vweird.f32 %v462
      %vm680 = vweird.f32 %v674
      %vm681 = vmor %vm679, %vm680
      %v682 = vsel %vm681, %v674, %v678
      %v683 = vand.u32 2147483647, %v462
      %vm684 = vcmp.eq.f32.partialorder %v683, 8.507059e+37
      %v685 = vand.u32 %v462, 2147483648
      %v686 = vor.u32 1.1754944e-38, %v685
      %v687 = vsel %vm684, %v686, %v682
      %v688 = vmul.f32 %v446, %v687
      %v689 = vrcp.pop %v463
      %v690 = vmul.f32 %v463, %v689
      %v691 = vsub.f32 1.0, %v690
      %v692 = vmul.f32 %v689, %v691
      %v693 = vadd.f32 %v689, %v692
      %vm694 = vweird.f32 %v463
      %vm695 = vweird.f32 %v689
      %vm696 = vmor %vm694, %vm695
      %v697 = vsel %vm696, %v689, %v693
      %v698 = vand.u32 2147483647, %v463
      %vm699 = vcmp.eq.f32.partialorder %v698, 8.507059e+37
      %v700 = vand.u32 %v463, 2147483648
      %v701 = vor.u32 1.1754944e-38, %v700
      %v702 = vsel %vm699, %v701, %v697
      %v703 = vmul.f32 %v447, %v702
      %v704 = vmul.f32 %v320, %v478
      %v705 = vmul.f32 %v349, %v493
      %v706 = vmul.f32 %v322, %v508
      %v707 = vmul.f32 %v351, %v523
      %v708 = vmul.f32 %v325, %v538
      %v709 = vmul.f32 %v354, %v553
      %v710 = vmul.f32 %v327, %v568
      %v711 = vmul.f32 %v356, %v583
      %v712 = vmul.f32 %v330, %v598
      %v713 = vmul.f32 %v359, %v613
      %v714 = vmul.f32 %v332, %v628
      %v715 = vmul.f32 %v361, %v643
      %v716 = vmul.f32 %v335, %v658
      %v717 = vmul.f32 %v364, %v673
      %v718 = vmul.f32 %v337, %v688
      %v719 = vmul.f32 %v366, %v703
      %v720 = vpack.c.bf16 %v705, %v704
      %v721 = vpack.c.bf16 %v707, %v706
      %v722 = vpack.c.bf16 %v709, %v708
      %v723 = vpack.c.bf16 %v711, %v710
      %v724 = vpack.c.bf16 %v713, %v712
      %v725 = vpack.c.bf16 %v715, %v714
      %v726 = vpack.c.bf16 %v717, %v716
      %v727 = vpack.c.bf16 %v719, %v718
      %728 = vst [vmem:[%s174] sm:$0xff] %v720
      %729 = vst [vmem:[%s174 + $0x8] sm:$0xff] %v721
      %730 = vst [vmem:[%s174 + $0x10] sm:$0xff] %v722
      %731 = vst [vmem:[%s174 + $0x18] sm:$0xff] %v723
      %732 = vst [vmem:[%s174 + $0x20] sm:$0xff] %v724
      %733 = vst [vmem:[%s174 + $0x28] sm:$0xff] %v725
      %734 = vst [vmem:[%s174 + $0x30] sm:$0xff] %v726
      %735 = vst [vmem:[%s174 + $0x38] sm:$0xff] %v727
      %s736 = smul.u32 8, %s14
      %p737 = scmp.lt.s32.totalorder %s736, 15
      %s738 = scalar_select %p737, %s736, 15
      %s739 = smul.addr %s738, 2
      %s740 = smul.addr %s739, 4
      %s741 = scalar_lea.vmem %s3, %s740
      // Predicated region
      $region33: #{resblock_body_forward.7} parent=31 // pred_check
        %p742 = pneg %p100
      $region34: #{resblock_body_forward.7} parent=31 // pred_check_branch
        %744 = sbr.rel (%p742) target = $region36
      $region35: #{resblock_body_forward.7} parent=31 // pred_region
        %s745 = smul.u32 8, %s14
      $region36: #{resblock_body_forward.7} parent=31 // pred_fallthru
        _
    $region32: #{resblock_body_forward.7} parent=5 // pred_fallthru
      _
    %p746 = scmp.le.s32.totalorder 2, %s9
    // Predicated region
    $region37: #{resblock_body_forward.7} parent=5 // pred_check
      %p747 = pneg %p746
    $region38: #{resblock_body_forward.7} parent=5 // pred_check_branch
      %749 = sbr.rel (%p747) target = $region40
    $region39: #{resblock_body_forward.7} parent=5 // pred_region
      %s750 = ssub.s32 %s9, 2
      // Predicated region
      $region41: #{resblock_body_forward.7} parent=39 // pred_check
        %p751 = pneg %p106
      $region42: #{resblock_body_forward.7} parent=39 // pred_check_branch
        %753 = sbr.rel (%p751) target = $region44
      $region43: #{resblock_body_forward.7} parent=39 // pred_region
        %s754 = smul.u32 8, %s15
        %p755 = scmp.lt.s32.totalorder %s754, 15
        %s756 = scalar_select %p755, %s754, 15
        %s757 = smul.addr %s756, 2
        %s758 = smul.addr %s757, 4
        %s759 = scalar_lea.vmem %s3, %s758
      $region44: #{resblock_body_forward.7} parent=39 // pred_fallthru
        _
    $region40: #{resblock_body_forward.7} parent=5 // pred_fallthru
      _
  $region6: #{resblock_body_forward.7} parent=0 // loop_footer
    %s13 = sadd.s32 1, %s9
  $region7: #{resblock_body_forward.7} parent=0 // loop_footer_branch
    %8 = sbr.rel target = $region3
  $region8: #{resblock_body_forward.7} parent=0 // loop_exit
    _

// kernel: resblock_body_forward.6
$region0: #{resblock_body_forward.6}
  #allocation0 [shape = 'u32[]', space=smem, size = 0x4, offset = 0x4, fixed_abs, tag = 'smem constant byte address 0x4 - core index']
  #allocation1 [shape = 'u32[72,128]{1,0:T(1,128)}', space=vmem, size = 0x9000, scoped, tag = 'internal scratch']
  %s0 = inlined_call_operand.vmem [shape: bf16[192,128], index: 0, kind: input, shape index: {}]
  %s1 = inlined_call_operand.vmem [shape: bf16[4,128,128], index: 1, kind: input, shape index: {}]
  %s2 = inlined_call_operand.vmem [shape: f32[1,128], index: 2, kind: input, shape index: {}]
  %s3 = inlined_call_operand.vmem [shape: bf16[160,128], index: 3, kind: output, shape index: {}]
  %s4 = sld [smem:[#allocation0]]
  $region45: #{resblock_body_forward.6} parent=0
    _
  %s6 = ssub.s32 1, %s4
  %s7 = scalar_select 0, %s6, %s4
  loop: start=0, step=1, limit=4
  $region2: #{resblock_body_forward.6} parent=0 // loop_pre_header
    _
  $region3: #{resblock_body_forward.6} parent=0 // loop_header
    %s9 = sphi 0, %s13
    %p10 = scmp.ge.s32.totalorder %s9, 4
    %s19 = sphi 0, %s21
    %s22 = sphi 0, %s19
    %s23 = sphi 0, %s22
    %s39 = sphi 0, %s23
    %s43 = sphi 0, %s43
    %s45 = sphi 0, %s43
    %s46 = sphi 0, %s45
    %s60 = sphi 0, %s46
    %s64 = sphi 0, %s64
    %s66 = sphi 0, %s64
    %s67 = sphi 0, %s66
    %s81 = sphi 0, %s67
    %s87 = sphi 0, %s89
    %s90 = sphi 0, %s87
    %s91 = sphi 0, %s90
    %s107 = sphi 0, %s91
  $region4: #{resblock_body_forward.6} parent=0 // loop_header_branch
    %12 = sbr.rel (%p10) target = $region8
  $region5: #{resblock_body_forward.6} parent=0 // loop_body
    %s14 = ssub.s32 %s9, 1
    %s15 = ssub.s32 %s9, 2
    %s16 = sadd.s32 %s9, 1
    %s17 = ssub.s32 %s9, %s16
    %p18 = scmp.eq.s32.totalorder %s17, 0
    %s20 = sadd.s32 %s19, 1
    %s21 = scalar_select %p18, %s19, %s20
    %p24 = pneg %p18
    %p25 = scmp.eq.s32.totalorder %s9, 1
    %p26 = por %p24, %p25
    %p27 = scmp.ne.s32.totalorder %s19, %s22
    %p28 = scmp.eq.s32.totalorder %s9, 0
    %p29 = por %p27, %p28
    %p30 = scmp.ne.s32.totalorder %s19, %s22
    %p31 = scmp.eq.s32.totalorder %s14, 1
    %p32 = por %p30, %p31
    %p33 = scmp.ne.s32.totalorder %s22, %s23
    %p34 = scmp.eq.s32.totalorder %s14, 0
    %p35 = por %p33, %p34
    %p36 = scmp.ne.s32.totalorder %s22, %s23
    %p37 = scmp.eq.s32.totalorder %s15, 1
    %p38 = por %p36, %p37
    %p40 = scmp.ne.s32.totalorder %s23, %s39
    %p41 = scmp.eq.s32.totalorder %s15, 0
    %p42 = por %p40, %p41
    %s44 = sadd.s32 %s43, 1
    %p47 = scmp.eq.s32.totalorder %s9, 1
    %p48 = scmp.ne.s32.totalorder %s43, %s45
    %p49 = scmp.eq.s32.totalorder %s9, 0
    %p50 = por %p48, %p49
    %p51 = scmp.ne.s32.totalorder %s43, %s45
    %p52 = scmp.eq.s32.totalorder %s14, 1
    %p53 = por %p51, %p52
    %p54 = scmp.ne.s32.totalorder %s45, %s46
    %p55 = scmp.eq.s32.totalorder %s14, 0
    %p56 = por %p54, %p55
    %p57 = scmp.ne.s32.totalorder %s45, %s46
    %p58 = scmp.eq.s32.totalorder %s15, 1
    %p59 = por %p57, %p58
    %p61 = scmp.ne.s32.totalorder %s46, %s60
    %p62 = scmp.eq.s32.totalorder %s15, 0
    %p63 = por %p61, %p62
    %s65 = sadd.s32 %s64, 1
    %p68 = scmp.eq.s32.totalorder %s9, 1
    %p69 = scmp.ne.s32.totalorder %s64, %s66
    %p70 = scmp.eq.s32.totalorder %s9, 0
    %p71 = por %p69, %p70
    %p72 = scmp.ne.s32.totalorder %s64, %s66
    %p73 = scmp.eq.s32.totalorder %s14, 1
    %p74 = por %p72, %p73
    %p75 = scmp.ne.s32.totalorder %s66, %s67
    %p76 = scmp.eq.s32.totalorder %s14, 0
    %p77 = por %p75, %p76
    %p78 = scmp.ne.s32.totalorder %s66, %s67
    %p79 = scmp.eq.s32.totalorder %s15, 1
    %p80 = por %p78, %p79
    %p82 = scmp.ne.s32.totalorder %s67, %s81
    %p83 = scmp.eq.s32.totalorder %s15, 0
    %p84 = por %p82, %p83
    %s85 = ssub.s32 %s9, %s16
    %p86 = scmp.eq.s32.totalorder %s85, 0
    %s88 = sadd.s32 %s87, 1
    %s89 = scalar_select %p86, %s87, %s88
    %p92 = pneg %p86
    %p93 = scmp.eq.s32.totalorder %s9, 1
    %p94 = por %p92, %p93
    %p95 = scmp.ne.s32.totalorder %s87, %s90
    %p96 = scmp.eq.s32.totalorder %s9, 0
    %p97 = por %p95, %p96
    %p98 = scmp.ne.s32.totalorder %s87, %s90
    %p99 = scmp.eq.s32.totalorder %s14, 1
    %p100 = por %p98, %p99
    %p101 = scmp.ne.s32.totalorder %s90, %s91
    %p102 = scmp.eq.s32.totalorder %s14, 0
    %p103 = por %p101, %p102
    %p104 = scmp.ne.s32.totalorder %s90, %s91
    %p105 = scmp.eq.s32.totalorder %s15, 1
    %p106 = por %p104, %p105
    %p108 = scmp.ne.s32.totalorder %s91, %s107
    %p109 = scmp.eq.s32.totalorder %s15, 0
    %p110 = por %p108, %p109
    %p111 = scmp.le.s32.totalorder 1, %s9
    %p112 = scmp.lt.s32.totalorder %s9, 3
    %p113 = pnand %p111, %p112
    %p114 = pneg %p113
    // Predicated region
    $region9: #{resblock_body_forward.6} parent=5 // pred_check
      _
    $region10: #{resblock_body_forward.6} parent=5 // pred_check_branch
      %116 = sbr.rel (%p113) target = $region12
    $region11: #{resblock_body_forward.6} parent=5 // pred_region
      %s117 = ssub.s32 %s9, 1
      // Predicated region
      $region13: #{resblock_body_forward.6} parent=11 // pred_check
        %p118 = pneg %p56
      $region14: #{resblock_body_forward.6} parent=11 // pred_check_branch
        %120 = sbr.rel (%p118) target = $region16
      $region15: #{resblock_body_forward.6} parent=11 // pred_region
        _
      $region16: #{resblock_body_forward.6} parent=11 // pred_fallthru
        _
      // Predicated region
      $region17: #{resblock_body_forward.6} parent=11 // pred_check
        %p121 = pneg %p77
      $region18: #{resblock_body_forward.6} parent=11 // pred_check_branch
        %123 = sbr.rel (%p121) target = $region20
      $region19: #{resblock_body_forward.6} parent=11 // pred_region
        _
      $region20: #{resblock_body_forward.6} parent=11 // pred_fallthru
        _
    $region12: #{resblock_body_forward.6} parent=5 // pred_fallthru
      _
    %p124 = scmp.lt.s32.totalorder %s9, 2
    // Predicated region
    $region21: #{resblock_body_forward.6} parent=5 // pred_check
      %p125 = pneg %p124
    $region22: #{resblock_body_forward.6} parent=5 // pred_check_branch
      %127 = sbr.rel (%p125) target = $region24
    $region23: #{resblock_body_forward.6} parent=5 // pred_region
      // Predicated region
      $region25: #{resblock_body_forward.6} parent=23 // pred_check
        %p128 = pneg %p29
      $region26: #{resblock_body_forward.6} parent=23 // pred_check_branch
        %130 = sbr.rel (%p128) target = $region28
      $region27: #{resblock_body_forward.6} parent=23 // pred_region
        %s131 = smul.u32 12, %s9
        %p132 = scmp.lt.s32.totalorder %s131, 23
        %s133 = scalar_select %p132, %s131, 23
        %s134 = smul.addr %s133, 4
        %s135 = scalar_lea.vmem %s0, %s134
        %s136 = smul.u32 12, %s9
      $region28: #{resblock_body_forward.6} parent=23 // pred_fallthru
        _
    $region24: #{resblock_body_forward.6} parent=5 // pred_fallthru
      _
    %p137 = scmp.le.s32.totalorder 1, %s9
    %p138 = scmp.lt.s32.totalorder %s9, 3
    %p139 = pnand %p137, %p138
    %p140 = pneg %p139
    // Predicated region
    $region29: #{resblock_body_forward.6} parent=5 // pred_check
      _
    $region30: #{resblock_body_forward.6} parent=5 // pred_check_branch
      %142 = sbr.rel (%p139) target = $region32
    $region31: #{resblock_body_forward.6} parent=5 // pred_region
      %s143 = ssub.s32 %s9, 1
      %s144 = smul.u32 12, %s14
      %p145 = scmp.lt.s32.totalorder %s144, 23
      %s146 = scalar_select %p145, %s144, 23
      %s147 = smul.addr %s146, 4
      %s148 = scalar_lea.vmem %s0, %s147
      %p149 = pneg %p35
      %p150 = pneg %p32
      %p151 = pneg %p56
      %p152 = pneg %p53
      %p153 = pneg %p77
      %p154 = pneg %p74
      %p155 = pneg %p103
      %p156 = pneg %p100
      %s157 = smul.u32 10, %s14
      %p158 = scmp.lt.s32.totalorder %s157, 19
      %s159 = scalar_select %p158, %s157, 19
      %s160 = smul.addr %s159, 4
      %s161 = scalar_lea.vmem %s3, %s160
      %s162 = smul.u32 12, %s14
      %p163 = scmp.lt.s32.totalorder %s162, 23
      %s164 = scalar_select %p163, %s162, 23
      %s165 = smul.addr %s164, 4
      %s166 = scalar_lea.vmem %s0, %s165
      %s167 = smul.u32 12, %s14
      %s168 = smul.u32 10, %s14
      %p169 = scmp.lt.s32.totalorder %s168, 19
      %s170 = scalar_select %p169, %s168, 19
      %s171 = smul.addr %s170, 4
      %s172 = scalar_lea.vmem %s3, %s171
      %s173 = smul.u32 10, %s14
      %v174 = vld [vmem:[%s166] sm:$0xf]
      %v175 = vld [vmem:[%s166 + $0x4] sm:$0xf]
      %v176 = vld [vmem:[%s166 + $0x8] sm:$0xf]
      %v177 = vld [vmem:[%s166 + $0xc] sm:$0xf]
      %v178 = vld [vmem:[%s166 + $0x10] sm:$0xf]
      %v179 = vld [vmem:[%s166 + $0x14] sm:$0xf]
      %v180 = vld [vmem:[%s166 + $0x18] sm:$0xf]
      %v181 = vld [vmem:[%s166 + $0x1c] sm:$0xf]
      %v182 = vld [vmem:[%s166 + $0x20] sm:$0xf]
      %v183 = vld [vmem:[%s166 + $0x24] sm:$0xf]
      %v184 = vld [vmem:[%s1] sm:$0xf]
      %v185 = vld [vmem:[%s1 + $0x4] sm:$0xf]
      %v186 = vld [vmem:[%s1 + $0x8] sm:$0xf]
      %v187 = vld [vmem:[%s1 + $0xc] sm:$0xf]
      %v188 = vld [vmem:[%s1 + $0x10] sm:$0xf]
      %v189 = vld [vmem:[%s1 + $0x14] sm:$0xf]
      %v190 = vld [vmem:[%s1 + $0x18] sm:$0xf]
      %v191 = vld [vmem:[%s1 + $0x1c] sm:$0xf]
      %v192 = vld [vmem:[%s1 + $0x20] sm:$0xf]
      %v193 = vld [vmem:[%s1 + $0x24] sm:$0xf]
      %v194 = vld [vmem:[%s1 + $0x28] sm:$0xf]
      %v195 = vld [vmem:[%s1 + $0x2c] sm:$0xf]
      %v196 = vld [vmem:[%s1 + $0x30] sm:$0xf]
      %v197 = vld [vmem:[%s1 + $0x34] sm:$0xf]
      %v198 = vld [vmem:[%s1 + $0x38] sm:$0xf]
      %v199 = vld [vmem:[%s1 + $0x3c] sm:$0xf]
      %v200 = vld [vmem:[%s166 + $0x28] sm:$0x1]
      %s201 = scalar_lea.vmem %s1, 64
      %v202 = vld [vmem:[%s201] sm:$0xf]
      %v203 = vld [vmem:[%s201 + $0x4] sm:$0xf]
      %v204 = vld [vmem:[%s201 + $0x8] sm:$0xf]
      %v205 = vld [vmem:[%s201 + $0xc] sm:$0xf]
      %v206 = vld [vmem:[%s201 + $0x10] sm:$0xf]
      %v207 = vld [vmem:[%s201 + $0x14] sm:$0xf]
      %v208 = vld [vmem:[%s201 + $0x18] sm:$0xf]
      %v209 = vld [vmem:[%s201 + $0x1c] sm:$0xf]
      %v210 = vld [vmem:[%s201 + $0x20] sm:$0xf]
      %v211 = vld [vmem:[%s201 + $0x24] sm:$0xf]
      %v212 = vld [vmem:[%s201 + $0x28] sm:$0xf]
      %v213 = vld [vmem:[%s201 + $0x2c] sm:$0xf]
      %v214 = vld [vmem:[%s201 + $0x30] sm:$0xf]
      %v215 = vld [vmem:[%s201 + $0x34] sm:$0xf]
      %v216 = vld [vmem:[%s201 + $0x38] sm:$0xf]
      %v217 = vld [vmem:[%s201 + $0x3c] sm:$0xf]
      %v229 = vunpack.c.l.b16 %v174
      %v230 = vunpack.c.l.b16 %v175
      %v231 = vunpack.c.l.b16 %v176
      %v232 = vunpack.c.l.b16 %v177
      %v233 = vunpack.c.l.b16 %v178
      %v234 = vunpack.c.l.b16 %v179
      %v235 = vunpack.c.l.b16 %v180
      %v236 = vunpack.c.l.b16 %v181
      %v237 = vunpack.c.l.b16 %v182
      %v238 = vunpack.c.l.b16 %v183
      %v239 = vunpack.c.l.b16 %v200
      %v240 = vpack.c.b16 %v230, %v229
      %v241 = vpack.c.b16 %v232, %v231
      %v242 = vpack.c.b16 %v234, %v233
      %v243 = vpack.c.b16 %v236, %v235
      %v244 = vpack.c.b16 %v238, %v237
      %v245 = vpack.c.b16 %v239, %v239
      %vm246 = vsmask.f32 7424
      %v248 = vshrl.u32 %v240, 16
      %v250 = vshll.u32 %v240, 16
      %v252 = vrot.slane %v250, 1
      %v253 = vor.u32 %v248, %v252
      %v255 = vshll.u32 %v241, 16
      %v257 = vrot.slane %v255, 1
      %v258 = vsel %vm246, %v253, %v257
      %v259 = vshrl.u32 %v241, 16
      %v261 = vor.u32 %v259, %v257
      %v263 = vshll.u32 %v242, 16
      %v265 = vrot.slane %v263, 1
      %v266 = vsel %vm246, %v261, %v265
      %v267 = vshrl.u32 %v242, 16
      %v269 = vor.u32 %v267, %v265
      %v271 = vshll.u32 %v243, 16
      %v273 = vrot.slane %v271, 1
      %v274 = vsel %vm246, %v269, %v273
      %v275 = vshrl.u32 %v243, 16
      %v277 = vor.u32 %v275, %v273
      %v279 = vshll.u32 %v244, 16
      %v281 = vrot.slane %v279, 1
      %v282 = vsel %vm246, %v277, %v281
      %v283 = vshrl.u32 %v244, 16
      %v285 = vor.u32 %v283, %v281
      %v287 = vshll.u32 %v245, 16
      %v289 = vrot.slane %v287, 1
      %v290 = vsel %vm246, %v285, %v289
      %v312 = vunpack.c.l.b16 %v202
      %v313 = vunpack.c.l.b16 %v203
      %v314 = vunpack.c.l.b16 %v204
      %v315 = vunpack.c.l.b16 %v205
      %v316 = vunpack.c.l.b16 %v206
      %v317 = vunpack.c.l.b16 %v207
      %v318 = vunpack.c.l.b16 %v208
      %v319 = vunpack.c.l.b16 %v209
      %v320 = vunpack.c.l.b16 %v210
      %v321 = vunpack.c.l.b16 %v211
      %v322 = vunpack.c.l.b16 %v212
      %v323 = vunpack.c.l.b16 %v213
      %v324 = vunpack.c.l.b16 %v214
      %v325 = vunpack.c.l.b16 %v215
      %v326 = vunpack.c.l.b16 %v216
      %v327 = vunpack.c.l.b16 %v217
      %v328 = vpack.c.b16 %v313, %v312
      %v329 = vpack.c.b16 %v315, %v314
      %v330 = vpack.c.b16 %v317, %v316
      %v331 = vpack.c.b16 %v319, %v318
      %v332 = vpack.c.b16 %v321, %v320
      %v333 = vpack.c.b16 %v323, %v322
      %v334 = vpack.c.b16 %v325, %v324
      %v335 = vpack.c.b16 %v327, %v326
      %344 = vmatpush.bf16.msra.mxu0 %v335
      %345 = vmatpush.bf16.msra.mxu0 %v334
      %346 = vmatpush.bf16.msra.mxu0 %v333
      %347 = vmatpush.bf16.msra.mxu0 %v332
      %348 = vmatpush.bf16.msra.mxu0 %v331
      %349 = vmatpush.bf16.msra.mxu0 %v330
      %350 = vmatpush.bf16.msra.mxu0 %v329
      %351 = vmatpush.bf16.msra.mxu0 %v328
      %352 = vmatmul.bf16.gmra.mxu0 %v258
      %v353 = vpop.f32.mrf.mxu0
      %v354 = vadd.f32 0.0, %v353
      %v355 = vpop.f32.mrf.mxu0
      %v356 = vadd.f32 0.0, %v355
      %357 = vmatmul.bf16.gmra.mxu0 %v266
      %v358 = vpop.f32.mrf.mxu0
      %v359 = vadd.f32 0.0, %v358
      %v360 = vpop.f32.mrf.mxu0
      %v361 = vadd.f32 0.0, %v360
      %362 = vmatmul.bf16.gmra.mxu0 %v274
      %v363 = vpop.f32.mrf.mxu0
      %v364 = vadd.f32 0.0, %v363
      %v365 = vpop.f32.mrf.mxu0
      %v366 = vadd.f32 0.0, %v365
      %367 = vmatmul.bf16.gmra.mxu0 %v282
      %v368 = vpop.f32.mrf.mxu0
      %v369 = vadd.f32 0.0, %v368
      %v370 = vpop.f32.mrf.mxu0
      %v371 = vadd.f32 0.0, %v370
      %372 = vmatmul.bf16.gmra.mxu0 %v290
      %v373 = vpop.f32.mrf.mxu0
      %v374 = vadd.f32 0.0, %v373
      %v375 = vpop.f32.mrf.mxu0
      %v376 = vadd.f32 0.0, %v375
      %377 = vdwg.mxu0
      %v399 = vunpack.c.l.b16 %v184
      %v400 = vunpack.c.l.b16 %v185
      %v401 = vunpack.c.l.b16 %v186
      %v402 = vunpack.c.l.b16 %v187
      %v403 = vunpack.c.l.b16 %v188
      %v404 = vunpack.c.l.b16 %v189
      %v405 = vunpack.c.l.b16 %v190
      %v406 = vunpack.c.l.b16 %v191
      %v407 = vunpack.c.l.b16 %v192
      %v408 = vunpack.c.l.b16 %v193
      %v409 = vunpack.c.l.b16 %v194
      %v410 = vunpack.c.l.b16 %v195
      %v411 = vunpack.c.l.b16 %v196
      %v412 = vunpack.c.l.b16 %v197
      %v413 = vunpack.c.l.b16 %v198
      %v414 = vunpack.c.l.b16 %v199
      %v415 = vpack.c.b16 %v400, %v399
      %v416 = vpack.c.b16 %v402, %v401
      %v417 = vpack.c.b16 %v404, %v403
      %v418 = vpack.c.b16 %v406, %v405
      %v419 = vpack.c.b16 %v408, %v407
      %v420 = vpack.c.b16 %v410, %v409
      %v421 = vpack.c.b16 %v412, %v411
      %v422 = vpack.c.b16 %v414, %v413
      %431 = vmatpush.bf16.msra.mxu0 %v422
      %432 = vmatpush.bf16.msra.mxu0 %v421
      %433 = vmatpush.bf16.msra.mxu0 %v420
      %434 = vmatpush.bf16.msra.mxu0 %v419
      %435 = vmatpush.bf16.msra.mxu0 %v418
      %436 = vmatpush.bf16.msra.mxu0 %v417
      %437 = vmatpush.bf16.msra.mxu0 %v416
      %438 = vmatpush.bf16.msra.mxu0 %v415
      %439 = vmatmul.bf16.gmra.mxu0 %v240
      %v440 = vpop.f32.mrf.mxu0
      %v441 = vadd.f32 %v354, %v440
      %v442 = vpop.f32.mrf.mxu0
      %v443 = vadd.f32 %v356, %v442
      %444 = vmatmul.bf16.gmra.mxu0 %v241
      %v445 = vpop.f32.mrf.mxu0
      %v446 = vadd.f32 %v359, %v445
      %v447 = vpop.f32.mrf.mxu0
      %v448 = vadd.f32 %v361, %v447
      %449 = vmatmul.bf16.gmra.mxu0 %v242
      %v450 = vpop.f32.mrf.mxu0
      %v451 = vadd.f32 %v364, %v450
      %v452 = vpop.f32.mrf.mxu0
      %v453 = vadd.f32 %v366, %v452
      %454 = vmatmul.bf16.gmra.mxu0 %v243
      %v455 = vpop.f32.mrf.mxu0
      %v456 = vadd.f32 %v369, %v455
      %v457 = vpop.f32.mrf.mxu0
      %v458 = vadd.f32 %v371, %v457
      %459 = vmatmul.bf16.gmra.mxu0 %v244
      %v460 = vpop.f32.mrf.mxu0
      %v461 = vadd.f32 %v374, %v460
      %v462 = vpop.f32.mrf.mxu0
      %v463 = vadd.f32 %v376, %v462
      %464 = vdwg.mxu0
      %v465 = vld [vmem:[%s166 + $0x4] sm:$0xf]
      %v466 = vld [vmem:[%s166 + $0x8] sm:$0xf]
      %v467 = vld [vmem:[%s166 + $0xc] sm:$0xf]
      %v468 = vld [vmem:[%s166 + $0x10] sm:$0xf]
      %v469 = vld [vmem:[%s166 + $0x14] sm:$0xf]
      %v470 = vld [vmem:[%s166 + $0x18] sm:$0xf]
      %v471 = vld [vmem:[%s166 + $0x1c] sm:$0xf]
      %v472 = vld [vmem:[%s166 + $0x20] sm:$0xf]
      %v473 = vld [vmem:[%s166 + $0x24] sm:$0xf]
      %v474 = vld [vmem:[%s166 + $0x28] sm:$0xf]
      %v475 = vld [vmem:[%s166 + $0x2c] sm:$0x1]
      %s476 = scalar_lea.vmem %s1, 128
      %v477 = vld [vmem:[%s476] sm:$0xf]
      %v478 = vld [vmem:[%s476 + $0x4] sm:$0xf]
      %v479 = vld [vmem:[%s476 + $0x8] sm:$0xf]
      %v480 = vld [vmem:[%s476 + $0xc] sm:$0xf]
      %v481 = vld [vmem:[%s476 + $0x10] sm:$0xf]
      %v482 = vld [vmem:[%s476 + $0x14] sm:$0xf]
      %v483 = vld [vmem:[%s476 + $0x18] sm:$0xf]
      %v484 = vld [vmem:[%s476 + $0x1c] sm:$0xf]
      %v485 = vld [vmem:[%s476 + $0x20] sm:$0xf]
      %v486 = vld [vmem:[%s476 + $0x24] sm:$0xf]
      %v487 = vld [vmem:[%s476 + $0x28] sm:$0xf]
      %v488 = vld [vmem:[%s476 + $0x2c] sm:$0xf]
      %v489 = vld [vmem:[%s476 + $0x30] sm:$0xf]
      %v490 = vld [vmem:[%s476 + $0x34] sm:$0xf]
      %v491 = vld [vmem:[%s476 + $0x38] sm:$0xf]
      %v492 = vld [vmem:[%s476 + $0x3c] sm:$0xf]
      %v504 = vunpack.c.l.b16 %v465
      %v505 = vunpack.c.l.b16 %v466
      %v506 = vunpack.c.l.b16 %v467
      %v507 = vunpack.c.l.b16 %v468
      %v508 = vunpack.c.l.b16 %v469
      %v509 = vunpack.c.l.b16 %v470
      %v510 = vunpack.c.l.b16 %v471
      %v511 = vunpack.c.l.b16 %v472
      %v512 = vunpack.c.l.b16 %v473
      %v513 = vunpack.c.l.b16 %v474
      %v514 = vunpack.c.l.b16 %v475
      %v515 = vpack.c.b16 %v505, %v504
      %v516 = vpack.c.b16 %v507, %v506
      %v517 = vpack.c.b16 %v509, %v508
      %v518 = vpack.c.b16 %v511, %v510
      %v519 = vpack.c.b16 %v513, %v512
      %v520 = vpack.c.b16 %v514, %v514
      %v522 = vshrl.u32 %v515, 16
      %v524 = vshll.u32 %v515, 16
      %v526 = vrot.slane %v524, 1
      %v527 = vor.u32 %v522, %v526
      %v529 = vshll.u32 %v516, 16
      %v531 = vrot.slane %v529, 1
      %v532 = vsel %vm246, %v527, %v531
      %v533 = vshrl.u32 %v516, 16
      %v535 = vor.u32 %v533, %v531
      %v537 = vshll.u32 %v517, 16
      %v539 = vrot.slane %v537, 1
      %v540 = vsel %vm246, %v535, %v539
      %v541 = vshrl.u32 %v517, 16
      %v543 = vor.u32 %v541, %v539
      %v545 = vshll.u32 %v518, 16
      %v547 = vrot.slane %v545, 1
      %v548 = vsel %vm246, %v543, %v547
      %v549 = vshrl.u32 %v518, 16
      %v551 = vor.u32 %v549, %v547
      %v553 = vshll.u32 %v519, 16
      %v555 = vrot.slane %v553, 1
      %v556 = vsel %vm246, %v551, %v555
      %v557 = vshrl.u32 %v519, 16
      %v559 = vor.u32 %v557, %v555
      %v561 = vshll.u32 %v520, 16
      %v563 = vrot.slane %v561, 1
      %v564 = vsel %vm246, %v559, %v563
      %v586 = vunpack.c.l.b16 %v477
      %v587 = vunpack.c.l.b16 %v478
      %v588 = vunpack.c.l.b16 %v479
      %v589 = vunpack.c.l.b16 %v480
      %v590 = vunpack.c.l.b16 %v481
      %v591 = vunpack.c.l.b16 %v482
      %v592 = vunpack.c.l.b16 %v483
      %v593 = vunpack.c.l.b16 %v484
      %v594 = vunpack.c.l.b16 %v485
      %v595 = vunpack.c.l.b16 %v486
      %v596 = vunpack.c.l.b16 %v487
      %v597 = vunpack.c.l.b16 %v488
      %v598 = vunpack.c.l.b16 %v489
      %v599 = vunpack.c.l.b16 %v490
      %v600 = vunpack.c.l.b16 %v491
      %v601 = vunpack.c.l.b16 %v492
      %v602 = vpack.c.b16 %v587, %v586
      %v603 = vpack.c.b16 %v589, %v588
      %v604 = vpack.c.b16 %v591, %v590
      %v605 = vpack.c.b16 %v593, %v592
      %v606 = vpack.c.b16 %v595, %v594
      %v607 = vpack.c.b16 %v597, %v596
      %v608 = vpack.c.b16 %v599, %v598
      %v609 = vpack.c.b16 %v601, %v600
      %618 = vmatpush.bf16.msra.mxu0 %v609
      %619 = vmatpush.bf16.msra.mxu0 %v608
      %620 = vmatpush.bf16.msra.mxu0 %v607
      %621 = vmatpush.bf16.msra.mxu0 %v606
      %622 = vmatpush.bf16.msra.mxu0 %v605
      %623 = vmatpush.bf16.msra.mxu0 %v604
      %624 = vmatpush.bf16.msra.mxu0 %v603
      %625 = vmatpush.bf16.msra.mxu0 %v602
      %626 = vmatmul.bf16.gmra.mxu0 %v532
      %v627 = vpop.f32.mrf.mxu0
      %v628 = vadd.f32 0.0, %v627
      %v629 = vpop.f32.mrf.mxu0
      %v630 = vadd.f32 0.0, %v629
      %631 = vmatmul.bf16.gmra.mxu0 %v540
      %v632 = vpop.f32.mrf.mxu0
      %v633 = vadd.f32 0.0, %v632
      %v634 = vpop.f32.mrf.mxu0
      %v635 = vadd.f32 0.0, %v634
      %636 = vmatmul.bf16.gmra.mxu0 %v548
      %v637 = vpop.f32.mrf.mxu0
      %v638 = vadd.f32 0.0, %v637
      %v639 = vpop.f32.mrf.mxu0
      %v640 = vadd.f32 0.0, %v639
      %641 = vmatmul.bf16.gmra.mxu0 %v556
      %v642 = vpop.f32.mrf.mxu0
      %v643 = vadd.f32 0.0, %v642
      %v644 = vpop.f32.mrf.mxu0
      %v645 = vadd.f32 0.0, %v644
      %646 = vmatmul.bf16.gmra.mxu0 %v564
      %v647 = vpop.f32.mrf.mxu0
      %v648 = vadd.f32 0.0, %v647
      %v649 = vpop.f32.mrf.mxu0
      %v650 = vadd.f32 0.0, %v649
      %651 = vdwg.mxu0
      %v652 = vadd.f32 %v441, %v628
      %v653 = vadd.f32 %v443, %v630
      %v654 = vadd.f32 %v446, %v633
      %v655 = vadd.f32 %v448, %v635
      %v656 = vadd.f32 %v451, %v638
      %v657 = vadd.f32 %v453, %v640
      %v658 = vadd.f32 %v456, %v643
      %v659 = vadd.f32 %v458, %v645
      %v660 = vadd.f32 %v461, %v648
      %v661 = vadd.f32 %v463, %v650
      %v662 = vld [vmem:[%s166 + $0x4] sm:$0xe]
      %s663 = scalar_lea.vmem %s1, 192
      %v664 = vld [vmem:[%s663] sm:$0xf]
      %v665 = vld [vmem:[%s663 + $0x4] sm:$0xf]
      %v666 = vld [vmem:[%s663 + $0x8] sm:$0xf]
      %v667 = vld [vmem:[%s663 + $0xc] sm:$0xf]
      %v668 = vld [vmem:[%s663 + $0x10] sm:$0xf]
      %v669 = vld [vmem:[%s663 + $0x14] sm:$0xf]
      %v670 = vld [vmem:[%s663 + $0x18] sm:$0xf]
      %v671 = vld [vmem:[%s663 + $0x1c] sm:$0xf]
      %v672 = vld [vmem:[%s663 + $0x20] sm:$0xf]
      %v673 = vld [vmem:[%s663 + $0x24] sm:$0xf]
      %v674 = vld [vmem:[%s663 + $0x28] sm:$0xf]
      %v675 = vld [vmem:[%s663 + $0x2c] sm:$0xf]
      %v676 = vld [vmem:[%s663 + $0x30] sm:$0xf]
      %v677 = vld [vmem:[%s663 + $0x34] sm:$0xf]
      %v678 = vld [vmem:[%s663 + $0x38] sm:$0xf]
      %v679 = vld [vmem:[%s663 + $0x3c] sm:$0xf]
      %v681 = vunpack.c.l.b16 %v662
      %v682 = vpack.c.b16 %v505, %v681
      %vm683 = vcmask 1046528
      %v684 = vrot.slane %v682, 1
      %v685 = vrot.slane %v516, 1
      %v686 = vsel %vm683, %v684, %v685
      %v687 = vrot.slane %v517, 1
      %v688 = vsel %vm683, %v685, %v687
      %v689 = vrot.slane %v518, 1
      %v690 = vsel %vm683, %v687, %v689
      %v691 = vrot.slane %v519, 1
      %v692 = vsel %vm683, %v689, %v691
      %v693 = vrot.slane %v520, 1
      %v694 = vsel %vm683, %v691, %v693
      %v716 = vunpack.c.l.b16 %v664
      %v717 = vunpack.c.l.b16 %v665
      %v718 = vunpack.c.l.b16 %v666
      %v719 = vunpack.c.l.b16 %v667
      %v720 = vunpack.c.l.b16 %v668
      %v721 = vunpack.c.l.b16 %v669
      %v722 = vunpack.c.l.b16 %v670
      %v723 = vunpack.c.l.b16 %v671
      %v724 = vunpack.c.l.b16 %v672
      %v725 = vunpack.c.l.b16 %v673
      %v726 = vunpack.c.l.b16 %v674
      %v727 = vunpack.c.l.b16 %v675
      %v728 = vunpack.c.l.b16 %v676
      %v729 = vunpack.c.l.b16 %v677
      %v730 = vunpack.c.l.b16 %v678
      %v731 = vunpack.c.l.b16 %v679
      %v732 = vpack.c.b16 %v717, %v716
      %v733 = vpack.c.b16 %v719, %v718
      %v734 = vpack.c.b16 %v721, %v720
      %v735 = vpack.c.b16 %v723, %v722
      %v736 = vpack.c.b16 %v725, %v724
      %v737 = vpack.c.b16 %v727, %v726
      %v738 = vpack.c.b16 %v729, %v728
      %v739 = vpack.c.b16 %v731, %v730
      %748 = vmatpush.bf16.msra.mxu0 %v739
      %749 = vmatpush.bf16.msra.mxu0 %v738
      %750 = vmatpush.bf16.msra.mxu0 %v737
      %751 = vmatpush.bf16.msra.mxu0 %v736
      %752 = vmatpush.bf16.msra.mxu0 %v735
      %753 = vmatpush.bf16.msra.mxu0 %v734
      %754 = vmatpush.bf16.msra.mxu0 %v733
      %755 = vmatpush.bf16.msra.mxu0 %v732
      %756 = vmatmul.bf16.gmra.mxu0 %v686
      %v757 = vpop.f32.mrf.mxu0
      %v758 = vadd.f32 0.0, %v757
      %v759 = vpop.f32.mrf.mxu0
      %v760 = vadd.f32 0.0, %v759
      %761 = vmatmul.bf16.gmra.mxu0 %v688
      %v762 = vpop.f32.mrf.mxu0
      %v763 = vadd.f32 0.0, %v762
      %v764 = vpop.f32.mrf.mxu0
      %v765 = vadd.f32 0.0, %v764
      %766 = vmatmul.bf16.gmra.mxu0 %v690
      %v767 = vpop.f32.mrf.mxu0
      %v768 = vadd.f32 0.0, %v767
      %v769 = vpop.f32.mrf.mxu0
      %v770 = vadd.f32 0.0, %v769
      %771 = vmatmul.bf16.gmra.mxu0 %v692
      %v772 = vpop.f32.mrf.mxu0
      %v773 = vadd.f32 0.0, %v772
      %v774 = vpop.f32.mrf.mxu0
      %v775 = vadd.f32 0.0, %v774
      %776 = vmatmul.bf16.gmra.mxu0 %v694
      %v777 = vpop.f32.mrf.mxu0
      %v778 = vadd.f32 0.0, %v777
      %v779 = vpop.f32.mrf.mxu0
      %v780 = vadd.f32 0.0, %v779
      %781 = vdwg.mxu0
      %v782 = vadd.f32 %v652, %v758
      %v783 = vadd.f32 %v653, %v760
      %v784 = vadd.f32 %v654, %v763
      %v785 = vadd.f32 %v655, %v765
      %v786 = vadd.f32 %v656, %v768
      %v787 = vadd.f32 %v657, %v770
      %v788 = vadd.f32 %v658, %v773
      %v789 = vadd.f32 %v659, %v775
      %v790 = vadd.f32 %v660, %v778
      %v791 = vadd.f32 %v661, %v780
      %v792 = vld [vmem:[%s2] sm:$0x1]
      %v794 = vperm.slane %v792, 0
      %v796 = vadd.f32 %v782, %v794
      %v797 = vadd.f32 %v783, %v794
      %v798 = vadd.f32 %v784, %v794
      %v799 = vadd.f32 %v785, %v794
      %v800 = vadd.f32 %v786, %v794
      %v801 = vadd.f32 %v787, %v794
      %v802 = vadd.f32 %v788, %v794
      %v803 = vadd.f32 %v789, %v794
      %v804 = vadd.f32 %v790, %v794
      %v805 = vadd.f32 %v791, %v794
      %v806 = vmin.f32 %v796, 20.0
      %v807 = vmin.f32 %v797, 20.0
      %v808 = vmin.f32 %v798, 20.0
      %v809 = vmin.f32 %v799, 20.0
      %v810 = vmin.f32 %v800, 20.0
      %v811 = vmin.f32 %v801, 20.0
      %v812 = vmin.f32 %v802, 20.0
      %v813 = vmin.f32 %v803, 20.0
      %v814 = vmin.f32 %v804, 20.0
      %v815 = vmin.f32 %v805, 20.0
      %v816 = vmul.f32 %v806, 1.442695
      %v817 = vpow.pop %v816
      %v818 = vmul.f32 %v807, 1.442695
      %v819 = vpow.pop %v818
      %v820 = vmul.f32 %v808, 1.442695
      %v821 = vpow.pop %v820
      %v822 = vmul.f32 %v809, 1.442695
      %v823 = vpow.pop %v822
      %v824 = vmul.f32 %v810, 1.442695
      %v825 = vpow.pop %v824
      %v826 = vmul.f32 %v811, 1.442695
      %v827 = vpow.pop %v826
      %v828 = vmul.f32 %v812, 1.442695
      %v829 = vpow.pop %v828
      %v830 = vmul.f32 %v813, 1.442695
      %v831 = vpow.pop %v830
      %v832 = vmul.f32 %v814, 1.442695
      %v833 = vpow.pop %v832
      %v834 = vmul.f32 %v815, 1.442695
      %v835 = vpow.pop %v834
      %v836 = vadd.f32 %v817, 2.0
      %v837 = vadd.f32 %v819, 2.0
      %v838 = vadd.f32 %v821, 2.0
      %v839 = vadd.f32 %v823, 2.0
      %v840 = vadd.f32 %v825, 2.0
      %v841 = vadd.f32 %v827, 2.0
      %v842 = vadd.f32 %v829, 2.0
      %v843 = vadd.f32 %v831, 2.0
      %v844 = vadd.f32 %v833, 2.0
      %v845 = vadd.f32 %v835, 2.0
      %v846 = vmul.f32 %v817, %v836
      %v847 = vmul.f32 %v819, %v837
      %v848 = vmul.f32 %v821, %v838
      %v849 = vmul.f32 %v823, %v839
      %v850 = vmul.f32 %v825, %v840
      %v851 = vmul.f32 %v827, %v841
      %v852 = vmul.f32 %v829, %v842
      %v853 = vmul.f32 %v831, %v843
      %v854 = vmul.f32 %v833, %v844
      %v855 = vmul.f32 %v835, %v845
      %v856 = vadd.f32 %v846, 2.0
      %v857 = vadd.f32 %v847, 2.0
      %v858 = vadd.f32 %v848, 2.0
      %v859 = vadd.f32 %v849, 2.0
      %v860 = vadd.f32 %v850, 2.0
      %v861 = vadd.f32 %v851, 2.0
      %v862 = vadd.f32 %v852, 2.0
      %v863 = vadd.f32 %v853, 2.0
      %v864 = vadd.f32 %v854, 2.0
      %v865 = vadd.f32 %v855, 2.0
      %v866 = vrcp.pop %v856
      %v867 = vmul.f32 %v856, %v866
      %v868 = vsub.f32 1.0, %v867
      %v869 = vmul.f32 %v866, %v868
      %v870 = vadd.f32 %v866, %v869
      %vm871 = vweird.f32 %v856
      %vm872 = vweird.f32 %v866
      %vm873 = vmor %vm871, %vm872
      %v874 = vsel %vm873, %v866, %v870
      %v875 = vand.u32 2147483647, %v856
      %vm876 = vcmp.eq.f32.partialorder %v875, 8.507059e+37
      %v877 = vand.u32 %v856, 2147483648
      %v878 = vor.u32 1.1754944e-38, %v877
      %v879 = vsel %vm876, %v878, %v874
      %v880 = vmul.f32 %v846, %v879
      %v881 = vrcp.pop %v857
      %v882 = vmul.f32 %v857, %v881
      %v883 = vsub.f32 1.0, %v882
      %v884 = vmul.f32 %v881, %v883
      %v885 = vadd.f32 %v881, %v884
      %vm886 = vweird.f32 %v857
      %vm887 = vweird.f32 %v881
      %vm888 = vmor %vm886, %vm887
      %v889 = vsel %vm888, %v881, %v885
      %v890 = vand.u32 2147483647, %v857
      %vm891 = vcmp.eq.f32.partialorder %v890, 8.507059e+37
      %v892 = vand.u32 %v857, 2147483648
      %v893 = vor.u32 1.1754944e-38, %v892
      %v894 = vsel %vm891, %v893, %v889
      %v895 = vmul.f32 %v847, %v894
      %v896 = vrcp.pop %v858
      %v897 = vmul.f32 %v858, %v896
      %v898 = vsub.f32 1.0, %v897
      %v899 = vmul.f32 %v896, %v898
      %v900 = vadd.f32 %v896, %v899
      %vm901 = vweird.f32 %v858
      %vm902 = vweird.f32 %v896
      %vm903 = vmor %vm901, %vm902
      %v904 = vsel %vm903, %v896, %v900
      %v905 = vand.u32 2147483647, %v858
      %vm906 = vcmp.eq.f32.partialorder %v905, 8.507059e+37
      %v907 = vand.u32 %v858, 2147483648
      %v908 = vor.u32 1.1754944e-38, %v907
      %v909 = vsel %vm906, %v908, %v904
      %v910 = vmul.f32 %v848, %v909
      %v911 = vrcp.pop %v859
      %v912 = vmul.f32 %v859, %v911
      %v913 = vsub.f32 1.0, %v912
      %v914 = vmul.f32 %v911, %v913
      %v915 = vadd.f32 %v911, %v914
      %vm916 = vweird.f32 %v859
      %vm917 = vweird.f32 %v911
      %vm918 = vmor %vm916, %vm917
      %v919 = vsel %vm918, %v911, %v915
      %v920 = vand.u32 2147483647, %v859
      %vm921 = vcmp.eq.f32.partialorder %v920, 8.507059e+37
      %v922 = vand.u32 %v859, 2147483648
      %v923 = vor.u32 1.1754944e-38, %v922
      %v924 = vsel %vm921, %v923, %v919
      %v925 = vmul.f32 %v849, %v924
      %v926 = vrcp.pop %v860
      %v927 = vmul.f32 %v860, %v926
      %v928 = vsub.f32 1.0, %v927
      %v929 = vmul.f32 %v926, %v928
      %v930 = vadd.f32 %v926, %v929
      %vm931 = vweird.f32 %v860
      %vm932 = vweird.f32 %v926
      %vm933 = vmor %vm931, %vm932
      %v934 = vsel %vm933, %v926, %v930
      %v935 = vand.u32 2147483647, %v860
      %vm936 = vcmp.eq.f32.partialorder %v935, 8.507059e+37
      %v937 = vand.u32 %v860, 2147483648
      %v938 = vor.u32 1.1754944e-38, %v937
      %v939 = vsel %vm936, %v938, %v934
      %v940 = vmul.f32 %v850, %v939
      %v941 = vrcp.pop %v861
      %v942 = vmul.f32 %v861, %v941
      %v943 = vsub.f32 1.0, %v942
      %v944 = vmul.f32 %v941, %v943
      %v945 = vadd.f32 %v941, %v944
      %vm946 = vweird.f32 %v861
      %vm947 = vweird.f32 %v941
      %vm948 = vmor %vm946, %vm947
      %v949 = vsel %vm948, %v941, %v945
      %v950 = vand.u32 2147483647, %v861
      %vm951 = vcmp.eq.f32.partialorder %v950, 8.507059e+37
      %v952 = vand.u32 %v861, 2147483648
      %v953 = vor.u32 1.1754944e-38, %v952
      %v954 = vsel %vm951, %v953, %v949
      %v955 = vmul.f32 %v851, %v954
      %v956 = vrcp.pop %v862
      %v957 = vmul.f32 %v862, %v956
      %v958 = vsub.f32 1.0, %v957
      %v959 = vmul.f32 %v956, %v958
      %v960 = vadd.f32 %v956, %v959
      %vm961 = vweird.f32 %v862
      %vm962 = vweird.f32 %v956
      %vm963 = vmor %vm961, %vm962
      %v964 = vsel %vm963, %v956, %v960
      %v965 = vand.u32 2147483647, %v862
      %vm966 = vcmp.eq.f32.partialorder %v965, 8.507059e+37
      %v967 = vand.u32 %v862, 2147483648
      %v968 = vor.u32 1.1754944e-38, %v967
      %v969 = vsel %vm966, %v968, %v964
      %v970 = vmul.f32 %v852, %v969
      %v971 = vrcp.pop %v863
      %v972 = vmul.f32 %v863, %v971
      %v973 = vsub.f32 1.0, %v972
      %v974 = vmul.f32 %v971, %v973
      %v975 = vadd.f32 %v971, %v974
      %vm976 = vweird.f32 %v863
      %vm977 = vweird.f32 %v971
      %vm978 = vmor %vm976, %vm977
      %v979 = vsel %vm978, %v971, %v975
      %v980 = vand.u32 2147483647, %v863
      %vm981 = vcmp.eq.f32.partialorder %v980, 8.507059e+37
      %v982 = vand.u32 %v863, 2147483648
      %v983 = vor.u32 1.1754944e-38, %v982
      %v984 = vsel %vm981, %v983, %v979
      %v985 = vmul.f32 %v853, %v984
      %v986 = vrcp.pop %v864
      %v987 = vmul.f32 %v864, %v986
      %v988 = vsub.f32 1.0, %v987
      %v989 = vmul.f32 %v986, %v988
      %v990 = vadd.f32 %v986, %v989
      %vm991 = vweird.f32 %v864
      %vm992 = vweird.f32 %v986
      %vm993 = vmor %vm991, %vm992
      %v994 = vsel %vm993, %v986, %v990
      %v995 = vand.u32 2147483647, %v864
      %vm996 = vcmp.eq.f32.partialorder %v995, 8.507059e+37
      %v997 = vand.u32 %v864, 2147483648
      %v998 = vor.u32 1.1754944e-38, %v997
      %v999 = vsel %vm996, %v998, %v994
      %v1000 = vmul.f32 %v854, %v999
      %v1001 = vrcp.pop %v865
      %v1002 = vmul.f32 %v865, %v1001
      %v1003 = vsub.f32 1.0, %v1002
      %v1004 = vmul.f32 %v1001, %v1003
      %v1005 = vadd.f32 %v1001, %v1004
      %vm1006 = vweird.f32 %v865
      %vm1007 = vweird.f32 %v1001
      %vm1008 = vmor %vm1006, %vm1007
      %v1009 = vsel %vm1008, %v1001, %v1005
      %v1010 = vand.u32 2147483647, %v865
      %vm1011 = vcmp.eq.f32.partialorder %v1010, 8.507059e+37
      %v1012 = vand.u32 %v865, 2147483648
      %v1013 = vor.u32 1.1754944e-38, %v1012
      %v1014 = vsel %vm1011, %v1013, %v1009
      %v1015 = vmul.f32 %v855, %v1014
      %v1016 = vmul.f32 %v796, %v880
      %v1017 = vmul.f32 %v797, %v895
      %v1018 = vmul.f32 %v798, %v910
      %v1019 = vmul.f32 %v799, %v925
      %v1020 = vmul.f32 %v800, %v940
      %v1021 = vmul.f32 %v801, %v955
      %v1022 = vmul.f32 %v802, %v970
      %v1023 = vmul.f32 %v803, %v985
      %v1024 = vmul.f32 %v804, %v1000
      %v1025 = vmul.f32 %v805, %v1015
      %v1026 = vpack.c.bf16 %v1016, %v1016
      %v1027 = vpack.c.bf16 %v1017, %v1017
      %v1028 = vpack.c.bf16 %v1018, %v1018
      %v1029 = vpack.c.bf16 %v1019, %v1019
      %v1030 = vpack.c.bf16 %v1020, %v1020
      %v1031 = vpack.c.bf16 %v1021, %v1021
      %v1032 = vpack.c.bf16 %v1022, %v1022
      %v1033 = vpack.c.bf16 %v1023, %v1023
      %v1034 = vpack.c.bf16 %v1024, %v1024
      %v1035 = vpack.c.bf16 %v1025, %v1025
      %1036 = vst [vmem:[%s172] sm:$0xf] %v1026
      %1037 = vst [vmem:[%s172 + $0x4] sm:$0xf] %v1027
      %1038 = vst [vmem:[%s172 + $0x8] sm:$0xf] %v1028
      %1039 = vst [vmem:[%s172 + $0xc] sm:$0xf] %v1029
      %1040 = vst [vmem:[%s172 + $0x10] sm:$0xf] %v1030
      %1041 = vst [vmem:[%s172 + $0x14] sm:$0xf] %v1031
      %1042 = vst [vmem:[%s172 + $0x18] sm:$0xf] %v1032
      %1043 = vst [vmem:[%s172 + $0x1c] sm:$0xf] %v1033
      %1044 = vst [vmem:[%s172 + $0x20] sm:$0xf] %v1034
      %1045 = vst [vmem:[%s172 + $0x24] sm:$0xf] %v1035
      %s1046 = smul.u32 10, %s14
      %p1047 = scmp.lt.s32.totalorder %s1046, 19
      %s1048 = scalar_select %p1047, %s1046, 19
      %s1049 = smul.addr %s1048, 4
      %s1050 = scalar_lea.vmem %s3, %s1049
      // Predicated region
      $region33: #{resblock_body_forward.6} parent=31 // pred_check
        %p1051 = pneg %p100
      $region34: #{resblock_body_forward.6} parent=31 // pred_check_branch
        %1053 = sbr.rel (%p1051) target = $region36
      $region35: #{resblock_body_forward.6} parent=31 // pred_region
        %s1054 = smul.u32 10, %s14
      $region36: #{resblock_body_forward.6} parent=31 // pred_fallthru
        _
    $region32: #{resblock_body_forward.6} parent=5 // pred_fallthru
      _
    %p1055 = scmp.le.s32.totalorder 2, %s9
    // Predicated region
    $region37: #{resblock_body_forward.6} parent=5 // pred_check
      %p1056 = pneg %p1055
    $region38: #{resblock_body_forward.6} parent=5 // pred_check_branch
      %1058 = sbr.rel (%p1056) target = $region40
    $region39: #{resblock_body_forward.6} parent=5 // pred_region
      %s1059 = ssub.s32 %s9, 2
      // Predicated region
      $region41: #{resblock_body_forward.6} parent=39 // pred_check
        %p1060 = pneg %p106
      $region42: #{resblock_body_forward.6} parent=39 // pred_check_branch
        %1062 = sbr.rel (%p1060) target = $region44
      $region43: #{resblock_body_forward.6} parent=39 // pred_region
        %s1063 = smul.u32 10, %s15
        %p1064 = scmp.lt.s32.totalorder %s1063, 19
        %s1065 = scalar_select %p1064, %s1063, 19
        %s1066 = smul.addr %s1065, 4
        %s1067 = scalar_lea.vmem %s3, %s1066
      $region44: #{resblock_body_forward.6} parent=39 // pred_fallthru
        _
    $region40: #{resblock_body_forward.6} parent=5 // pred_fallthru
      _
  $region6: #{resblock_body_forward.6} parent=0 // loop_footer
    %s13 = sadd.s32 1, %s9
  $region7: #{resblock_body_forward.6} parent=0 // loop_footer_branch
    %8 = sbr.rel target = $region3
  $region8: #{resblock_body_forward.6} parent=0 // loop_exit
    _

// kernel: resblock_body_forward.10
$region0: #{resblock_body_forward.10}
  #allocation0 [shape = 'u32[]', space=smem, size = 0x4, offset = 0x4, fixed_abs, tag = 'smem constant byte address 0x4 - core index']
  #allocation1 [shape = 'u32[72,128]{1,0:T(1,128)}', space=vmem, size = 0x9000, scoped, tag = 'internal scratch']
  %s0 = inlined_call_operand.vmem [shape: bf16[128,128], index: 0, kind: input, shape index: {}]
  %s1 = inlined_call_operand.vmem [shape: bf16[128,256], index: 1, kind: input, shape index: {}]
  %s2 = inlined_call_operand.vmem [shape: bf16[1,128,128], index: 2, kind: input, shape index: {}]
  %s3 = inlined_call_operand.vmem [shape: f32[1,128], index: 3, kind: input, shape index: {}]
  %s4 = inlined_call_operand.vmem [shape: bf16[128,128], index: 4, kind: output, shape index: {}]
  %s5 = sld [smem:[#allocation0]]
  $region90: #{resblock_body_forward.10} parent=0
    _
  %s7 = ssub.s32 1, %s5
  %s8 = scalar_select 0, %s7, %s5
  $region1: #{resblock_body_forward.10} parent=0
    #allocation2 [shape = 'u8[32768]{0}', space=vmem, size = 0x8000, scoped, tag = 'input window, operand 1']
    loop: start=0, step=1, limit=4
    $region2: #{resblock_body_forward.10} parent=1 // loop_pre_header
      _
    $region3: #{resblock_body_forward.10} parent=1 // loop_header
      %s10 = sphi 0, %s14
      %p11 = scmp.ge.s32.totalorder %s10, 4
      %s20 = sphi 0, %s22
      %s23 = sphi 0, %s20
      %s24 = sphi 0, %s23
      %s40 = sphi 0, %s24
      %s46 = sphi 0, %s48
      %s49 = sphi 0, %s46
      %s50 = sphi 0, %s49
      %s66 = sphi 0, %s50
      %s70 = sphi 0, %s70
      %s72 = sphi 0, %s70
      %s73 = sphi 0, %s72
      %s87 = sphi 0, %s73
      %s91 = sphi 0, %s91
      %s93 = sphi 0, %s91
      %s94 = sphi 0, %s93
      %s108 = sphi 0, %s94
      %s114 = sphi 0, %s116
      %s117 = sphi 0, %s114
      %s118 = sphi 0, %s117
      %s134 = sphi 0, %s118
    $region4: #{resblock_body_forward.10} parent=1 // loop_header_branch
      %13 = sbr.rel (%p11) target = $region8
    $region5: #{resblock_body_forward.10} parent=1 // loop_body
      %s15 = ssub.s32 %s10, 1
      %s16 = ssub.s32 %s10, 2
      %s17 = sadd.s32 %s10, 1
      %s18 = ssub.s32 %s10, %s17
      %p19 = scmp.eq.s32.totalorder %s18, 0
      %s21 = sadd.s32 %s20, 1
      %s22 = scalar_select %p19, %s20, %s21
      %p25 = pneg %p19
      %p26 = scmp.eq.s32.totalorder %s10, 1
      %p27 = por %p25, %p26
      %p28 = scmp.ne.s32.totalorder %s20, %s23
      %p29 = scmp.eq.s32.totalorder %s10, 0
      %p30 = por %p28, %p29
      %p31 = scmp.ne.s32.totalorder %s20, %s23
      %p32 = scmp.eq.s32.totalorder %s15, 1
      %p33 = por %p31, %p32
      %p34 = scmp.ne.s32.totalorder %s23, %s24
      %p35 = scmp.eq.s32.totalorder %s15, 0
      %p36 = por %p34, %p35
      %p37 = scmp.ne.s32.totalorder %s23, %s24
      %p38 = scmp.eq.s32.totalorder %s16, 1
      %p39 = por %p37, %p38
      %p41 = scmp.ne.s32.totalorder %s24, %s40
      %p42 = scmp.eq.s32.totalorder %s16, 0
      %p43 = por %p41, %p42
      %s44 = ssub.s32 %s10, %s17
      %p45 = scmp.eq.s32.totalorder %s44, 0
      %s47 = sadd.s32 %s46, 1
      %s48 = scalar_select %p45, %s46, %s47
      %p51 = pneg %p45
      %p52 = scmp.eq.s32.totalorder %s10, 1
      %p53 = por %p51, %p52
      %p54 = scmp.ne.s32.totalorder %s46, %s49
      %p55 = scmp.eq.s32.totalorder %s10, 0
      %p56 = por %p54, %p55
      %p57 = scmp.ne.s32.totalorder %s46, %s49
      %p58 = scmp.eq.s32.totalorder %s15, 1
      %p59 = por %p57, %p58
      %p60 = scmp.ne.s32.totalorder %s49, %s50
      %p61 = scmp.eq.s32.totalorder %s15, 0
      %p62 = por %p60, %p61
      %p63 = scmp.ne.s32.totalorder %s49, %s50
      %p64 = scmp.eq.s32.totalorder %s16, 1
      %p65 = por %p63, %p64
      %p67 = scmp.ne.s32.totalorder %s50, %s66
      %p68 = scmp.eq.s32.totalorder %s16, 0
      %p69 = por %p67, %p68
      %s71 = sadd.s32 %s70, 1
      %p74 = scmp.eq.s32.totalorder %s10, 1
      %p75 = scmp.ne.s32.totalorder %s70, %s72
      %p76 = scmp.eq.s32.totalorder %s10, 0
      %p77 = por %p75, %p76
      %p78 = scmp.ne.s32.totalorder %s70, %s72
      %p79 = scmp.eq.s32.totalorder %s15, 1
      %p80 = por %p78, %p79
      %p81 = scmp.ne.s32.totalorder %s72, %s73
      %p82 = scmp.eq.s32.totalorder %s15, 0
      %p83 = por %p81, %p82
      %p84 = scmp.ne.s32.totalorder %s72, %s73
      %p85 = scmp.eq.s32.totalorder %s16, 1
      %p86 = por %p84, %p85
      %p88 = scmp.ne.s32.totalorder %s73, %s87
      %p89 = scmp.eq.s32.totalorder %s16, 0
      %p90 = por %p88, %p89
      %s92 = sadd.s32 %s91, 1
      %p95 = scmp.eq.s32.totalorder %s10, 1
      %p96 = scmp.ne.s32.totalorder %s91, %s93
      %p97 = scmp.eq.s32.totalorder %s10, 0
      %p98 = por %p96, %p97
      %p99 = scmp.ne.s32.totalorder %s91, %s93
      %p100 = scmp.eq.s32.totalorder %s15, 1
      %p101 = por %p99, %p100
      %p102 = scmp.ne.s32.totalorder %s93, %s94
      %p103 = scmp.eq.s32.totalorder %s15, 0
      %p104 = por %p102, %p103
      %p105 = scmp.ne.s32.totalorder %s93, %s94
      %p106 = scmp.eq.s32.totalorder %s16, 1
      %p107 = por %p105, %p106
      %p109 = scmp.ne.s32.totalorder %s94, %s108
      %p110 = scmp.eq.s32.totalorder %s16, 0
      %p111 = por %p109, %p110
      %s112 = ssub.s32 %s10, %s17
      %p113 = scmp.eq.s32.totalorder %s112, 0
      %s115 = sadd.s32 %s114, 1
      %s116 = scalar_select %p113, %s114, %s115
      %p119 = pneg %p113
      %p120 = scmp.eq.s32.totalorder %s10, 1
      %p121 = por %p119, %p120
      %p122 = scmp.ne.s32.totalorder %s114, %s117
      %p123 = scmp.eq.s32.totalorder %s10, 0
      %p124 = por %p122, %p123
      %p125 = scmp.ne.s32.totalorder %s114, %s117
      %p126 = scmp.eq.s32.totalorder %s15, 1
      %p127 = por %p125, %p126
      %p128 = scmp.ne.s32.totalorder %s117, %s118
      %p129 = scmp.eq.s32.totalorder %s15, 0
      %p130 = por %p128, %p129
      %p131 = scmp.ne.s32.totalorder %s117, %s118
      %p132 = scmp.eq.s32.totalorder %s16, 1
      %p133 = por %p131, %p132
      %p135 = scmp.ne.s32.totalorder %s118, %s134
      %p136 = scmp.eq.s32.totalorder %s16, 0
      %p137 = por %p135, %p136
      %p138 = scmp.le.s32.totalorder 1, %s10
      %p139 = scmp.lt.s32.totalorder %s10, 3
      %p140 = pnand %p138, %p139
      %p141 = pneg %p140
      // Predicated region
      $region9: #{resblock_body_forward.10} parent=5 // pred_check
        _
      $region10: #{resblock_body_forward.10} parent=5 // pred_check_branch
        %143 = sbr.rel (%p140) target = $region12
      $region11: #{resblock_body_forward.10} parent=5 // pred_region
        %s144 = ssub.s32 %s10, 1
        // Predicated region
        $region13: #{resblock_body_forward.10} parent=11 // pred_check
          %p145 = pneg %p83
        $region14: #{resblock_body_forward.10} parent=11 // pred_check_branch
          %147 = sbr.rel (%p145) target = $region16
        $region15: #{resblock_body_forward.10} parent=11 // pred_region
          _
        $region16: #{resblock_body_forward.10} parent=11 // pred_fallthru
          _
        // Predicated region
        $region17: #{resblock_body_forward.10} parent=11 // pred_check
          %p148 = pneg %p104
        $region18: #{resblock_body_forward.10} parent=11 // pred_check_branch
          %150 = sbr.rel (%p148) target = $region20
        $region19: #{resblock_body_forward.10} parent=11 // pred_region
          _
        $region20: #{resblock_body_forward.10} parent=11 // pred_fallthru
          _
      $region12: #{resblock_body_forward.10} parent=5 // pred_fallthru
        _
      %p151 = scmp.lt.s32.totalorder %s10, 2
      // Predicated region
      $region21: #{resblock_body_forward.10} parent=5 // pred_check
        %p152 = pneg %p151
      $region22: #{resblock_body_forward.10} parent=5 // pred_check_branch
        %154 = sbr.rel (%p152) target = $region24
      $region23: #{resblock_body_forward.10} parent=5 // pred_region
        // Predicated region
        $region25: #{resblock_body_forward.10} parent=23 // pred_check
          %p155 = pneg %p30
        $region26: #{resblock_body_forward.10} parent=23 // pred_check_branch
          %157 = sbr.rel (%p155) target = $region28
        $region27: #{resblock_body_forward.10} parent=23 // pred_region
          %s158 = smul.u32 8, %s10
          %p159 = scmp.lt.s32.totalorder %s158, 15
          %s160 = scalar_select %p159, %s158, 15
          %s161 = smul.addr %s160, 4
          %s162 = scalar_lea.vmem %s0, %s161
          %s163 = smul.u32 8, %s10
        $region28: #{resblock_body_forward.10} parent=23 // pred_fallthru
          _
        // Predicated region
        $region29: #{resblock_body_forward.10} parent=23 // pred_check
          %p164 = pneg %p56
        $region30: #{resblock_body_forward.10} parent=23 // pred_check_branch
          %166 = sbr.rel (%p164) target = $region32
        $region31: #{resblock_body_forward.10} parent=23 // pred_region
          %s167 = sand.u32 %s46, 1
          %s168 = sand.u32 %s46, 1
          %s169 = smul.addr %s168, 32
          %s170 = scalar_lea.vmem [#allocation2], %s169
          %s171 = smul.u32 8, %s10
          %s172 = smul.addr %s171, 2
          %s173 = smul.addr %s172, 4
          %s174 = scalar_lea.vmem %s1, %s173
          // Predicated region
          $region33: #{resblock_body_forward.10} parent=31 // pred_check
            _
          $region34: #{resblock_body_forward.10} parent=31 // pred_check_branch
            %176 = sbr.rel (0) target = $region36
          $region35: #{resblock_body_forward.10} parent=31 // pred_region
            // Predicated region
            $region37: #{resblock_body_forward.10} parent=35 // pred_check
              _
            $region38: #{resblock_body_forward.10} parent=35 // pred_check_branch
              %178 = sbr.rel target = $region40
            $region39: #{resblock_body_forward.10} parent=35 // pred_region
              // Predicated region
              $region52: #{resblock_body_forward.10} parent=39 // pred_check
                _
              $region53: #{resblock_body_forward.10} parent=39 // pred_check_branch
                %208 = sbr.rel (0) target = $region55
              $region54: #{resblock_body_forward.10} parent=39 // pred_region
                loop: start=0, step=1, limit=1
                $region56: #{resblock_body_forward.10} parent=54 // loop_pre_header
                  _
                $region57: #{resblock_body_forward.10} parent=54 // loop_header
                  %s210 = sphi 0, %s214
                  %p211 = scmp.ge.s32.totalorder %s210, 1
                  %s215 = sphi %s174, %s174
                  %s216 = sphi %s170, %s170
                $region58: #{resblock_body_forward.10} parent=54 // loop_header_branch
                  %213 = sbr.rel (%p211) target = $region62
                $region59: #{resblock_body_forward.10} parent=54 // loop_body
                  _
                $region60: #{resblock_body_forward.10} parent=54 // loop_footer
                  %s214 = sadd.s32 1, %s210
                $region61: #{resblock_body_forward.10} parent=54 // loop_footer_branch
                  %209 = sbr.rel target = $region57
                $region62: #{resblock_body_forward.10} parent=54 // loop_exit
                  _
                %s218 = ssub.s32 16, 1
                loop: start=0, step=1, limit=1
                $region63: #{resblock_body_forward.10} parent=54 // loop_pre_header
                  _
                $region64: #{resblock_body_forward.10} parent=54 // loop_header
                  %s220 = sphi 0, %s224
                  %p221 = scmp.ge.s32.totalorder %s220, 1
                  %s225 = sphi %s174, %s174
                  %s226 = sphi %s170, %s170
                $region65: #{resblock_body_forward.10} parent=54 // loop_header_branch
                  %223 = sbr.rel (%p221) target = $region69
                $region66: #{resblock_body_forward.10} parent=54 // loop_body
                  %v227 = vld [vmem:[%s225] sm:%s218]
                  %228 = vst [vmem:[%s226] sm:%s218] %v227
                  %v229 = vld [vmem:[%s225 + $0x8] sm:%s218]
                  %230 = vst [vmem:[%s226 + $0x4] sm:%s218] %v229
                  %v231 = vld [vmem:[%s225 + $0x10] sm:%s218]
                  %232 = vst [vmem:[%s226 + $0x8] sm:%s218] %v231
                  %v233 = vld [vmem:[%s225 + $0x18] sm:%s218]
                  %234 = vst [vmem:[%s226 + $0xc] sm:%s218] %v233
                  %v235 = vld [vmem:[%s225 + $0x20] sm:%s218]
                  %236 = vst [vmem:[%s226 + $0x10] sm:%s218] %v235
                  %v237 = vld [vmem:[%s225 + $0x28] sm:%s218]
                  %238 = vst [vmem:[%s226 + $0x14] sm:%s218] %v237
                  %v239 = vld [vmem:[%s225 + $0x30] sm:%s218]
                  %240 = vst [vmem:[%s226 + $0x18] sm:%s218] %v239
                  %v241 = vld [vmem:[%s225 + $0x38] sm:%s218]
                  %242 = vst [vmem:[%s226 + $0x1c] sm:%s218] %v241
                $region67: #{resblock_body_forward.10} parent=54 // loop_footer
                  %s224 = sadd.s32 1, %s220
                $region68: #{resblock_body_forward.10} parent=54 // loop_footer_branch
                  %219 = sbr.rel target = $region64
                $region69: #{resblock_body_forward.10} parent=54 // loop_exit
                  _
              $region55: #{resblock_body_forward.10} parent=39 // pred_fallthru
                _
            $region40: #{resblock_body_forward.10} parent=35 // pred_fallthru
              _
            // Predicated region
            $region41: #{resblock_body_forward.10} parent=35 // pred_check
              _
            $region42: #{resblock_body_forward.10} parent=35 // pred_check_branch
              %180 = sbr.rel (0) target = $region44
            $region43: #{resblock_body_forward.10} parent=35 // pred_region
              %s182 = ssub.s32 16, 1
              loop: start=0, step=1, limit=1
              $region45: #{resblock_body_forward.10} parent=43 // loop_pre_header
                _
              $region46: #{resblock_body_forward.10} parent=43 // loop_header
                %s184 = sphi 0, %s188
                %p185 = scmp.ge.s32.totalorder %s184, 1
                %s189 = sphi %s174, %s174
                %s190 = sphi %s170, %s170
              $region47: #{resblock_body_forward.10} parent=43 // loop_header_branch
                %187 = sbr.rel (%p185) target = $region51
              $region48: #{resblock_body_forward.10} parent=43 // loop_body
                %v191 = vld [vmem:[%s189] sm:%s182]
                %192 = vst [vmem:[%s190] sm:%s182] %v191
                %v193 = vld [vmem:[%s189 + $0x8] sm:%s182]
                %194 = vst [vmem:[%s190 + $0x4] sm:%s182] %v193
                %v195 = vld [vmem:[%s189 + $0x10] sm:%s182]
                %196 = vst [vmem:[%s190 + $0x8] sm:%s182] %v195
                %v197 = vld [vmem:[%s189 + $0x18] sm:%s182]
                %198 = vst [vmem:[%s190 + $0xc] sm:%s182] %v197
                %v199 = vld [vmem:[%s189 + $0x20] sm:%s182]
                %200 = vst [vmem:[%s190 + $0x10] sm:%s182] %v199
                %v201 = vld [vmem:[%s189 + $0x28] sm:%s182]
                %202 = vst [vmem:[%s190 + $0x14] sm:%s182] %v201
                %v203 = vld [vmem:[%s189 + $0x30] sm:%s182]
                %204 = vst [vmem:[%s190 + $0x18] sm:%s182] %v203
                %v205 = vld [vmem:[%s189 + $0x38] sm:%s182]
                %206 = vst [vmem:[%s190 + $0x1c] sm:%s182] %v205
              $region49: #{resblock_body_forward.10} parent=43 // loop_footer
                %s188 = sadd.s32 1, %s184
              $region50: #{resblock_body_forward.10} parent=43 // loop_footer_branch
                %183 = sbr.rel target = $region46
              $region51: #{resblock_body_forward.10} parent=43 // loop_exit
                _
            $region44: #{resblock_body_forward.10} parent=35 // pred_fallthru
              _
          $region36: #{resblock_body_forward.10} parent=31 // pred_fallthru
            _
          %243 = vnop
        $region32: #{resblock_body_forward.10} parent=23 // pred_fallthru
          _
      $region24: #{resblock_body_forward.10} parent=5 // pred_fallthru
        _
      %p244 = scmp.le.s32.totalorder 1, %s10
      %p245 = scmp.lt.s32.totalorder %s10, 3
      %p246 = pnand %p244, %p245
      %p247 = pneg %p246
      // Predicated region
      $region70: #{resblock_body_forward.10} parent=5 // pred_check
        _
      $region71: #{resblock_body_forward.10} parent=5 // pred_check_branch
        %249 = sbr.rel (%p246) target = $region73
      $region72: #{resblock_body_forward.10} parent=5 // pred_region
        %s250 = ssub.s32 %s10, 1
        %s251 = sand.u32 %s49, 1
        %s252 = sand.u32 %s49, 1
        %s253 = smul.addr %s252, 32
        %s254 = scalar_lea.vmem [#allocation2], %s253
        // Predicated region
        $region74: #{resblock_body_forward.10} parent=72 // pred_check
          %p255 = pneg %p62
        $region75: #{resblock_body_forward.10} parent=72 // pred_check_branch
          %257 = sbr.rel (%p255) target = $region77
        $region76: #{resblock_body_forward.10} parent=72 // pred_region
          _
        $region77: #{resblock_body_forward.10} parent=72 // pred_fallthru
          _
        %s258 = smul.u32 8, %s15
        %p259 = scmp.lt.s32.totalorder %s258, 15
        %s260 = scalar_select %p259, %s258, 15
        %s261 = smul.addr %s260, 4
        %s262 = scalar_lea.vmem %s0, %s261
        %p263 = pneg %p36
        %p264 = pneg %p33
        %s265 = sand.u32 %s49, 1
        %s266 = sand.u32 %s49, 1
        %s267 = smul.addr %s266, 32
        %s268 = scalar_lea.vmem [#allocation2], %s267
        %p269 = pneg %p62
        %p270 = pneg %p59
        %p271 = pneg %p83
        %p272 = pneg %p80
        %p273 = pneg %p104
        %p274 = pneg %p101
        %p275 = pneg %p130
        %p276 = pneg %p127
        %s277 = smul.u32 8, %s15
        %p278 = scmp.lt.s32.totalorder %s277, 15
        %s279 = scalar_select %p278, %s277, 15
        %s280 = smul.addr %s279, 4
        %s281 = scalar_lea.vmem %s4, %s280
        %s282 = smul.u32 8, %s15
        %p283 = scmp.lt.s32.totalorder %s282, 15
        %s284 = scalar_select %p283, %s282, 15
        %s285 = smul.addr %s284, 4
        %s286 = scalar_lea.vmem %s0, %s285
        %s287 = smul.u32 8, %s15
        %s288 = smul.u32 8, %s15
        %s289 = smul.u32 8, %s15
        %p290 = scmp.lt.s32.totalorder %s289, 15
        %s291 = scalar_select %p290, %s289, 15
        %s292 = smul.addr %s291, 4
        %s293 = scalar_lea.vmem %s4, %s292
        %s294 = smul.u32 8, %s15
        %v295 = vld [vmem:[%s286] sm:$0xf]
        %v296 = vld [vmem:[%s286 + $0x4] sm:$0xf]
        %v297 = vld [vmem:[%s286 + $0x8] sm:$0xf]
        %v298 = vld [vmem:[%s286 + $0xc] sm:$0xf]
        %v299 = vld [vmem:[%s286 + $0x10] sm:$0xf]
        %v300 = vld [vmem:[%s286 + $0x14] sm:$0xf]
        %v301 = vld [vmem:[%s286 + $0x18] sm:$0xf]
        %v302 = vld [vmem:[%s286 + $0x1c] sm:$0xf]
        %v303 = vld [vmem:[%s254] sm:$0xf]
        %v304 = vld [vmem:[%s254 + $0x4] sm:$0xf]
        %v305 = vld [vmem:[%s254 + $0x8] sm:$0xf]
        %v306 = vld [vmem:[%s254 + $0xc] sm:$0xf]
        %v307 = vld [vmem:[%s254 + $0x10] sm:$0xf]
        %v308 = vld [vmem:[%s254 + $0x14] sm:$0xf]
        %v309 = vld [vmem:[%s254 + $0x18] sm:$0xf]
        %v310 = vld [vmem:[%s254 + $0x1c] sm:$0xf]
        %v311 = vunpack.c.l.bf16 %v295
        %v312 = vunpack.c.l.bf16 %v296
        %v313 = vunpack.c.l.bf16 %v297
        %v314 = vunpack.c.l.bf16 %v298
        %v315 = vunpack.c.l.bf16 %v299
        %v316 = vunpack.c.l.bf16 %v300
        %v317 = vunpack.c.l.bf16 %v301
        %v318 = vunpack.c.l.bf16 %v302
        %v319 = vunpack.c.l.bf16 %v303
        %v320 = vunpack.c.l.bf16 %v304
        %v321 = vunpack.c.l.bf16 %v305
        %v322 = vunpack.c.l.bf16 %v306
        %v323 = vunpack.c.l.bf16 %v307
        %v324 = vunpack.c.l.bf16 %v308
        %v325 = vunpack.c.l.bf16 %v309
        %v326 = vunpack.c.l.bf16 %v310
        %v327 = vadd.f32 %v311, %v319
        %v328 = vadd.f32 %v312, %v320
        %v329 = vadd.f32 %v313, %v321
        %v330 = vadd.f32 %v314, %v322
        %v331 = vadd.f32 %v315, %v323
        %v332 = vadd.f32 %v316, %v324
        %v333 = vadd.f32 %v317, %v325
        %v334 = vadd.f32 %v318, %v326
        %v335 = vpack.c.bf16 %v328, %v327
        %v336 = vpack.c.bf16 %v330, %v329
        %v337 = vpack.c.bf16 %v332, %v331
        %v338 = vpack.c.bf16 %v334, %v333
        %v339 = vld [vmem:[%s2] sm:$0xf]
        %v340 = vld [vmem:[%s2 + $0x4] sm:$0xf]
        %v341 = vld [vmem:[%s2 + $0x8] sm:$0xf]
        %v342 = vld [vmem:[%s2 + $0xc] sm:$0xf]
        %v343 = vld [vmem:[%s2 + $0x10] sm:$0xf]
        %v344 = vld [vmem:[%s2 + $0x14] sm:$0xf]
        %v345 = vld [vmem:[%s2 + $0x18] sm:$0xf]
        %v346 = vld [vmem:[%s2 + $0x1c] sm:$0xf]
        %v347 = vld [vmem:[%s2 + $0x20] sm:$0xf]
        %v348 = vld [vmem:[%s2 + $0x24] sm:$0xf]
        %v349 = vld [vmem:[%s2 + $0x28] sm:$0xf]
        %v350 = vld [vmem:[%s2 + $0x2c] sm:$0xf]
        %v351 = vld [vmem:[%s2 + $0x30] sm:$0xf]
        %v352 = vld [vmem:[%s2 + $0x34] sm:$0xf]
        %v353 = vld [vmem:[%s2 + $0x38] sm:$0xf]
        %v354 = vld [vmem:[%s2 + $0x3c] sm:$0xf]
        %v355 = vld [vmem:[%s3] sm:$0x1]
        %v357 = vperm.slane %v355, 0
        %v375 = vunpack.c.l.b16 %v339
        %v376 = vunpack.c.l.b16 %v340
        %v377 = vunpack.c.l.b16 %v341
        %v378 = vunpack.c.l.b16 %v342
        %v379 = vunpack.c.l.b16 %v343
        %v380 = vunpack.c.l.b16 %v344
        %v381 = vunpack.c.l.b16 %v345
        %v382 = vunpack.c.l.b16 %v346
        %v383 = vunpack.c.l.b16 %v347
        %v384 = vunpack.c.l.b16 %v348
        %v385 = vunpack.c.l.b16 %v349
        %v386 = vunpack.c.l.b16 %v350
        %v387 = vunpack.c.l.b16 %v351
        %v388 = vunpack.c.l.b16 %v352
        %v389 = vunpack.c.l.b16 %v353
        %v390 = vunpack.c.l.b16 %v354
        %v391 = vpack.c.b16 %v376, %v375
        %v392 = vpack.c.b16 %v378, %v377
        %v393 = vpack.c.b16 %v380, %v379
        %v394 = vpack.c.b16 %v382, %v381
        %v395 = vpack.c.b16 %v384, %v383
        %v396 = vpack.c.b16 %v386, %v385
        %v397 = vpack.c.b16 %v388, %v387
        %v398 = vpack.c.b16 %v390, %v389
        %407 = vmatpush.bf16.msra.mxu0 %v398
        %408 = vmatpush.bf16.msra.mxu0 %v397
        %409 = vmatpush.bf16.msra.mxu0 %v396
        %410 = vmatpush.bf16.msra.mxu0 %v395
        %411 = vmatpush.bf16.msra.mxu0 %v394
        %412 = vmatpush.bf16.msra.mxu0 %v393
        %413 = vmatpush.bf16.msra.mxu0 %v392
        %414 = vmatpush.bf16.msra.mxu0 %v391
        %415 = vmatmul.bf16.gmra.mxu0 %v335
        %v416 = vpop.f32.mrf.mxu0
        %v417 = vadd.f32 %v357, %v416
        %v418 = vpop.f32.mrf.mxu0
        %v419 = vadd.f32 %v357, %v418
        %420 = vmatmul.bf16.gmra.mxu0 %v336
        %v421 = vpop.f32.mrf.mxu0
        %v422 = vadd.f32 %v357, %v421
        %v423 = vpop.f32.mrf.mxu0
        %v424 = vadd.f32 %v357, %v423
        %425 = vmatmul.bf16.gmra.mxu0 %v337
        %v426 = vpop.f32.mrf.mxu0
        %v427 = vadd.f32 %v357, %v426
        %v428 = vpop.f32.mrf.mxu0
        %v429 = vadd.f32 %v357, %v428
        %430 = vmatmul.bf16.gmra.mxu0 %v338
        %v431 = vpop.f32.mrf.mxu0
        %v432 = vadd.f32 %v357, %v431
        %v433 = vpop.f32.mrf.mxu0
        %v434 = vadd.f32 %v357, %v433
        %435 = vdwg.mxu0
        %v436 = vmin.f32 %v417, 20.0
        %v437 = vmin.f32 %v419, 20.0
        %v438 = vmin.f32 %v422, 20.0
        %v439 = vmin.f32 %v424, 20.0
        %v440 = vmin.f32 %v427, 20.0
        %v441 = vmin.f32 %v429, 20.0
        %v442 = vmin.f32 %v432, 20.0
        %v443 = vmin.f32 %v434, 20.0
        %v444 = vmul.f32 %v436, 1.442695
        %v445 = vpow.pop %v444
        %v446 = vmul.f32 %v437, 1.442695
        %v447 = vpow.pop %v446
        %v448 = vmul.f32 %v438, 1.442695
        %v449 = vpow.pop %v448
        %v450 = vmul.f32 %v439, 1.442695
        %v451 = vpow.pop %v450
        %v452 = vmul.f32 %v440, 1.442695
        %v453 = vpow.pop %v452
        %v454 = vmul.f32 %v441, 1.442695
        %v455 = vpow.pop %v454
        %v456 = vmul.f32 %v442, 1.442695
        %v457 = vpow.pop %v456
        %v458 = vmul.f32 %v443, 1.442695
        %v459 = vpow.pop %v458
        %v460 = vadd.f32 %v445, 2.0
        %v461 = vadd.f32 %v447, 2.0
        %v462 = vadd.f32 %v449, 2.0
        %v463 = vadd.f32 %v451, 2.0
        %v464 = vadd.f32 %v453, 2.0
        %v465 = vadd.f32 %v455, 2.0
        %v466 = vadd.f32 %v457, 2.0
        %v467 = vadd.f32 %v459, 2.0
        %v468 = vmul.f32 %v445, %v460
        %v469 = vmul.f32 %v447, %v461
        %v470 = vmul.f32 %v449, %v462
        %v471 = vmul.f32 %v451, %v463
        %v472 = vmul.f32 %v453, %v464
        %v473 = vmul.f32 %v455, %v465
        %v474 = vmul.f32 %v457, %v466
        %v475 = vmul.f32 %v459, %v467
        %v476 = vadd.f32 %v468, 2.0
        %v477 = vadd.f32 %v469, 2.0
        %v478 = vadd.f32 %v470, 2.0
        %v479 = vadd.f32 %v471, 2.0
        %v480 = vadd.f32 %v472, 2.0
        %v481 = vadd.f32 %v473, 2.0
        %v482 = vadd.f32 %v474, 2.0
        %v483 = vadd.f32 %v475, 2.0
        %v484 = vrcp.pop %v476
        %v485 = vmul.f32 %v476, %v484
        %v486 = vsub.f32 1.0, %v485
        %v487 = vmul.f32 %v484, %v486
        %v488 = vadd.f32 %v484, %v487
        %vm489 = vweird.f32 %v476
        %vm490 = vweird.f32 %v484
        %vm491 = vmor %vm489, %vm490
        %v492 = vsel %vm491, %v484, %v488
        %v493 = vand.u32 2147483647, %v476
        %vm494 = vcmp.eq.f32.partialorder %v493, 8.507059e+37
        %v495 = vand.u32 %v476, 2147483648
        %v496 = vor.u32 1.1754944e-38, %v495
        %v497 = vsel %vm494, %v496, %v492
        %v498 = vmul.f32 %v468, %v497
        %v499 = vrcp.pop %v477
        %v500 = vmul.f32 %v477, %v499
        %v501 = vsub.f32 1.0, %v500
        %v502 = vmul.f32 %v499, %v501
        %v503 = vadd.f32 %v499, %v502
        %vm504 = vweird.f32 %v477
        %vm505 = vweird.f32 %v499
        %vm506 = vmor %vm504, %vm505
        %v507 = vsel %vm506, %v499, %v503
        %v508 = vand.u32 2147483647, %v477
        %vm509 = vcmp.eq.f32.partialorder %v508, 8.507059e+37
        %v510 = vand.u32 %v477, 2147483648
        %v511 = vor.u32 1.1754944e-38, %v510
        %v512 = vsel %vm509, %v511, %v507
        %v513 = vmul.f32 %v469, %v512
        %v514 = vrcp.pop %v478
        %v515 = vmul.f32 %v478, %v514
        %v516 = vsub.f32 1.0, %v515
        %v517 = vmul.f32 %v514, %v516
        %v518 = vadd.f32 %v514, %v517
        %vm519 = vweird.f32 %v478
        %vm520 = vweird.f32 %v514
        %vm521 = vmor %vm519, %vm520
        %v522 = vsel %vm521, %v514, %v518
        %v523 = vand.u32 2147483647, %v478
        %vm524 = vcmp.eq.f32.partialorder %v523, 8.507059e+37
        %v525 = vand.u32 %v478, 2147483648
        %v526 = vor.u32 1.1754944e-38, %v525
        %v527 = vsel %vm524, %v526, %v522
        %v528 = vmul.f32 %v470, %v527
        %v529 = vrcp.pop %v479
        %v530 = vmul.f32 %v479, %v529
        %v531 = vsub.f32 1.0, %v530
        %v532 = vmul.f32 %v529, %v531
        %v533 = vadd.f32 %v529, %v532
        %vm534 = vweird.f32 %v479
        %vm535 = vweird.f32 %v529
        %vm536 = vmor %vm534, %vm535
        %v537 = vsel %vm536, %v529, %v533
        %v538 = vand.u32 2147483647, %v479
        %vm539 = vcmp.eq.f32.partialorder %v538, 8.507059e+37
        %v540 = vand.u32 %v479, 2147483648
        %v541 = vor.u32 1.1754944e-38, %v540
        %v542 = vsel %vm539, %v541, %v537
        %v543 = vmul.f32 %v471, %v542
        %v544 = vrcp.pop %v480
        %v545 = vmul.f32 %v480, %v544
        %v546 = vsub.f32 1.0, %v545
        %v547 = vmul.f32 %v544, %v546
        %v548 = vadd.f32 %v544, %v547
        %vm549 = vweird.f32 %v480
        %vm550 = vweird.f32 %v544
        %vm551 = vmor %vm549, %vm550
        %v552 = vsel %vm551, %v544, %v548
        %v553 = vand.u32 2147483647, %v480
        %vm554 = vcmp.eq.f32.partialorder %v553, 8.507059e+37
        %v555 = vand.u32 %v480, 2147483648
        %v556 = vor.u32 1.1754944e-38, %v555
        %v557 = vsel %vm554, %v556, %v552
        %v558 = vmul.f32 %v472, %v557
        %v559 = vrcp.pop %v481
        %v560 = vmul.f32 %v481, %v559
        %v561 = vsub.f32 1.0, %v560
        %v562 = vmul.f32 %v559, %v561
        %v563 = vadd.f32 %v559, %v562
        %vm564 = vweird.f32 %v481
        %vm565 = vweird.f32 %v559
        %vm566 = vmor %vm564, %vm565
        %v567 = vsel %vm566, %v559, %v563
        %v568 = vand.u32 2147483647, %v481
        %vm569 = vcmp.eq.f32.partialorder %v568, 8.507059e+37
        %v570 = vand.u32 %v481, 2147483648
        %v571 = vor.u32 1.1754944e-38, %v570
        %v572 = vsel %vm569, %v571, %v567
        %v573 = vmul.f32 %v473, %v572
        %v574 = vrcp.pop %v482
        %v575 = vmul.f32 %v482, %v574
        %v576 = vsub.f32 1.0, %v575
        %v577 = vmul.f32 %v574, %v576
        %v578 = vadd.f32 %v574, %v577
        %vm579 = vweird.f32 %v482
        %vm580 = vweird.f32 %v574
        %vm581 = vmor %vm579, %vm580
        %v582 = vsel %vm581, %v574, %v578
        %v583 = vand.u32 2147483647, %v482
        %vm584 = vcmp.eq.f32.partialorder %v583, 8.507059e+37
        %v585 = vand.u32 %v482, 2147483648
        %v586 = vor.u32 1.1754944e-38, %v585
        %v587 = vsel %vm584, %v586, %v582
        %v588 = vmul.f32 %v474, %v587
        %v589 = vrcp.pop %v483
        %v590 = vmul.f32 %v483, %v589
        %v591 = vsub.f32 1.0, %v590
        %v592 = vmul.f32 %v589, %v591
        %v593 = vadd.f32 %v589, %v592
        %vm594 = vweird.f32 %v483
        %vm595 = vweird.f32 %v589
        %vm596 = vmor %vm594, %vm595
        %v597 = vsel %vm596, %v589, %v593
        %v598 = vand.u32 2147483647, %v483
        %vm599 = vcmp.eq.f32.partialorder %v598, 8.507059e+37
        %v600 = vand.u32 %v483, 2147483648
        %v601 = vor.u32 1.1754944e-38, %v600
        %v602 = vsel %vm599, %v601, %v597
        %v603 = vmul.f32 %v475, %v602
        %v604 = vmul.f32 %v417, %v498
        %v605 = vmul.f32 %v419, %v513
        %v606 = vmul.f32 %v422, %v528
        %v607 = vmul.f32 %v424, %v543
        %v608 = vmul.f32 %v427, %v558
        %v609 = vmul.f32 %v429, %v573
        %v610 = vmul.f32 %v432, %v588
        %v611 = vmul.f32 %v434, %v603
        %v612 = vpack.c.bf16 %v604, %v604
        %v613 = vpack.c.bf16 %v605, %v605
        %v614 = vpack.c.bf16 %v606, %v606
        %v615 = vpack.c.bf16 %v607, %v607
        %v616 = vpack.c.bf16 %v608, %v608
        %v617 = vpack.c.bf16 %v609, %v609
        %v618 = vpack.c.bf16 %v610, %v610
        %v619 = vpack.c.bf16 %v611, %v611
        %620 = vst [vmem:[%s293] sm:$0xf] %v612
        %621 = vst [vmem:[%s293 + $0x4] sm:$0xf] %v613
        %622 = vst [vmem:[%s293 + $0x8] sm:$0xf] %v614
        %623 = vst [vmem:[%s293 + $0xc] sm:$0xf] %v615
        %624 = vst [vmem:[%s293 + $0x10] sm:$0xf] %v616
        %625 = vst [vmem:[%s293 + $0x14] sm:$0xf] %v617
        %626 = vst [vmem:[%s293 + $0x18] sm:$0xf] %v618
        %627 = vst [vmem:[%s293 + $0x1c] sm:$0xf] %v619
        %s628 = smul.u32 8, %s15
        %p629 = scmp.lt.s32.totalorder %s628, 15
        %s630 = scalar_select %p629, %s628, 15
        %s631 = smul.addr %s630, 4
        %s632 = scalar_lea.vmem %s4, %s631
        // Predicated region
        $region78: #{resblock_body_forward.10} parent=72 // pred_check
          %p633 = pneg %p127
        $region79: #{resblock_body_forward.10} parent=72 // pred_check_branch
          %635 = sbr.rel (%p633) target = $region81
        $region80: #{resblock_body_forward.10} parent=72 // pred_region
          %s636 = smul.u32 8, %s15
        $region81: #{resblock_body_forward.10} parent=72 // pred_fallthru
          _
      $region73: #{resblock_body_forward.10} parent=5 // pred_fallthru
        _
      %p637 = scmp.le.s32.totalorder 2, %s10
      // Predicated region
      $region82: #{resblock_body_forward.10} parent=5 // pred_check
        %p638 = pneg %p637
      $region83: #{resblock_body_forward.10} parent=5 // pred_check_branch
        %640 = sbr.rel (%p638) target = $region85
      $region84: #{resblock_body_forward.10} parent=5 // pred_region
        %s641 = ssub.s32 %s10, 2
        // Predicated region
        $region86: #{resblock_body_forward.10} parent=84 // pred_check
          %p642 = pneg %p133
        $region87: #{resblock_body_forward.10} parent=84 // pred_check_branch
          %644 = sbr.rel (%p642) target = $region89
        $region88: #{resblock_body_forward.10} parent=84 // pred_region
          %s645 = smul.u32 8, %s16
          %p646 = scmp.lt.s32.totalorder %s645, 15
          %s647 = scalar_select %p646, %s645, 15
          %s648 = smul.addr %s647, 4
          %s649 = scalar_lea.vmem %s4, %s648
        $region89: #{resblock_body_forward.10} parent=84 // pred_fallthru
          _
      $region85: #{resblock_body_forward.10} parent=5 // pred_fallthru
        _
    $region6: #{resblock_body_forward.10} parent=1 // loop_footer
      %s14 = sadd.s32 1, %s10
    $region7: #{resblock_body_forward.10} parent=1 // loop_footer_branch
      %9 = sbr.rel target = $region3
    $region8: #{resblock_body_forward.10} parent=1 // loop_exit
      _

// kernel: resblock_body_forward.11
$region0: #{resblock_body_forward.11}
  #allocation0 [shape = 'u32[]', space=smem, size = 0x4, offset = 0x4, fixed_abs, tag = 'smem constant byte address 0x4 - core index']
  #allocation1 [shape = 'u32[72,128]{1,0:T(1,128)}', space=vmem, size = 0x9000, scoped, tag = 'internal scratch']
  %s0 = inlined_call_operand.vmem [shape: bf16[128,128], index: 0, kind: input, shape index: {}]
  %s1 = inlined_call_operand.vmem [shape: bf16[128,256], index: 1, kind: input, shape index: {}]
  %s2 = inlined_call_operand.vmem [shape: bf16[2,128,128], index: 2, kind: input, shape index: {}]
  %s3 = inlined_call_operand.vmem [shape: f32[1,128], index: 3, kind: input, shape index: {}]
  %s4 = inlined_call_operand.vmem [shape: bf16[128,128], index: 4, kind: output, shape index: {}]
  %s5 = sld [smem:[#allocation0]]
  $region90: #{resblock_body_forward.11} parent=0
    _
  %s7 = ssub.s32 1, %s5
  %s8 = scalar_select 0, %s7, %s5
  $region1: #{resblock_body_forward.11} parent=0
    #allocation2 [shape = 'u8[32768]{0}', space=vmem, size = 0x8000, scoped, tag = 'input window, operand 1']
    loop: start=0, step=1, limit=4
    $region2: #{resblock_body_forward.11} parent=1 // loop_pre_header
      _
    $region3: #{resblock_body_forward.11} parent=1 // loop_header
      %s10 = sphi 0, %s14
      %p11 = scmp.ge.s32.totalorder %s10, 4
      %s20 = sphi 0, %s22
      %s23 = sphi 0, %s20
      %s24 = sphi 0, %s23
      %s40 = sphi 0, %s24
      %s46 = sphi 0, %s48
      %s49 = sphi 0, %s46
      %s50 = sphi 0, %s49
      %s66 = sphi 0, %s50
      %s70 = sphi 0, %s70
      %s72 = sphi 0, %s70
      %s73 = sphi 0, %s72
      %s87 = sphi 0, %s73
      %s91 = sphi 0, %s91
      %s93 = sphi 0, %s91
      %s94 = sphi 0, %s93
      %s108 = sphi 0, %s94
      %s114 = sphi 0, %s116
      %s117 = sphi 0, %s114
      %s118 = sphi 0, %s117
      %s134 = sphi 0, %s118
    $region4: #{resblock_body_forward.11} parent=1 // loop_header_branch
      %13 = sbr.rel (%p11) target = $region8
    $region5: #{resblock_body_forward.11} parent=1 // loop_body
      %s15 = ssub.s32 %s10, 1
      %s16 = ssub.s32 %s10, 2
      %s17 = sadd.s32 %s10, 1
      %s18 = ssub.s32 %s10, %s17
      %p19 = scmp.eq.s32.totalorder %s18, 0
      %s21 = sadd.s32 %s20, 1
      %s22 = scalar_select %p19, %s20, %s21
      %p25 = pneg %p19
      %p26 = scmp.eq.s32.totalorder %s10, 1
      %p27 = por %p25, %p26
      %p28 = scmp.ne.s32.totalorder %s20, %s23
      %p29 = scmp.eq.s32.totalorder %s10, 0
      %p30 = por %p28, %p29
      %p31 = scmp.ne.s32.totalorder %s20, %s23
      %p32 = scmp.eq.s32.totalorder %s15, 1
      %p33 = por %p31, %p32
      %p34 = scmp.ne.s32.totalorder %s23, %s24
      %p35 = scmp.eq.s32.totalorder %s15, 0
      %p36 = por %p34, %p35
      %p37 = scmp.ne.s32.totalorder %s23, %s24
      %p38 = scmp.eq.s32.totalorder %s16, 1
      %p39 = por %p37, %p38
      %p41 = scmp.ne.s32.totalorder %s24, %s40
      %p42 = scmp.eq.s32.totalorder %s16, 0
      %p43 = por %p41, %p42
      %s44 = ssub.s32 %s10, %s17
      %p45 = scmp.eq.s32.totalorder %s44, 0
      %s47 = sadd.s32 %s46, 1
      %s48 = scalar_select %p45, %s46, %s47
      %p51 = pneg %p45
      %p52 = scmp.eq.s32.totalorder %s10, 1
      %p53 = por %p51, %p52
      %p54 = scmp.ne.s32.totalorder %s46, %s49
      %p55 = scmp.eq.s32.totalorder %s10, 0
      %p56 = por %p54, %p55
      %p57 = scmp.ne.s32.totalorder %s46, %s49
      %p58 = scmp.eq.s32.totalorder %s15, 1
      %p59 = por %p57, %p58
      %p60 = scmp.ne.s32.totalorder %s49, %s50
      %p61 = scmp.eq.s32.totalorder %s15, 0
      %p62 = por %p60, %p61
      %p63 = scmp.ne.s32.totalorder %s49, %s50
      %p64 = scmp.eq.s32.totalorder %s16, 1
      %p65 = por %p63, %p64
      %p67 = scmp.ne.s32.totalorder %s50, %s66
      %p68 = scmp.eq.s32.totalorder %s16, 0
      %p69 = por %p67, %p68
      %s71 = sadd.s32 %s70, 1
      %p74 = scmp.eq.s32.totalorder %s10, 1
      %p75 = scmp.ne.s32.totalorder %s70, %s72
      %p76 = scmp.eq.s32.totalorder %s10, 0
      %p77 = por %p75, %p76
      %p78 = scmp.ne.s32.totalorder %s70, %s72
      %p79 = scmp.eq.s32.totalorder %s15, 1
      %p80 = por %p78, %p79
      %p81 = scmp.ne.s32.totalorder %s72, %s73
      %p82 = scmp.eq.s32.totalorder %s15, 0
      %p83 = por %p81, %p82
      %p84 = scmp.ne.s32.totalorder %s72, %s73
      %p85 = scmp.eq.s32.totalorder %s16, 1
      %p86 = por %p84, %p85
      %p88 = scmp.ne.s32.totalorder %s73, %s87
      %p89 = scmp.eq.s32.totalorder %s16, 0
      %p90 = por %p88, %p89
      %s92 = sadd.s32 %s91, 1
      %p95 = scmp.eq.s32.totalorder %s10, 1
      %p96 = scmp.ne.s32.totalorder %s91, %s93
      %p97 = scmp.eq.s32.totalorder %s10, 0
      %p98 = por %p96, %p97
      %p99 = scmp.ne.s32.totalorder %s91, %s93
      %p100 = scmp.eq.s32.totalorder %s15, 1
      %p101 = por %p99, %p100
      %p102 = scmp.ne.s32.totalorder %s93, %s94
      %p103 = scmp.eq.s32.totalorder %s15, 0
      %p104 = por %p102, %p103
      %p105 = scmp.ne.s32.totalorder %s93, %s94
      %p106 = scmp.eq.s32.totalorder %s16, 1
      %p107 = por %p105, %p106
      %p109 = scmp.ne.s32.totalorder %s94, %s108
      %p110 = scmp.eq.s32.totalorder %s16, 0
      %p111 = por %p109, %p110
      %s112 = ssub.s32 %s10, %s17
      %p113 = scmp.eq.s32.totalorder %s112, 0
      %s115 = sadd.s32 %s114, 1
      %s116 = scalar_select %p113, %s114, %s115
      %p119 = pneg %p113
      %p120 = scmp.eq.s32.totalorder %s10, 1
      %p121 = por %p119, %p120
      %p122 = scmp.ne.s32.totalorder %s114, %s117
      %p123 = scmp.eq.s32.totalorder %s10, 0
      %p124 = por %p122, %p123
      %p125 = scmp.ne.s32.totalorder %s114, %s117
      %p126 = scmp.eq.s32.totalorder %s15, 1
      %p127 = por %p125, %p126
      %p128 = scmp.ne.s32.totalorder %s117, %s118
      %p129 = scmp.eq.s32.totalorder %s15, 0
      %p130 = por %p128, %p129
      %p131 = scmp.ne.s32.totalorder %s117, %s118
      %p132 = scmp.eq.s32.totalorder %s16, 1
      %p133 = por %p131, %p132
      %p135 = scmp.ne.s32.totalorder %s118, %s134
      %p136 = scmp.eq.s32.totalorder %s16, 0
      %p137 = por %p135, %p136
      %p138 = scmp.le.s32.totalorder 1, %s10
      %p139 = scmp.lt.s32.totalorder %s10, 3
      %p140 = pnand %p138, %p139
      %p141 = pneg %p140
      // Predicated region
      $region9: #{resblock_body_forward.11} parent=5 // pred_check
        _
      $region10: #{resblock_body_forward.11} parent=5 // pred_check_branch
        %143 = sbr.rel (%p140) target = $region12
      $region11: #{resblock_body_forward.11} parent=5 // pred_region
        %s144 = ssub.s32 %s10, 1
        // Predicated region
        $region13: #{resblock_body_forward.11} parent=11 // pred_check
          %p145 = pneg %p83
        $region14: #{resblock_body_forward.11} parent=11 // pred_check_branch
          %147 = sbr.rel (%p145) target = $region16
        $region15: #{resblock_body_forward.11} parent=11 // pred_region
          _
        $region16: #{resblock_body_forward.11} parent=11 // pred_fallthru
          _
        // Predicated region
        $region17: #{resblock_body_forward.11} parent=11 // pred_check
          %p148 = pneg %p104
        $region18: #{resblock_body_forward.11} parent=11 // pred_check_branch
          %150 = sbr.rel (%p148) target = $region20
        $region19: #{resblock_body_forward.11} parent=11 // pred_region
          _
        $region20: #{resblock_body_forward.11} parent=11 // pred_fallthru
          _
      $region12: #{resblock_body_forward.11} parent=5 // pred_fallthru
        _
      %p151 = scmp.lt.s32.totalorder %s10, 2
      // Predicated region
      $region21: #{resblock_body_forward.11} parent=5 // pred_check
        %p152 = pneg %p151
      $region22: #{resblock_body_forward.11} parent=5 // pred_check_branch
        %154 = sbr.rel (%p152) target = $region24
      $region23: #{resblock_body_forward.11} parent=5 // pred_region
        // Predicated region
        $region25: #{resblock_body_forward.11} parent=23 // pred_check
          %p155 = pneg %p30
        $region26: #{resblock_body_forward.11} parent=23 // pred_check_branch
          %157 = sbr.rel (%p155) target = $region28
        $region27: #{resblock_body_forward.11} parent=23 // pred_region
          %s158 = smul.u32 8, %s10
          %p159 = scmp.lt.s32.totalorder %s158, 15
          %s160 = scalar_select %p159, %s158, 15
          %s161 = smul.addr %s160, 4
          %s162 = scalar_lea.vmem %s0, %s161
          %s163 = smul.u32 8, %s10
        $region28: #{resblock_body_forward.11} parent=23 // pred_fallthru
          _
        // Predicated region
        $region29: #{resblock_body_forward.11} parent=23 // pred_check
          %p164 = pneg %p56
        $region30: #{resblock_body_forward.11} parent=23 // pred_check_branch
          %166 = sbr.rel (%p164) target = $region32
        $region31: #{resblock_body_forward.11} parent=23 // pred_region
          %s167 = sand.u32 %s46, 1
          %s168 = sand.u32 %s46, 1
          %s169 = smul.addr %s168, 32
          %s170 = scalar_lea.vmem [#allocation2], %s169
          %s171 = smul.u32 8, %s10
          %s172 = smul.addr %s171, 2
          %s173 = sadd.s32 1, %s172
          %s174 = smul.addr %s173, 4
          %s175 = scalar_lea.vmem %s1, %s174
          // Predicated region
          $region33: #{resblock_body_forward.11} parent=31 // pred_check
            _
          $region34: #{resblock_body_forward.11} parent=31 // pred_check_branch
            %177 = sbr.rel (0) target = $region36
          $region35: #{resblock_body_forward.11} parent=31 // pred_region
            // Predicated region
            $region37: #{resblock_body_forward.11} parent=35 // pred_check
              _
            $region38: #{resblock_body_forward.11} parent=35 // pred_check_branch
              %179 = sbr.rel target = $region40
            $region39: #{resblock_body_forward.11} parent=35 // pred_region
              // Predicated region
              $region52: #{resblock_body_forward.11} parent=39 // pred_check
                _
              $region53: #{resblock_body_forward.11} parent=39 // pred_check_branch
                %209 = sbr.rel (0) target = $region55
              $region54: #{resblock_body_forward.11} parent=39 // pred_region
                loop: start=0, step=1, limit=1
                $region56: #{resblock_body_forward.11} parent=54 // loop_pre_header
                  _
                $region57: #{resblock_body_forward.11} parent=54 // loop_header
                  %s211 = sphi 0, %s215
                  %p212 = scmp.ge.s32.totalorder %s211, 1
                  %s216 = sphi %s175, %s175
                  %s217 = sphi %s170, %s170
                $region58: #{resblock_body_forward.11} parent=54 // loop_header_branch
                  %214 = sbr.rel (%p212) target = $region62
                $region59: #{resblock_body_forward.11} parent=54 // loop_body
                  _
                $region60: #{resblock_body_forward.11} parent=54 // loop_footer
                  %s215 = sadd.s32 1, %s211
                $region61: #{resblock_body_forward.11} parent=54 // loop_footer_branch
                  %210 = sbr.rel target = $region57
                $region62: #{resblock_body_forward.11} parent=54 // loop_exit
                  _
                %s219 = ssub.s32 16, 1
                loop: start=0, step=1, limit=1
                $region63: #{resblock_body_forward.11} parent=54 // loop_pre_header
                  _
                $region64: #{resblock_body_forward.11} parent=54 // loop_header
                  %s221 = sphi 0, %s225
                  %p222 = scmp.ge.s32.totalorder %s221, 1
                  %s226 = sphi %s175, %s175
                  %s227 = sphi %s170, %s170
                $region65: #{resblock_body_forward.11} parent=54 // loop_header_branch
                  %224 = sbr.rel (%p222) target = $region69
                $region66: #{resblock_body_forward.11} parent=54 // loop_body
                  %v228 = vld [vmem:[%s226] sm:%s219]
                  %229 = vst [vmem:[%s227] sm:%s219] %v228
                  %v230 = vld [vmem:[%s226 + $0x8] sm:%s219]
                  %231 = vst [vmem:[%s227 + $0x4] sm:%s219] %v230
                  %v232 = vld [vmem:[%s226 + $0x10] sm:%s219]
                  %233 = vst [vmem:[%s227 + $0x8] sm:%s219] %v232
                  %v234 = vld [vmem:[%s226 + $0x18] sm:%s219]
                  %235 = vst [vmem:[%s227 + $0xc] sm:%s219] %v234
                  %v236 = vld [vmem:[%s226 + $0x20] sm:%s219]
                  %237 = vst [vmem:[%s227 + $0x10] sm:%s219] %v236
                  %v238 = vld [vmem:[%s226 + $0x28] sm:%s219]
                  %239 = vst [vmem:[%s227 + $0x14] sm:%s219] %v238
                  %v240 = vld [vmem:[%s226 + $0x30] sm:%s219]
                  %241 = vst [vmem:[%s227 + $0x18] sm:%s219] %v240
                  %v242 = vld [vmem:[%s226 + $0x38] sm:%s219]
                  %243 = vst [vmem:[%s227 + $0x1c] sm:%s219] %v242
                $region67: #{resblock_body_forward.11} parent=54 // loop_footer
                  %s225 = sadd.s32 1, %s221
                $region68: #{resblock_body_forward.11} parent=54 // loop_footer_branch
                  %220 = sbr.rel target = $region64
                $region69: #{resblock_body_forward.11} parent=54 // loop_exit
                  _
              $region55: #{resblock_body_forward.11} parent=39 // pred_fallthru
                _
            $region40: #{resblock_body_forward.11} parent=35 // pred_fallthru
              _
            // Predicated region
            $region41: #{resblock_body_forward.11} parent=35 // pred_check
              _
            $region42: #{resblock_body_forward.11} parent=35 // pred_check_branch
              %181 = sbr.rel (0) target = $region44
            $region43: #{resblock_body_forward.11} parent=35 // pred_region
              %s183 = ssub.s32 16, 1
              loop: start=0, step=1, limit=1
              $region45: #{resblock_body_forward.11} parent=43 // loop_pre_header
                _
              $region46: #{resblock_body_forward.11} parent=43 // loop_header
                %s185 = sphi 0, %s189
                %p186 = scmp.ge.s32.totalorder %s185, 1
                %s190 = sphi %s175, %s175
                %s191 = sphi %s170, %s170
              $region47: #{resblock_body_forward.11} parent=43 // loop_header_branch
                %188 = sbr.rel (%p186) target = $region51
              $region48: #{resblock_body_forward.11} parent=43 // loop_body
                %v192 = vld [vmem:[%s190] sm:%s183]
                %193 = vst [vmem:[%s191] sm:%s183] %v192
                %v194 = vld [vmem:[%s190 + $0x8] sm:%s183]
                %195 = vst [vmem:[%s191 + $0x4] sm:%s183] %v194
                %v196 = vld [vmem:[%s190 + $0x10] sm:%s183]
                %197 = vst [vmem:[%s191 + $0x8] sm:%s183] %v196
                %v198 = vld [vmem:[%s190 + $0x18] sm:%s183]
                %199 = vst [vmem:[%s191 + $0xc] sm:%s183] %v198
                %v200 = vld [vmem:[%s190 + $0x20] sm:%s183]
                %201 = vst [vmem:[%s191 + $0x10] sm:%s183] %v200
                %v202 = vld [vmem:[%s190 + $0x28] sm:%s183]
                %203 = vst [vmem:[%s191 + $0x14] sm:%s183] %v202
                %v204 = vld [vmem:[%s190 + $0x30] sm:%s183]
                %205 = vst [vmem:[%s191 + $0x18] sm:%s183] %v204
                %v206 = vld [vmem:[%s190 + $0x38] sm:%s183]
                %207 = vst [vmem:[%s191 + $0x1c] sm:%s183] %v206
              $region49: #{resblock_body_forward.11} parent=43 // loop_footer
                %s189 = sadd.s32 1, %s185
              $region50: #{resblock_body_forward.11} parent=43 // loop_footer_branch
                %184 = sbr.rel target = $region46
              $region51: #{resblock_body_forward.11} parent=43 // loop_exit
                _
            $region44: #{resblock_body_forward.11} parent=35 // pred_fallthru
              _
          $region36: #{resblock_body_forward.11} parent=31 // pred_fallthru
            _
          %244 = vnop
        $region32: #{resblock_body_forward.11} parent=23 // pred_fallthru
          _
      $region24: #{resblock_body_forward.11} parent=5 // pred_fallthru
        _
      %p245 = scmp.le.s32.totalorder 1, %s10
      %p246 = scmp.lt.s32.totalorder %s10, 3
      %p247 = pnand %p245, %p246
      %p248 = pneg %p247
      // Predicated region
      $region70: #{resblock_body_forward.11} parent=5 // pred_check
        _
      $region71: #{resblock_body_forward.11} parent=5 // pred_check_branch
        %250 = sbr.rel (%p247) target = $region73
      $region72: #{resblock_body_forward.11} parent=5 // pred_region
        %s251 = ssub.s32 %s10, 1
        %s252 = sand.u32 %s49, 1
        %s253 = sand.u32 %s49, 1
        %s254 = smul.addr %s253, 32
        %s255 = scalar_lea.vmem [#allocation2], %s254
        // Predicated region
        $region74: #{resblock_body_forward.11} parent=72 // pred_check
          %p256 = pneg %p62
        $region75: #{resblock_body_forward.11} parent=72 // pred_check_branch
          %258 = sbr.rel (%p256) target = $region77
        $region76: #{resblock_body_forward.11} parent=72 // pred_region
          _
        $region77: #{resblock_body_forward.11} parent=72 // pred_fallthru
          _
        %s259 = smul.u32 8, %s15
        %p260 = scmp.lt.s32.totalorder %s259, 15
        %s261 = scalar_select %p260, %s259, 15
        %s262 = smul.addr %s261, 4
        %s263 = scalar_lea.vmem %s0, %s262
        %p264 = pneg %p36
        %p265 = pneg %p33
        %s266 = sand.u32 %s49, 1
        %s267 = sand.u32 %s49, 1
        %s268 = smul.addr %s267, 32
        %s269 = scalar_lea.vmem [#allocation2], %s268
        %p270 = pneg %p62
        %p271 = pneg %p59
        %p272 = pneg %p83
        %p273 = pneg %p80
        %p274 = pneg %p104
        %p275 = pneg %p101
        %p276 = pneg %p130
        %p277 = pneg %p127
        %s278 = smul.u32 8, %s15
        %p279 = scmp.lt.s32.totalorder %s278, 15
        %s280 = scalar_select %p279, %s278, 15
        %s281 = smul.addr %s280, 4
        %s282 = scalar_lea.vmem %s4, %s281
        %s283 = smul.u32 8, %s15
        %p284 = scmp.lt.s32.totalorder %s283, 15
        %s285 = scalar_select %p284, %s283, 15
        %s286 = smul.addr %s285, 4
        %s287 = scalar_lea.vmem %s0, %s286
        %s288 = smul.u32 8, %s15
        %s289 = smul.u32 8, %s15
        %s290 = smul.u32 8, %s15
        %p291 = scmp.lt.s32.totalorder %s290, 15
        %s292 = scalar_select %p291, %s290, 15
        %s293 = smul.addr %s292, 4
        %s294 = scalar_lea.vmem %s4, %s293
        %s295 = smul.u32 8, %s15
        %v296 = vld [vmem:[%s287] sm:$0xf]
        %v297 = vld [vmem:[%s287 + $0x4] sm:$0xf]
        %v298 = vld [vmem:[%s287 + $0x8] sm:$0xf]
        %v299 = vld [vmem:[%s287 + $0xc] sm:$0xf]
        %v300 = vld [vmem:[%s287 + $0x10] sm:$0xf]
        %v301 = vld [vmem:[%s287 + $0x14] sm:$0xf]
        %v302 = vld [vmem:[%s287 + $0x18] sm:$0xf]
        %v303 = vld [vmem:[%s287 + $0x1c] sm:$0xf]
        %v304 = vld [vmem:[%s2] sm:$0xf]
        %v305 = vld [vmem:[%s2 + $0x4] sm:$0xf]
        %v306 = vld [vmem:[%s2 + $0x8] sm:$0xf]
        %v307 = vld [vmem:[%s2 + $0xc] sm:$0xf]
        %v308 = vld [vmem:[%s2 + $0x10] sm:$0xf]
        %v309 = vld [vmem:[%s2 + $0x14] sm:$0xf]
        %v310 = vld [vmem:[%s2 + $0x18] sm:$0xf]
        %v311 = vld [vmem:[%s2 + $0x1c] sm:$0xf]
        %v312 = vld [vmem:[%s2 + $0x20] sm:$0xf]
        %v313 = vld [vmem:[%s2 + $0x24] sm:$0xf]
        %v314 = vld [vmem:[%s2 + $0x28] sm:$0xf]
        %v315 = vld [vmem:[%s2 + $0x2c] sm:$0xf]
        %v316 = vld [vmem:[%s2 + $0x30] sm:$0xf]
        %v317 = vld [vmem:[%s2 + $0x34] sm:$0xf]
        %v318 = vld [vmem:[%s2 + $0x38] sm:$0xf]
        %v319 = vld [vmem:[%s2 + $0x3c] sm:$0xf]
        %v320 = vld [vmem:[%s255] sm:$0xf]
        %v321 = vld [vmem:[%s255 + $0x4] sm:$0xf]
        %v322 = vld [vmem:[%s255 + $0x8] sm:$0xf]
        %v323 = vld [vmem:[%s255 + $0xc] sm:$0xf]
        %v324 = vld [vmem:[%s255 + $0x10] sm:$0xf]
        %v325 = vld [vmem:[%s255 + $0x14] sm:$0xf]
        %v326 = vld [vmem:[%s255 + $0x18] sm:$0xf]
        %v327 = vld [vmem:[%s255 + $0x1c] sm:$0xf]
        %s328 = scalar_lea.vmem %s2, 64
        %v329 = vld [vmem:[%s328] sm:$0xf]
        %v330 = vld [vmem:[%s328 + $0x4] sm:$0xf]
        %v331 = vld [vmem:[%s328 + $0x8] sm:$0xf]
        %v332 = vld [vmem:[%s328 + $0xc] sm:$0xf]
        %v333 = vld [vmem:[%s328 + $0x10] sm:$0xf]
        %v334 = vld [vmem:[%s328 + $0x14] sm:$0xf]
        %v335 = vld [vmem:[%s328 + $0x18] sm:$0xf]
        %v336 = vld [vmem:[%s328 + $0x1c] sm:$0xf]
        %v337 = vld [vmem:[%s328 + $0x20] sm:$0xf]
        %v338 = vld [vmem:[%s328 + $0x24] sm:$0xf]
        %v339 = vld [vmem:[%s328 + $0x28] sm:$0xf]
        %v340 = vld [vmem:[%s328 + $0x2c] sm:$0xf]
        %v341 = vld [vmem:[%s328 + $0x30] sm:$0xf]
        %v342 = vld [vmem:[%s328 + $0x34] sm:$0xf]
        %v343 = vld [vmem:[%s328 + $0x38] sm:$0xf]
        %v344 = vld [vmem:[%s328 + $0x3c] sm:$0xf]
        %v353 = vunpack.c.l.b16 %v320
        %v354 = vunpack.c.l.b16 %v321
        %v355 = vunpack.c.l.b16 %v322
        %v356 = vunpack.c.l.b16 %v323
        %v357 = vunpack.c.l.b16 %v324
        %v358 = vunpack.c.l.b16 %v325
        %v359 = vunpack.c.l.b16 %v326
        %v360 = vunpack.c.l.b16 %v327
        %v361 = vpack.c.b16 %v354, %v353
        %v362 = vpack.c.b16 %v356, %v355
        %v363 = vpack.c.b16 %v358, %v357
        %v364 = vpack.c.b16 %v360, %v359
        %v385 = vunpack.c.l.b16 %v329
        %v386 = vunpack.c.l.b16 %v330
        %v387 = vunpack.c.l.b16 %v331
        %v388 = vunpack.c.l.b16 %v332
        %v389 = vunpack.c.l.b16 %v333
        %v390 = vunpack.c.l.b16 %v334
        %v391 = vunpack.c.l.b16 %v335
        %v392 = vunpack.c.l.b16 %v336
        %v393 = vunpack.c.l.b16 %v337
        %v394 = vunpack.c.l.b16 %v338
        %v395 = vunpack.c.l.b16 %v339
        %v396 = vunpack.c.l.b16 %v340
        %v397 = vunpack.c.l.b16 %v341
        %v398 = vunpack.c.l.b16 %v342
        %v399 = vunpack.c.l.b16 %v343
        %v400 = vunpack.c.l.b16 %v344
        %v401 = vpack.c.b16 %v386, %v385
        %v402 = vpack.c.b16 %v388, %v387
        %v403 = vpack.c.b16 %v390, %v389
        %v404 = vpack.c.b16 %v392, %v391
        %v405 = vpack.c.b16 %v394, %v393
        %v406 = vpack.c.b16 %v396, %v395
        %v407 = vpack.c.b16 %v398, %v397
        %v408 = vpack.c.b16 %v400, %v399
        %417 = vmatpush.bf16.msra.mxu0 %v408
        %418 = vmatpush.bf16.msra.mxu0 %v407
        %419 = vmatpush.bf16.msra.mxu0 %v406
        %420 = vmatpush.bf16.msra.mxu0 %v405
        %421 = vmatpush.bf16.msra.mxu0 %v404
        %422 = vmatpush.bf16.msra.mxu0 %v403
        %423 = vmatpush.bf16.msra.mxu0 %v402
        %424 = vmatpush.bf16.msra.mxu0 %v401
        %425 = vmatmul.bf16.gmra.mxu0 %v361
        %v426 = vpop.f32.mrf.mxu0
        %v427 = vadd.f32 0.0, %v426
        %v428 = vpop.f32.mrf.mxu0
        %v429 = vadd.f32 0.0, %v428
        %430 = vmatmul.bf16.gmra.mxu0 %v362
        %v431 = vpop.f32.mrf.mxu0
        %v432 = vadd.f32 0.0, %v431
        %v433 = vpop.f32.mrf.mxu0
        %v434 = vadd.f32 0.0, %v433
        %435 = vmatmul.bf16.gmra.mxu0 %v363
        %v436 = vpop.f32.mrf.mxu0
        %v437 = vadd.f32 0.0, %v436
        %v438 = vpop.f32.mrf.mxu0
        %v439 = vadd.f32 0.0, %v438
        %440 = vmatmul.bf16.gmra.mxu0 %v364
        %v441 = vpop.f32.mrf.mxu0
        %v442 = vadd.f32 0.0, %v441
        %v443 = vpop.f32.mrf.mxu0
        %v444 = vadd.f32 0.0, %v443
        %445 = vdwg.mxu0
        %v454 = vunpack.c.l.b16 %v296
        %v455 = vunpack.c.l.b16 %v297
        %v456 = vunpack.c.l.b16 %v298
        %v457 = vunpack.c.l.b16 %v299
        %v458 = vunpack.c.l.b16 %v300
        %v459 = vunpack.c.l.b16 %v301
        %v460 = vunpack.c.l.b16 %v302
        %v461 = vunpack.c.l.b16 %v303
        %v462 = vpack.c.b16 %v455, %v454
        %v463 = vpack.c.b16 %v457, %v456
        %v464 = vpack.c.b16 %v459, %v458
        %v465 = vpack.c.b16 %v461, %v460
        %v486 = vunpack.c.l.b16 %v304
        %v487 = vunpack.c.l.b16 %v305
        %v488 = vunpack.c.l.b16 %v306
        %v489 = vunpack.c.l.b16 %v307
        %v490 = vunpack.c.l.b16 %v308
        %v491 = vunpack.c.l.b16 %v309
        %v492 = vunpack.c.l.b16 %v310
        %v493 = vunpack.c.l.b16 %v311
        %v494 = vunpack.c.l.b16 %v312
        %v495 = vunpack.c.l.b16 %v313
        %v496 = vunpack.c.l.b16 %v314
        %v497 = vunpack.c.l.b16 %v315
        %v498 = vunpack.c.l.b16 %v316
        %v499 = vunpack.c.l.b16 %v317
        %v500 = vunpack.c.l.b16 %v318
        %v501 = vunpack.c.l.b16 %v319
        %v502 = vpack.c.b16 %v487, %v486
        %v503 = vpack.c.b16 %v489, %v488
        %v504 = vpack.c.b16 %v491, %v490
        %v505 = vpack.c.b16 %v493, %v492
        %v506 = vpack.c.b16 %v495, %v494
        %v507 = vpack.c.b16 %v497, %v496
        %v508 = vpack.c.b16 %v499, %v498
        %v509 = vpack.c.b16 %v501, %v500
        %518 = vmatpush.bf16.msra.mxu0 %v509
        %519 = vmatpush.bf16.msra.mxu0 %v508
        %520 = vmatpush.bf16.msra.mxu0 %v507
        %521 = vmatpush.bf16.msra.mxu0 %v506
        %522 = vmatpush.bf16.msra.mxu0 %v505
        %523 = vmatpush.bf16.msra.mxu0 %v504
        %524 = vmatpush.bf16.msra.mxu0 %v503
        %525 = vmatpush.bf16.msra.mxu0 %v502
        %526 = vmatmul.bf16.gmra.mxu0 %v462
        %v527 = vpop.f32.mrf.mxu0
        %v528 = vadd.f32 %v427, %v527
        %v529 = vpop.f32.mrf.mxu0
        %v530 = vadd.f32 %v429, %v529
        %531 = vmatmul.bf16.gmra.mxu0 %v463
        %v532 = vpop.f32.mrf.mxu0
        %v533 = vadd.f32 %v432, %v532
        %v534 = vpop.f32.mrf.mxu0
        %v535 = vadd.f32 %v434, %v534
        %536 = vmatmul.bf16.gmra.mxu0 %v464
        %v537 = vpop.f32.mrf.mxu0
        %v538 = vadd.f32 %v437, %v537
        %v539 = vpop.f32.mrf.mxu0
        %v540 = vadd.f32 %v439, %v539
        %541 = vmatmul.bf16.gmra.mxu0 %v465
        %v542 = vpop.f32.mrf.mxu0
        %v543 = vadd.f32 %v442, %v542
        %v544 = vpop.f32.mrf.mxu0
        %v545 = vadd.f32 %v444, %v544
        %546 = vdwg.mxu0
        %v547 = vld [vmem:[%s3] sm:$0x1]
        %v549 = vperm.slane %v547, 0
        %v551 = vadd.f32 %v528, %v549
        %v552 = vadd.f32 %v530, %v549
        %v553 = vadd.f32 %v533, %v549
        %v554 = vadd.f32 %v535, %v549
        %v555 = vadd.f32 %v538, %v549
        %v556 = vadd.f32 %v540, %v549
        %v557 = vadd.f32 %v543, %v549
        %v558 = vadd.f32 %v545, %v549
        %v559 = vmin.f32 %v551, 20.0
        %v560 = vmin.f32 %v552, 20.0
        %v561 = vmin.f32 %v553, 20.0
        %v562 = vmin.f32 %v554, 20.0
        %v563 = vmin.f32 %v555, 20.0
        %v564 = vmin.f32 %v556, 20.0
        %v565 = vmin.f32 %v557, 20.0
        %v566 = vmin.f32 %v558, 20.0
        %v567 = vmul.f32 %v559, 1.442695
        %v568 = vpow.pop %v567
        %v569 = vmul.f32 %v560, 1.442695
        %v570 = vpow.pop %v569
        %v571 = vmul.f32 %v561, 1.442695
        %v572 = vpow.pop %v571
        %v573 = vmul.f32 %v562, 1.442695
        %v574 = vpow.pop %v573
        %v575 = vmul.f32 %v563, 1.442695
        %v576 = vpow.pop %v575
        %v577 = vmul.f32 %v564, 1.442695
        %v578 = vpow.pop %v577
        %v579 = vmul.f32 %v565, 1.442695
        %v580 = vpow.pop %v579
        %v581 = vmul.f32 %v566, 1.442695
        %v582 = vpow.pop %v581
        %v583 = vadd.f32 %v568, 2.0
        %v584 = vadd.f32 %v570, 2.0
        %v585 = vadd.f32 %v572, 2.0
        %v586 = vadd.f32 %v574, 2.0
        %v587 = vadd.f32 %v576, 2.0
        %v588 = vadd.f32 %v578, 2.0
        %v589 = vadd.f32 %v580, 2.0
        %v590 = vadd.f32 %v582, 2.0
        %v591 = vmul.f32 %v568, %v583
        %v592 = vmul.f32 %v570, %v584
        %v593 = vmul.f32 %v572, %v585
        %v594 = vmul.f32 %v574, %v586
        %v595 = vmul.f32 %v576, %v587
        %v596 = vmul.f32 %v578, %v588
        %v597 = vmul.f32 %v580, %v589
        %v598 = vmul.f32 %v582, %v590
        %v599 = vadd.f32 %v591, 2.0
        %v600 = vadd.f32 %v592, 2.0
        %v601 = vadd.f32 %v593, 2.0
        %v602 = vadd.f32 %v594, 2.0
        %v603 = vadd.f32 %v595, 2.0
        %v604 = vadd.f32 %v596, 2.0
        %v605 = vadd.f32 %v597, 2.0
        %v606 = vadd.f32 %v598, 2.0
        %v607 = vrcp.pop %v599
        %v608 = vmul.f32 %v599, %v607
        %v609 = vsub.f32 1.0, %v608
        %v610 = vmul.f32 %v607, %v609
        %v611 = vadd.f32 %v607, %v610
        %vm612 = vweird.f32 %v599
        %vm613 = vweird.f32 %v607
        %vm614 = vmor %vm612, %vm613
        %v615 = vsel %vm614, %v607, %v611
        %v616 = vand.u32 2147483647, %v599
        %vm617 = vcmp.eq.f32.partialorder %v616, 8.507059e+37
        %v618 = vand.u32 %v599, 2147483648
        %v619 = vor.u32 1.1754944e-38, %v618
        %v620 = vsel %vm617, %v619, %v615
        %v621 = vmul.f32 %v591, %v620
        %v622 = vrcp.pop %v600
        %v623 = vmul.f32 %v600, %v622
        %v624 = vsub.f32 1.0, %v623
        %v625 = vmul.f32 %v622, %v624
        %v626 = vadd.f32 %v622, %v625
        %vm627 = vweird.f32 %v600
        %vm628 = vweird.f32 %v622
        %vm629 = vmor %vm627, %vm628
        %v630 = vsel %vm629, %v622, %v626
        %v631 = vand.u32 2147483647, %v600
        %vm632 = vcmp.eq.f32.partialorder %v631, 8.507059e+37
        %v633 = vand.u32 %v600, 2147483648
        %v634 = vor.u32 1.1754944e-38, %v633
        %v635 = vsel %vm632, %v634, %v630
        %v636 = vmul.f32 %v592, %v635
        %v637 = vrcp.pop %v601
        %v638 = vmul.f32 %v601, %v637
        %v639 = vsub.f32 1.0, %v638
        %v640 = vmul.f32 %v637, %v639
        %v641 = vadd.f32 %v637, %v640
        %vm642 = vweird.f32 %v601
        %vm643 = vweird.f32 %v637
        %vm644 = vmor %vm642, %vm643
        %v645 = vsel %vm644, %v637, %v641
        %v646 = vand.u32 2147483647, %v601
        %vm647 = vcmp.eq.f32.partialorder %v646, 8.507059e+37
        %v648 = vand.u32 %v601, 2147483648
        %v649 = vor.u32 1.1754944e-38, %v648
        %v650 = vsel %vm647, %v649, %v645
        %v651 = vmul.f32 %v593, %v650
        %v652 = vrcp.pop %v602
        %v653 = vmul.f32 %v602, %v652
        %v654 = vsub.f32 1.0, %v653
        %v655 = vmul.f32 %v652, %v654
        %v656 = vadd.f32 %v652, %v655
        %vm657 = vweird.f32 %v602
        %vm658 = vweird.f32 %v652
        %vm659 = vmor %vm657, %vm658
        %v660 = vsel %vm659, %v652, %v656
        %v661 = vand.u32 2147483647, %v602
        %vm662 = vcmp.eq.f32.partialorder %v661, 8.507059e+37
        %v663 = vand.u32 %v602, 2147483648
        %v664 = vor.u32 1.1754944e-38, %v663
        %v665 = vsel %vm662, %v664, %v660
        %v666 = vmul.f32 %v594, %v665
        %v667 = vrcp.pop %v603
        %v668 = vmul.f32 %v603, %v667
        %v669 = vsub.f32 1.0, %v668
        %v670 = vmul.f32 %v667, %v669
        %v671 = vadd.f32 %v667, %v670
        %vm672 = vweird.f32 %v603
        %vm673 = vweird.f32 %v667
        %vm674 = vmor %vm672, %vm673
        %v675 = vsel %vm674, %v667, %v671
        %v676 = vand.u32 2147483647, %v603
        %vm677 = vcmp.eq.f32.partialorder %v676, 8.507059e+37
        %v678 = vand.u32 %v603, 2147483648
        %v679 = vor.u32 1.1754944e-38, %v678
        %v680 = vsel %vm677, %v679, %v675
        %v681 = vmul.f32 %v595, %v680
        %v682 = vrcp.pop %v604
        %v683 = vmul.f32 %v604, %v682
        %v684 = vsub.f32 1.0, %v683
        %v685 = vmul.f32 %v682, %v684
        %v686 = vadd.f32 %v682, %v685
        %vm687 = vweird.f32 %v604
        %vm688 = vweird.f32 %v682
        %vm689 = vmor %vm687, %vm688
        %v690 = vsel %vm689, %v682, %v686
        %v691 = vand.u32 2147483647, %v604
        %vm692 = vcmp.eq.f32.partialorder %v691, 8.507059e+37
        %v693 = vand.u32 %v604, 2147483648
        %v694 = vor.u32 1.1754944e-38, %v693
        %v695 = vsel %vm692, %v694, %v690
        %v696 = vmul.f32 %v596, %v695
        %v697 = vrcp.pop %v605
        %v698 = vmul.f32 %v605, %v697
        %v699 = vsub.f32 1.0, %v698
        %v700 = vmul.f32 %v697, %v699
        %v701 = vadd.f32 %v697, %v700
        %vm702 = vweird.f32 %v605
        %vm703 = vweird.f32 %v697
        %vm704 = vmor %vm702, %vm703
        %v705 = vsel %vm704, %v697, %v701
        %v706 = vand.u32 2147483647, %v605
        %vm707 = vcmp.eq.f32.partialorder %v706, 8.507059e+37
        %v708 = vand.u32 %v605, 2147483648
        %v709 = vor.u32 1.1754944e-38, %v708
        %v710 = vsel %vm707, %v709, %v705
        %v711 = vmul.f32 %v597, %v710
        %v712 = vrcp.pop %v606
        %v713 = vmul.f32 %v606, %v712
        %v714 = vsub.f32 1.0, %v713
        %v715 = vmul.f32 %v712, %v714
        %v716 = vadd.f32 %v712, %v715
        %vm717 = vweird.f32 %v606
        %vm718 = vweird.f32 %v712
        %vm719 = vmor %vm717, %vm718
        %v720 = vsel %vm719, %v712, %v716
        %v721 = vand.u32 2147483647, %v606
        %vm722 = vcmp.eq.f32.partialorder %v721, 8.507059e+37
        %v723 = vand.u32 %v606, 2147483648
        %v724 = vor.u32 1.1754944e-38, %v723
        %v725 = vsel %vm722, %v724, %v720
        %v726 = vmul.f32 %v598, %v725
        %v727 = vmul.f32 %v551, %v621
        %v728 = vmul.f32 %v552, %v636
        %v729 = vmul.f32 %v553, %v651
        %v730 = vmul.f32 %v554, %v666
        %v731 = vmul.f32 %v555, %v681
        %v732 = vmul.f32 %v556, %v696
        %v733 = vmul.f32 %v557, %v711
        %v734 = vmul.f32 %v558, %v726
        %v735 = vpack.c.bf16 %v727, %v727
        %v736 = vpack.c.bf16 %v728, %v728
        %v737 = vpack.c.bf16 %v729, %v729
        %v738 = vpack.c.bf16 %v730, %v730
        %v739 = vpack.c.bf16 %v731, %v731
        %v740 = vpack.c.bf16 %v732, %v732
        %v741 = vpack.c.bf16 %v733, %v733
        %v742 = vpack.c.bf16 %v734, %v734
        %743 = vst [vmem:[%s294] sm:$0xf] %v735
        %744 = vst [vmem:[%s294 + $0x4] sm:$0xf] %v736
        %745 = vst [vmem:[%s294 + $0x8] sm:$0xf] %v737
        %746 = vst [vmem:[%s294 + $0xc] sm:$0xf] %v738
        %747 = vst [vmem:[%s294 + $0x10] sm:$0xf] %v739
        %748 = vst [vmem:[%s294 + $0x14] sm:$0xf] %v740
        %749 = vst [vmem:[%s294 + $0x18] sm:$0xf] %v741
        %750 = vst [vmem:[%s294 + $0x1c] sm:$0xf] %v742
        %s751 = smul.u32 8, %s15
        %p752 = scmp.lt.s32.totalorder %s751, 15
        %s753 = scalar_select %p752, %s751, 15
        %s754 = smul.addr %s753, 4
        %s755 = scalar_lea.vmem %s4, %s754
        // Predicated region
        $region78: #{resblock_body_forward.11} parent=72 // pred_check
          %p756 = pneg %p127
        $region79: #{resblock_body_forward.11} parent=72 // pred_check_branch
          %758 = sbr.rel (%p756) target = $region81
        $region80: #{resblock_body_forward.11} parent=72 // pred_region
          %s759 = smul.u32 8, %s15
        $region81: #{resblock_body_forward.11} parent=72 // pred_fallthru
          _
      $region73: #{resblock_body_forward.11} parent=5 // pred_fallthru
        _
      %p760 = scmp.le.s32.totalorder 2, %s10
      // Predicated region
      $region82: #{resblock_body_forward.11} parent=5 // pred_check
        %p761 = pneg %p760
      $region83: #{resblock_body_forward.11} parent=5 // pred_check_branch
        %763 = sbr.rel (%p761) target = $region85
      $region84: #{resblock_body_forward.11} parent=5 // pred_region
        %s764 = ssub.s32 %s10, 2
        // Predicated region
        $region86: #{resblock_body_forward.11} parent=84 // pred_check
          %p765 = pneg %p133
        $region87: #{resblock_body_forward.11} parent=84 // pred_check_branch
          %767 = sbr.rel (%p765) target = $region89
        $region88: #{resblock_body_forward.11} parent=84 // pred_region
          %s768 = smul.u32 8, %s16
          %p769 = scmp.lt.s32.totalorder %s768, 15
          %s770 = scalar_select %p769, %s768, 15
          %s771 = smul.addr %s770, 4
          %s772 = scalar_lea.vmem %s4, %s771
        $region89: #{resblock_body_forward.11} parent=84 // pred_fallthru
          _
      $region85: #{resblock_body_forward.11} parent=5 // pred_fallthru
        _
    $region6: #{resblock_body_forward.11} parent=1 // loop_footer
      %s14 = sadd.s32 1, %s10
    $region7: #{resblock_body_forward.11} parent=1 // loop_footer_branch
      %9 = sbr.rel target = $region3
    $region8: #{resblock_body_forward.11} parent=1 // loop_exit
      _

// kernel: resblock_body_forward.9
$region0: #{resblock_body_forward.9}
  #allocation0 [shape = 'u32[]', space=smem, size = 0x4, offset = 0x4, fixed_abs, tag = 'smem constant byte address 0x4 - core index']
  #allocation1 [shape = 'u32[72,128]{1,0:T(1,128)}', space=vmem, size = 0x9000, scoped, tag = 'internal scratch']
  %s0 = inlined_call_operand.vmem [shape: bf16[224,128], index: 0, kind: input, shape index: {}]
  %s1 = inlined_call_operand.vmem [shape: bf16[9,128,128], index: 1, kind: input, shape index: {}]
  %s2 = inlined_call_operand.vmem [shape: f32[1,128], index: 2, kind: input, shape index: {}]
  %s3 = inlined_call_operand.vmem [shape: bf16[160,128], index: 3, kind: output, shape index: {}]
  %s4 = sld [smem:[#allocation0]]
  $region45: #{resblock_body_forward.9} parent=0
    _
  %s6 = ssub.s32 1, %s4
  %s7 = scalar_select 0, %s6, %s4
  loop: start=0, step=1, limit=4
  $region2: #{resblock_body_forward.9} parent=0 // loop_pre_header
    _
  $region3: #{resblock_body_forward.9} parent=0 // loop_header
    %s9 = sphi 0, %s13
    %p10 = scmp.ge.s32.totalorder %s9, 4
    %s19 = sphi 0, %s21
    %s22 = sphi 0, %s19
    %s23 = sphi 0, %s22
    %s39 = sphi 0, %s23
    %s43 = sphi 0, %s43
    %s45 = sphi 0, %s43
    %s46 = sphi 0, %s45
    %s60 = sphi 0, %s46
    %s64 = sphi 0, %s64
    %s66 = sphi 0, %s64
    %s67 = sphi 0, %s66
    %s81 = sphi 0, %s67
    %s87 = sphi 0, %s89
    %s90 = sphi 0, %s87
    %s91 = sphi 0, %s90
    %s107 = sphi 0, %s91
  $region4: #{resblock_body_forward.9} parent=0 // loop_header_branch
    %12 = sbr.rel (%p10) target = $region8
  $region5: #{resblock_body_forward.9} parent=0 // loop_body
    %s14 = ssub.s32 %s9, 1
    %s15 = ssub.s32 %s9, 2
    %s16 = sadd.s32 %s9, 1
    %s17 = ssub.s32 %s9, %s16
    %p18 = scmp.eq.s32.totalorder %s17, 0
    %s20 = sadd.s32 %s19, 1
    %s21 = scalar_select %p18, %s19, %s20
    %p24 = pneg %p18
    %p25 = scmp.eq.s32.totalorder %s9, 1
    %p26 = por %p24, %p25
    %p27 = scmp.ne.s32.totalorder %s19, %s22
    %p28 = scmp.eq.s32.totalorder %s9, 0
    %p29 = por %p27, %p28
    %p30 = scmp.ne.s32.totalorder %s19, %s22
    %p31 = scmp.eq.s32.totalorder %s14, 1
    %p32 = por %p30, %p31
    %p33 = scmp.ne.s32.totalorder %s22, %s23
    %p34 = scmp.eq.s32.totalorder %s14, 0
    %p35 = por %p33, %p34
    %p36 = scmp.ne.s32.totalorder %s22, %s23
    %p37 = scmp.eq.s32.totalorder %s15, 1
    %p38 = por %p36, %p37
    %p40 = scmp.ne.s32.totalorder %s23, %s39
    %p41 = scmp.eq.s32.totalorder %s15, 0
    %p42 = por %p40, %p41
    %s44 = sadd.s32 %s43, 1
    %p47 = scmp.eq.s32.totalorder %s9, 1
    %p48 = scmp.ne.s32.totalorder %s43, %s45
    %p49 = scmp.eq.s32.totalorder %s9, 0
    %p50 = por %p48, %p49
    %p51 = scmp.ne.s32.totalorder %s43, %s45
    %p52 = scmp.eq.s32.totalorder %s14, 1
    %p53 = por %p51, %p52
    %p54 = scmp.ne.s32.totalorder %s45, %s46
    %p55 = scmp.eq.s32.totalorder %s14, 0
    %p56 = por %p54, %p55
    %p57 = scmp.ne.s32.totalorder %s45, %s46
    %p58 = scmp.eq.s32.totalorder %s15, 1
    %p59 = por %p57, %p58
    %p61 = scmp.ne.s32.totalorder %s46, %s60
    %p62 = scmp.eq.s32.totalorder %s15, 0
    %p63 = por %p61, %p62
    %s65 = sadd.s32 %s64, 1
    %p68 = scmp.eq.s32.totalorder %s9, 1
    %p69 = scmp.ne.s32.totalorder %s64, %s66
    %p70 = scmp.eq.s32.totalorder %s9, 0
    %p71 = por %p69, %p70
    %p72 = scmp.ne.s32.totalorder %s64, %s66
    %p73 = scmp.eq.s32.totalorder %s14, 1
    %p74 = por %p72, %p73
    %p75 = scmp.ne.s32.totalorder %s66, %s67
    %p76 = scmp.eq.s32.totalorder %s14, 0
    %p77 = por %p75, %p76
    %p78 = scmp.ne.s32.totalorder %s66, %s67
    %p79 = scmp.eq.s32.totalorder %s15, 1
    %p80 = por %p78, %p79
    %p82 = scmp.ne.s32.totalorder %s67, %s81
    %p83 = scmp.eq.s32.totalorder %s15, 0
    %p84 = por %p82, %p83
    %s85 = ssub.s32 %s9, %s16
    %p86 = scmp.eq.s32.totalorder %s85, 0
    %s88 = sadd.s32 %s87, 1
    %s89 = scalar_select %p86, %s87, %s88
    %p92 = pneg %p86
    %p93 = scmp.eq.s32.totalorder %s9, 1
    %p94 = por %p92, %p93
    %p95 = scmp.ne.s32.totalorder %s87, %s90
    %p96 = scmp.eq.s32.totalorder %s9, 0
    %p97 = por %p95, %p96
    %p98 = scmp.ne.s32.totalorder %s87, %s90
    %p99 = scmp.eq.s32.totalorder %s14, 1
    %p100 = por %p98, %p99
    %p101 = scmp.ne.s32.totalorder %s90, %s91
    %p102 = scmp.eq.s32.totalorder %s14, 0
    %p103 = por %p101, %p102
    %p104 = scmp.ne.s32.totalorder %s90, %s91
    %p105 = scmp.eq.s32.totalorder %s15, 1
    %p106 = por %p104, %p105
    %p108 = scmp.ne.s32.totalorder %s91, %s107
    %p109 = scmp.eq.s32.totalorder %s15, 0
    %p110 = por %p108, %p109
    %p111 = scmp.le.s32.totalorder 1, %s9
    %p112 = scmp.lt.s32.totalorder %s9, 3
    %p113 = pnand %p111, %p112
    %p114 = pneg %p113
    // Predicated region
    $region9: #{resblock_body_forward.9} parent=5 // pred_check
      _
    $region10: #{resblock_body_forward.9} parent=5 // pred_check_branch
      %116 = sbr.rel (%p113) target = $region12
    $region11: #{resblock_body_forward.9} parent=5 // pred_region
      %s117 = ssub.s32 %s9, 1
      // Predicated region
      $region13: #{resblock_body_forward.9} parent=11 // pred_check
        %p118 = pneg %p56
      $region14: #{resblock_body_forward.9} parent=11 // pred_check_branch
        %120 = sbr.rel (%p118) target = $region16
      $region15: #{resblock_body_forward.9} parent=11 // pred_region
        _
      $region16: #{resblock_body_forward.9} parent=11 // pred_fallthru
        _
      // Predicated region
      $region17: #{resblock_body_forward.9} parent=11 // pred_check
        %p121 = pneg %p77
      $region18: #{resblock_body_forward.9} parent=11 // pred_check_branch
        %123 = sbr.rel (%p121) target = $region20
      $region19: #{resblock_body_forward.9} parent=11 // pred_region
        _
      $region20: #{resblock_body_forward.9} parent=11 // pred_fallthru
        _
    $region12: #{resblock_body_forward.9} parent=5 // pred_fallthru
      _
    %p124 = scmp.lt.s32.totalorder %s9, 2
    // Predicated region
    $region21: #{resblock_body_forward.9} parent=5 // pred_check
      %p125 = pneg %p124
    $region22: #{resblock_body_forward.9} parent=5 // pred_check_branch
      %127 = sbr.rel (%p125) target = $region24
    $region23: #{resblock_body_forward.9} parent=5 // pred_region
      // Predicated region
      $region25: #{resblock_body_forward.9} parent=23 // pred_check
        %p128 = pneg %p29
      $region26: #{resblock_body_forward.9} parent=23 // pred_check_branch
        %130 = sbr.rel (%p128) target = $region28
      $region27: #{resblock_body_forward.9} parent=23 // pred_region
        %s131 = smul.u32 14, %s9
        %p132 = scmp.lt.s32.totalorder %s131, 27
        %s133 = scalar_select %p132, %s131, 27
        %s134 = smul.addr %s133, 4
        %s135 = scalar_lea.vmem %s0, %s134
        %s136 = smul.u32 14, %s9
      $region28: #{resblock_body_forward.9} parent=23 // pred_fallthru
        _
    $region24: #{resblock_body_forward.9} parent=5 // pred_fallthru
      _
    %p137 = scmp.le.s32.totalorder 1, %s9
    %p138 = scmp.lt.s32.totalorder %s9, 3
    %p139 = pnand %p137, %p138
    %p140 = pneg %p139
    // Predicated region
    $region29: #{resblock_body_forward.9} parent=5 // pred_check
      _
    $region30: #{resblock_body_forward.9} parent=5 // pred_check_branch
      %142 = sbr.rel (%p139) target = $region32
    $region31: #{resblock_body_forward.9} parent=5 // pred_region
      %s143 = ssub.s32 %s9, 1
      %s144 = smul.u32 14, %s14
      %p145 = scmp.lt.s32.totalorder %s144, 27
      %s146 = scalar_select %p145, %s144, 27
      %s147 = smul.addr %s146, 4
      %s148 = scalar_lea.vmem %s0, %s147
      %p149 = pneg %p35
      %p150 = pneg %p32
      %p151 = pneg %p56
      %p152 = pneg %p53
      %p153 = pneg %p77
      %p154 = pneg %p74
      %p155 = pneg %p103
      %p156 = pneg %p100
      %s157 = smul.u32 10, %s14
      %p158 = scmp.lt.s32.totalorder %s157, 19
      %s159 = scalar_select %p158, %s157, 19
      %s160 = smul.addr %s159, 4
      %s161 = scalar_lea.vmem %s3, %s160
      %s162 = smul.u32 14, %s14
      %p163 = scmp.lt.s32.totalorder %s162, 27
      %s164 = scalar_select %p163, %s162, 27
      %s165 = smul.addr %s164, 4
      %s166 = scalar_lea.vmem %s0, %s165
      %s167 = smul.u32 14, %s14
      %s168 = smul.u32 10, %s14
      %p169 = scmp.lt.s32.totalorder %s168, 19
      %s170 = scalar_select %p169, %s168, 19
      %s171 = smul.addr %s170, 4
      %s172 = scalar_lea.vmem %s3, %s171
      %s173 = smul.u32 10, %s14
      %v174 = vld [vmem:[%s166] sm:$0xf]
      %v175 = vld [vmem:[%s166 + $0x4] sm:$0xf]
      %v176 = vld [vmem:[%s166 + $0x8] sm:$0xf]
      %v177 = vld [vmem:[%s166 + $0xc] sm:$0xf]
      %v178 = vld [vmem:[%s166 + $0x10] sm:$0xf]
      %v179 = vld [vmem:[%s166 + $0x14] sm:$0xf]
      %v180 = vld [vmem:[%s166 + $0x18] sm:$0xf]
      %v181 = vld [vmem:[%s166 + $0x1c] sm:$0xf]
      %v182 = vld [vmem:[%s166 + $0x20] sm:$0xf]
      %v183 = vld [vmem:[%s166 + $0x24] sm:$0xf]
      %v184 = vld [vmem:[%s1] sm:$0xf]
      %v185 = vld [vmem:[%s1 + $0x4] sm:$0xf]
      %v186 = vld [vmem:[%s1 + $0x8] sm:$0xf]
      %v187 = vld [vmem:[%s1 + $0xc] sm:$0xf]
      %v188 = vld [vmem:[%s1 + $0x10] sm:$0xf]
      %v189 = vld [vmem:[%s1 + $0x14] sm:$0xf]
      %v190 = vld [vmem:[%s1 + $0x18] sm:$0xf]
      %v191 = vld [vmem:[%s1 + $0x1c] sm:$0xf]
      %v192 = vld [vmem:[%s1 + $0x20] sm:$0xf]
      %v193 = vld [vmem:[%s1 + $0x24] sm:$0xf]
      %v194 = vld [vmem:[%s1 + $0x28] sm:$0xf]
      %v195 = vld [vmem:[%s1 + $0x2c] sm:$0xf]
      %v196 = vld [vmem:[%s1 + $0x30] sm:$0xf]
      %v197 = vld [vmem:[%s1 + $0x34] sm:$0xf]
      %v198 = vld [vmem:[%s1 + $0x38] sm:$0xf]
      %v199 = vld [vmem:[%s1 + $0x3c] sm:$0xf]
      %v200 = vld [vmem:[%s166 + $0x28] sm:$0x1]
      %s201 = scalar_lea.vmem %s1, 64
      %v202 = vld [vmem:[%s201] sm:$0xf]
      %v203 = vld [vmem:[%s201 + $0x4] sm:$0xf]
      %v204 = vld [vmem:[%s201 + $0x8] sm:$0xf]
      %v205 = vld [vmem:[%s201 + $0xc] sm:$0xf]
      %v206 = vld [vmem:[%s201 + $0x10] sm:$0xf]
      %v207 = vld [vmem:[%s201 + $0x14] sm:$0xf]
      %v208 = vld [vmem:[%s201 + $0x18] sm:$0xf]
      %v209 = vld [vmem:[%s201 + $0x1c] sm:$0xf]
      %v210 = vld [vmem:[%s201 + $0x20] sm:$0xf]
      %v211 = vld [vmem:[%s201 + $0x24] sm:$0xf]
      %v212 = vld [vmem:[%s201 + $0x28] sm:$0xf]
      %v213 = vld [vmem:[%s201 + $0x2c] sm:$0xf]
      %v214 = vld [vmem:[%s201 + $0x30] sm:$0xf]
      %v215 = vld [vmem:[%s201 + $0x34] sm:$0xf]
      %v216 = vld [vmem:[%s201 + $0x38] sm:$0xf]
      %v217 = vld [vmem:[%s201 + $0x3c] sm:$0xf]
      %v229 = vunpack.c.l.b16 %v174
      %v230 = vunpack.c.l.b16 %v175
      %v231 = vunpack.c.l.b16 %v176
      %v232 = vunpack.c.l.b16 %v177
      %v233 = vunpack.c.l.b16 %v178
      %v234 = vunpack.c.l.b16 %v179
      %v235 = vunpack.c.l.b16 %v180
      %v236 = vunpack.c.l.b16 %v181
      %v237 = vunpack.c.l.b16 %v182
      %v238 = vunpack.c.l.b16 %v183
      %v239 = vunpack.c.l.b16 %v200
      %v240 = vpack.c.b16 %v230, %v229
      %v241 = vpack.c.b16 %v232, %v231
      %v242 = vpack.c.b16 %v234, %v233
      %v243 = vpack.c.b16 %v236, %v235
      %v244 = vpack.c.b16 %v238, %v237
      %v245 = vpack.c.b16 %v239, %v239
      %vm246 = vsmask.f32 7424
      %v248 = vshrl.u32 %v240, 16
      %v250 = vshll.u32 %v240, 16
      %v252 = vrot.slane %v250, 1
      %v253 = vor.u32 %v248, %v252
      %v255 = vshll.u32 %v241, 16
      %v257 = vrot.slane %v255, 1
      %v258 = vsel %vm246, %v253, %v257
      %v259 = vshrl.u32 %v241, 16
      %v261 = vor.u32 %v259, %v257
      %v263 = vshll.u32 %v242, 16
      %v265 = vrot.slane %v263, 1
      %v266 = vsel %vm246, %v261, %v265
      %v267 = vshrl.u32 %v242, 16
      %v269 = vor.u32 %v267, %v265
      %v271 = vshll.u32 %v243, 16
      %v273 = vrot.slane %v271, 1
      %v274 = vsel %vm246, %v269, %v273
      %v275 = vshrl.u32 %v243, 16
      %v277 = vor.u32 %v275, %v273
      %v279 = vshll.u32 %v244, 16
      %v281 = vrot.slane %v279, 1
      %v282 = vsel %vm246, %v277, %v281
      %v283 = vshrl.u32 %v244, 16
      %v285 = vor.u32 %v283, %v281
      %v287 = vshll.u32 %v245, 16
      %v289 = vrot.slane %v287, 1
      %v290 = vsel %vm246, %v285, %v289
      %v312 = vunpack.c.l.b16 %v202
      %v313 = vunpack.c.l.b16 %v203
      %v314 = vunpack.c.l.b16 %v204
      %v315 = vunpack.c.l.b16 %v205
      %v316 = vunpack.c.l.b16 %v206
      %v317 = vunpack.c.l.b16 %v207
      %v318 = vunpack.c.l.b16 %v208
      %v319 = vunpack.c.l.b16 %v209
      %v320 = vunpack.c.l.b16 %v210
      %v321 = vunpack.c.l.b16 %v211
      %v322 = vunpack.c.l.b16 %v212
      %v323 = vunpack.c.l.b16 %v213
      %v324 = vunpack.c.l.b16 %v214
      %v325 = vunpack.c.l.b16 %v215
      %v326 = vunpack.c.l.b16 %v216
      %v327 = vunpack.c.l.b16 %v217
      %v328 = vpack.c.b16 %v313, %v312
      %v329 = vpack.c.b16 %v315, %v314
      %v330 = vpack.c.b16 %v317, %v316
      %v331 = vpack.c.b16 %v319, %v318
      %v332 = vpack.c.b16 %v321, %v320
      %v333 = vpack.c.b16 %v323, %v322
      %v334 = vpack.c.b16 %v325, %v324
      %v335 = vpack.c.b16 %v327, %v326
      %344 = vmatpush.bf16.msra.mxu0 %v335
      %345 = vmatpush.bf16.msra.mxu0 %v334
      %346 = vmatpush.bf16.msra.mxu0 %v333
      %347 = vmatpush.bf16.msra.mxu0 %v332
      %348 = vmatpush.bf16.msra.mxu0 %v331
      %349 = vmatpush.bf16.msra.mxu0 %v330
      %350 = vmatpush.bf16.msra.mxu0 %v329
      %351 = vmatpush.bf16.msra.mxu0 %v328
      %352 = vmatmul.bf16.gmra.mxu0 %v258
      %v353 = vpop.f32.mrf.mxu0
      %v354 = vadd.f32 0.0, %v353
      %v355 = vpop.f32.mrf.mxu0
      %v356 = vadd.f32 0.0, %v355
      %357 = vmatmul.bf16.gmra.mxu0 %v266
      %v358 = vpop.f32.mrf.mxu0
      %v359 = vadd.f32 0.0, %v358
      %v360 = vpop.f32.mrf.mxu0
      %v361 = vadd.f32 0.0, %v360
      %362 = vmatmul.bf16.gmra.mxu0 %v274
      %v363 = vpop.f32.mrf.mxu0
      %v364 = vadd.f32 0.0, %v363
      %v365 = vpop.f32.mrf.mxu0
      %v366 = vadd.f32 0.0, %v365
      %367 = vmatmul.bf16.gmra.mxu0 %v282
      %v368 = vpop.f32.mrf.mxu0
      %v369 = vadd.f32 0.0, %v368
      %v370 = vpop.f32.mrf.mxu0
      %v371 = vadd.f32 0.0, %v370
      %372 = vmatmul.bf16.gmra.mxu0 %v290
      %v373 = vpop.f32.mrf.mxu0
      %v374 = vadd.f32 0.0, %v373
      %v375 = vpop.f32.mrf.mxu0
      %v376 = vadd.f32 0.0, %v375
      %377 = vdwg.mxu0
      %v399 = vunpack.c.l.b16 %v184
      %v400 = vunpack.c.l.b16 %v185
      %v401 = vunpack.c.l.b16 %v186
      %v402 = vunpack.c.l.b16 %v187
      %v403 = vunpack.c.l.b16 %v188
      %v404 = vunpack.c.l.b16 %v189
      %v405 = vunpack.c.l.b16 %v190
      %v406 = vunpack.c.l.b16 %v191
      %v407 = vunpack.c.l.b16 %v192
      %v408 = vunpack.c.l.b16 %v193
      %v409 = vunpack.c.l.b16 %v194
      %v410 = vunpack.c.l.b16 %v195
      %v411 = vunpack.c.l.b16 %v196
      %v412 = vunpack.c.l.b16 %v197
      %v413 = vunpack.c.l.b16 %v198
      %v414 = vunpack.c.l.b16 %v199
      %v415 = vpack.c.b16 %v400, %v399
      %v416 = vpack.c.b16 %v402, %v401
      %v417 = vpack.c.b16 %v404, %v403
      %v418 = vpack.c.b16 %v406, %v405
      %v419 = vpack.c.b16 %v408, %v407
      %v420 = vpack.c.b16 %v410, %v409
      %v421 = vpack.c.b16 %v412, %v411
      %v422 = vpack.c.b16 %v414, %v413
      %431 = vmatpush.bf16.msra.mxu0 %v422
      %432 = vmatpush.bf16.msra.mxu0 %v421
      %433 = vmatpush.bf16.msra.mxu0 %v420
      %434 = vmatpush.bf16.msra.mxu0 %v419
      %435 = vmatpush.bf16.msra.mxu0 %v418
      %436 = vmatpush.bf16.msra.mxu0 %v417
      %437 = vmatpush.bf16.msra.mxu0 %v416
      %438 = vmatpush.bf16.msra.mxu0 %v415
      %439 = vmatmul.bf16.gmra.mxu0 %v240
      %v440 = vpop.f32.mrf.mxu0
      %v441 = vadd.f32 %v354, %v440
      %v442 = vpop.f32.mrf.mxu0
      %v443 = vadd.f32 %v356, %v442
      %444 = vmatmul.bf16.gmra.mxu0 %v241
      %v445 = vpop.f32.mrf.mxu0
      %v446 = vadd.f32 %v359, %v445
      %v447 = vpop.f32.mrf.mxu0
      %v448 = vadd.f32 %v361, %v447
      %449 = vmatmul.bf16.gmra.mxu0 %v242
      %v450 = vpop.f32.mrf.mxu0
      %v451 = vadd.f32 %v364, %v450
      %v452 = vpop.f32.mrf.mxu0
      %v453 = vadd.f32 %v366, %v452
      %454 = vmatmul.bf16.gmra.mxu0 %v243
      %v455 = vpop.f32.mrf.mxu0
      %v456 = vadd.f32 %v369, %v455
      %v457 = vpop.f32.mrf.mxu0
      %v458 = vadd.f32 %v371, %v457
      %459 = vmatmul.bf16.gmra.mxu0 %v244
      %v460 = vpop.f32.mrf.mxu0
      %v461 = vadd.f32 %v374, %v460
      %v462 = vpop.f32.mrf.mxu0
      %v463 = vadd.f32 %v376, %v462
      %464 = vdwg.mxu0
      %v465 = vld [vmem:[%s166] sm:$0xe]
      %s466 = scalar_lea.vmem %s1, 128
      %v467 = vld [vmem:[%s466] sm:$0xf]
      %v468 = vld [vmem:[%s466 + $0x4] sm:$0xf]
      %v469 = vld [vmem:[%s466 + $0x8] sm:$0xf]
      %v470 = vld [vmem:[%s466 + $0xc] sm:$0xf]
      %v471 = vld [vmem:[%s466 + $0x10] sm:$0xf]
      %v472 = vld [vmem:[%s466 + $0x14] sm:$0xf]
      %v473 = vld [vmem:[%s466 + $0x18] sm:$0xf]
      %v474 = vld [vmem:[%s466 + $0x1c] sm:$0xf]
      %v475 = vld [vmem:[%s466 + $0x20] sm:$0xf]
      %v476 = vld [vmem:[%s466 + $0x24] sm:$0xf]
      %v477 = vld [vmem:[%s466 + $0x28] sm:$0xf]
      %v478 = vld [vmem:[%s466 + $0x2c] sm:$0xf]
      %v479 = vld [vmem:[%s466 + $0x30] sm:$0xf]
      %v480 = vld [vmem:[%s466 + $0x34] sm:$0xf]
      %v481 = vld [vmem:[%s466 + $0x38] sm:$0xf]
      %v482 = vld [vmem:[%s466 + $0x3c] sm:$0xf]
      %v484 = vunpack.c.l.b16 %v465
      %v485 = vpack.c.b16 %v230, %v484
      %vm486 = vcmask 1046528
      %v487 = vrot.slane %v485, 1
      %v488 = vrot.slane %v241, 1
      %v489 = vsel %vm486, %v487, %v488
      %v490 = vrot.slane %v242, 1
      %v491 = vsel %vm486, %v488, %v490
      %v492 = vrot.slane %v243, 1
      %v493 = vsel %vm486, %v490, %v492
      %v494 = vrot.slane %v244, 1
      %v495 = vsel %vm486, %v492, %v494
      %v496 = vrot.slane %v245, 1
      %v497 = vsel %vm486, %v494, %v496
      %v519 = vunpack.c.l.b16 %v467
      %v520 = vunpack.c.l.b16 %v468
      %v521 = vunpack.c.l.b16 %v469
      %v522 = vunpack.c.l.b16 %v470
      %v523 = vunpack.c.l.b16 %v471
      %v524 = vunpack.c.l.b16 %v472
      %v525 = vunpack.c.l.b16 %v473
      %v526 = vunpack.c.l.b16 %v474
      %v527 = vunpack.c.l.b16 %v475
      %v528 = vunpack.c.l.b16 %v476
      %v529 = vunpack.c.l.b16 %v477
      %v530 = vunpack.c.l.b16 %v478
      %v531 = vunpack.c.l.b16 %v479
      %v532 = vunpack.c.l.b16 %v480
      %v533 = vunpack.c.l.b16 %v481
      %v534 = vunpack.c.l.b16 %v482
      %v535 = vpack.c.b16 %v520, %v519
      %v536 = vpack.c.b16 %v522, %v521
      %v537 = vpack.c.b16 %v524, %v523
      %v538 = vpack.c.b16 %v526, %v525
      %v539 = vpack.c.b16 %v528, %v527
      %v540 = vpack.c.b16 %v530, %v529
      %v541 = vpack.c.b16 %v532, %v531
      %v542 = vpack.c.b16 %v534, %v533
      %551 = vmatpush.bf16.msra.mxu0 %v542
      %552 = vmatpush.bf16.msra.mxu0 %v541
      %553 = vmatpush.bf16.msra.mxu0 %v540
      %554 = vmatpush.bf16.msra.mxu0 %v539
      %555 = vmatpush.bf16.msra.mxu0 %v538
      %556 = vmatpush.bf16.msra.mxu0 %v537
      %557 = vmatpush.bf16.msra.mxu0 %v536
      %558 = vmatpush.bf16.msra.mxu0 %v535
      %559 = vmatmul.bf16.gmra.mxu0 %v489
      %v560 = vpop.f32.mrf.mxu0
      %v561 = vadd.f32 0.0, %v560
      %v562 = vpop.f32.mrf.mxu0
      %v563 = vadd.f32 0.0, %v562
      %564 = vmatmul.bf16.gmra.mxu0 %v491
      %v565 = vpop.f32.mrf.mxu0
      %v566 = vadd.f32 0.0, %v565
      %v567 = vpop.f32.mrf.mxu0
      %v568 = vadd.f32 0.0, %v567
      %569 = vmatmul.bf16.gmra.mxu0 %v493
      %v570 = vpop.f32.mrf.mxu0
      %v571 = vadd.f32 0.0, %v570
      %v572 = vpop.f32.mrf.mxu0
      %v573 = vadd.f32 0.0, %v572
      %574 = vmatmul.bf16.gmra.mxu0 %v495
      %v575 = vpop.f32.mrf.mxu0
      %v576 = vadd.f32 0.0, %v575
      %v577 = vpop.f32.mrf.mxu0
      %v578 = vadd.f32 0.0, %v577
      %579 = vmatmul.bf16.gmra.mxu0 %v497
      %v580 = vpop.f32.mrf.mxu0
      %v581 = vadd.f32 0.0, %v580
      %v582 = vpop.f32.mrf.mxu0
      %v583 = vadd.f32 0.0, %v582
      %584 = vdwg.mxu0
      %v585 = vadd.f32 %v441, %v561
      %v586 = vadd.f32 %v443, %v563
      %v587 = vadd.f32 %v446, %v566
      %v588 = vadd.f32 %v448, %v568
      %v589 = vadd.f32 %v451, %v571
      %v590 = vadd.f32 %v453, %v573
      %v591 = vadd.f32 %v456, %v576
      %v592 = vadd.f32 %v458, %v578
      %v593 = vadd.f32 %v461, %v581
      %v594 = vadd.f32 %v463, %v583
      %v595 = vld [vmem:[%s166 + $0x4] sm:$0xe]
      %v596 = vld [vmem:[%s166 + $0x8] sm:$0xf]
      %v597 = vld [vmem:[%s166 + $0xc] sm:$0xf]
      %v598 = vld [vmem:[%s166 + $0x10] sm:$0xf]
      %v599 = vld [vmem:[%s166 + $0x14] sm:$0xf]
      %v600 = vld [vmem:[%s166 + $0x18] sm:$0xf]
      %v601 = vld [vmem:[%s166 + $0x1c] sm:$0xf]
      %v602 = vld [vmem:[%s166 + $0x20] sm:$0xf]
      %v603 = vld [vmem:[%s166 + $0x24] sm:$0xf]
      %v604 = vld [vmem:[%s166 + $0x28] sm:$0xf]
      %v605 = vld [vmem:[%s166 + $0x2c] sm:$0x1]
      %s606 = scalar_lea.vmem %s1, 192
      %v607 = vld [vmem:[%s606] sm:$0xf]
      %v608 = vld [vmem:[%s606 + $0x4] sm:$0xf]
      %v609 = vld [vmem:[%s606 + $0x8] sm:$0xf]
      %v610 = vld [vmem:[%s606 + $0xc] sm:$0xf]
      %v611 = vld [vmem:[%s606 + $0x10] sm:$0xf]
      %v612 = vld [vmem:[%s606 + $0x14] sm:$0xf]
      %v613 = vld [vmem:[%s606 + $0x18] sm:$0xf]
      %v614 = vld [vmem:[%s606 + $0x1c] sm:$0xf]
      %v615 = vld [vmem:[%s606 + $0x20] sm:$0xf]
      %v616 = vld [vmem:[%s606 + $0x24] sm:$0xf]
      %v617 = vld [vmem:[%s606 + $0x28] sm:$0xf]
      %v618 = vld [vmem:[%s606 + $0x2c] sm:$0xf]
      %v619 = vld [vmem:[%s606 + $0x30] sm:$0xf]
      %v620 = vld [vmem:[%s606 + $0x34] sm:$0xf]
      %v621 = vld [vmem:[%s606 + $0x38] sm:$0xf]
      %v622 = vld [vmem:[%s606 + $0x3c] sm:$0xf]
      %v634 = vunpack.c.l.b16 %v595
      %v635 = vunpack.c.l.b16 %v596
      %v636 = vunpack.c.l.b16 %v597
      %v637 = vunpack.c.l.b16 %v598
      %v638 = vunpack.c.l.b16 %v599
      %v639 = vunpack.c.l.b16 %v600
      %v640 = vunpack.c.l.b16 %v601
      %v641 = vunpack.c.l.b16 %v602
      %v642 = vunpack.c.l.b16 %v603
      %v643 = vunpack.c.l.b16 %v604
      %v644 = vunpack.c.l.b16 %v605
      %v645 = vpack.c.b16 %v635, %v634
      %v646 = vpack.c.b16 %v637, %v636
      %v647 = vpack.c.b16 %v639, %v638
      %v648 = vpack.c.b16 %v641, %v640
      %v649 = vpack.c.b16 %v643, %v642
      %v650 = vpack.c.b16 %v644, %v644
      %v651 = vrot.slane %v645, 1
      %v652 = vrot.slane %v646, 1
      %v653 = vsel %vm486, %v651, %v652
      %v654 = vrot.slane %v647, 1
      %v655 = vsel %vm486, %v652, %v654
      %v656 = vrot.slane %v648, 1
      %v657 = vsel %vm486, %v654, %v656
      %v658 = vrot.slane %v649, 1
      %v659 = vsel %vm486, %v656, %v658
      %v660 = vrot.slane %v650, 1
      %v661 = vsel %vm486, %v658, %v660
      %v683 = vunpack.c.l.b16 %v607
      %v684 = vunpack.c.l.b16 %v608
      %v685 = vunpack.c.l.b16 %v609
      %v686 = vunpack.c.l.b16 %v610
      %v687 = vunpack.c.l.b16 %v611
      %v688 = vunpack.c.l.b16 %v612
      %v689 = vunpack.c.l.b16 %v613
      %v690 = vunpack.c.l.b16 %v614
      %v691 = vunpack.c.l.b16 %v615
      %v692 = vunpack.c.l.b16 %v616
      %v693 = vunpack.c.l.b16 %v617
      %v694 = vunpack.c.l.b16 %v618
      %v695 = vunpack.c.l.b16 %v619
      %v696 = vunpack.c.l.b16 %v620
      %v697 = vunpack.c.l.b16 %v621
      %v698 = vunpack.c.l.b16 %v622
      %v699 = vpack.c.b16 %v684, %v683
      %v700 = vpack.c.b16 %v686, %v685
      %v701 = vpack.c.b16 %v688, %v687
      %v702 = vpack.c.b16 %v690, %v689
      %v703 = vpack.c.b16 %v692, %v691
      %v704 = vpack.c.b16 %v694, %v693
      %v705 = vpack.c.b16 %v696, %v695
      %v706 = vpack.c.b16 %v698, %v697
      %715 = vmatpush.bf16.msra.mxu0 %v706
      %716 = vmatpush.bf16.msra.mxu0 %v705
      %717 = vmatpush.bf16.msra.mxu0 %v704
      %718 = vmatpush.bf16.msra.mxu0 %v703
      %719 = vmatpush.bf16.msra.mxu0 %v702
      %720 = vmatpush.bf16.msra.mxu0 %v701
      %721 = vmatpush.bf16.msra.mxu0 %v700
      %722 = vmatpush.bf16.msra.mxu0 %v699
      %723 = vmatmul.bf16.gmra.mxu0 %v653
      %v724 = vpop.f32.mrf.mxu0
      %v725 = vadd.f32 0.0, %v724
      %v726 = vpop.f32.mrf.mxu0
      %v727 = vadd.f32 0.0, %v726
      %728 = vmatmul.bf16.gmra.mxu0 %v655
      %v729 = vpop.f32.mrf.mxu0
      %v730 = vadd.f32 0.0, %v729
      %v731 = vpop.f32.mrf.mxu0
      %v732 = vadd.f32 0.0, %v731
      %733 = vmatmul.bf16.gmra.mxu0 %v657
      %v734 = vpop.f32.mrf.mxu0
      %v735 = vadd.f32 0.0, %v734
      %v736 = vpop.f32.mrf.mxu0
      %v737 = vadd.f32 0.0, %v736
      %738 = vmatmul.bf16.gmra.mxu0 %v659
      %v739 = vpop.f32.mrf.mxu0
      %v740 = vadd.f32 0.0, %v739
      %v741 = vpop.f32.mrf.mxu0
      %v742 = vadd.f32 0.0, %v741
      %743 = vmatmul.bf16.gmra.mxu0 %v661
      %v744 = vpop.f32.mrf.mxu0
      %v745 = vadd.f32 0.0, %v744
      %v746 = vpop.f32.mrf.mxu0
      %v747 = vadd.f32 0.0, %v746
      %748 = vdwg.mxu0
      %v749 = vadd.f32 %v585, %v725
      %v750 = vadd.f32 %v586, %v727
      %v751 = vadd.f32 %v587, %v730
      %v752 = vadd.f32 %v588, %v732
      %v753 = vadd.f32 %v589, %v735
      %v754 = vadd.f32 %v590, %v737
      %v755 = vadd.f32 %v591, %v740
      %v756 = vadd.f32 %v592, %v742
      %v757 = vadd.f32 %v593, %v745
      %v758 = vadd.f32 %v594, %v747
      %v759 = vld [vmem:[%s166 + $0x2c] sm:$0x3]
      %s760 = scalar_lea.vmem %s1, 256
      %v761 = vld [vmem:[%s760] sm:$0xf]
      %v762 = vld [vmem:[%s760 + $0x4] sm:$0xf]
      %v763 = vld [vmem:[%s760 + $0x8] sm:$0xf]
      %v764 = vld [vmem:[%s760 + $0xc] sm:$0xf]
      %v765 = vld [vmem:[%s760 + $0x10] sm:$0xf]
      %v766 = vld [vmem:[%s760 + $0x14] sm:$0xf]
      %v767 = vld [vmem:[%s760 + $0x18] sm:$0xf]
      %v768 = vld [vmem:[%s760 + $0x1c] sm:$0xf]
      %v769 = vld [vmem:[%s760 + $0x20] sm:$0xf]
      %v770 = vld [vmem:[%s760 + $0x24] sm:$0xf]
      %v771 = vld [vmem:[%s760 + $0x28] sm:$0xf]
      %v772 = vld [vmem:[%s760 + $0x2c] sm:$0xf]
      %v773 = vld [vmem:[%s760 + $0x30] sm:$0xf]
      %v774 = vld [vmem:[%s760 + $0x34] sm:$0xf]
      %v775 = vld [vmem:[%s760 + $0x38] sm:$0xf]
      %v776 = vld [vmem:[%s760 + $0x3c] sm:$0xf]
      %v778 = vunpack.c.l.b16 %v759
      %v779 = vpack.c.b16 %v778, %v778
      %vm780 = vsmask.f32 6400
      %v782 = vshrl.u32 %v645, 16
      %v784 = vrot.slane %v782, 1
      %v785 = vshll.u32 %v645, 16
      %v787 = vrot.slane %v785, 2
      %v788 = vor.u32 %v784, %v787
      %v790 = vshrl.u32 %v646, 16
      %v792 = vrot.slane %v790, 1
      %v793 = vshll.u32 %v646, 16
      %v795 = vrot.slane %v793, 2
      %v796 = vor.u32 %v792, %v795
      %v797 = vsel %vm780, %v788, %v796
      %v799 = vshrl.u32 %v647, 16
      %v801 = vrot.slane %v799, 1
      %v802 = vshll.u32 %v647, 16
      %v804 = vrot.slane %v802, 2
      %v805 = vor.u32 %v801, %v804
      %v806 = vsel %vm780, %v796, %v805
      %v808 = vshrl.u32 %v648, 16
      %v810 = vrot.slane %v808, 1
      %v811 = vshll.u32 %v648, 16
      %v813 = vrot.slane %v811, 2
      %v814 = vor.u32 %v810, %v813
      %v815 = vsel %vm780, %v805, %v814
      %v817 = vshrl.u32 %v649, 16
      %v819 = vrot.slane %v817, 1
      %v820 = vshll.u32 %v649, 16
      %v822 = vrot.slane %v820, 2
      %v823 = vor.u32 %v819, %v822
      %v824 = vsel %vm780, %v814, %v823
      %v826 = vshrl.u32 %v779, 16
      %v828 = vrot.slane %v826, 1
      %v829 = vshll.u32 %v779, 16
      %v831 = vrot.slane %v829, 2
      %v832 = vor.u32 %v828, %v831
      %v833 = vsel %vm780, %v823, %v832
      %v855 = vunpack.c.l.b16 %v761
      %v856 = vunpack.c.l.b16 %v762
      %v857 = vunpack.c.l.b16 %v763
      %v858 = vunpack.c.l.b16 %v764
      %v859 = vunpack.c.l.b16 %v765
      %v860 = vunpack.c.l.b16 %v766
      %v861 = vunpack.c.l.b16 %v767
      %v862 = vunpack.c.l.b16 %v768
      %v863 = vunpack.c.l.b16 %v769
      %v864 = vunpack.c.l.b16 %v770
      %v865 = vunpack.c.l.b16 %v771
      %v866 = vunpack.c.l.b16 %v772
      %v867 = vunpack.c.l.b16 %v773
      %v868 = vunpack.c.l.b16 %v774
      %v869 = vunpack.c.l.b16 %v775
      %v870 = vunpack.c.l.b16 %v776
      %v871 = vpack.c.b16 %v856, %v855
      %v872 = vpack.c.b16 %v858, %v857
      %v873 = vpack.c.b16 %v860, %v859
      %v874 = vpack.c.b16 %v862, %v861
      %v875 = vpack.c.b16 %v864, %v863
      %v876 = vpack.c.b16 %v866, %v865
      %v877 = vpack.c.b16 %v868, %v867
      %v878 = vpack.c.b16 %v870, %v869
      %887 = vmatpush.bf16.msra.mxu0 %v878
      %888 = vmatpush.bf16.msra.mxu0 %v877
      %889 = vmatpush.bf16.msra.mxu0 %v876
      %890 = vmatpush.bf16.msra.mxu0 %v875
      %891 = vmatpush.bf16.msra.mxu0 %v874
      %892 = vmatpush.bf16.msra.mxu0 %v873
      %893 = vmatpush.bf16.msra.mxu0 %v872
      %894 = vmatpush.bf16.msra.mxu0 %v871
      %895 = vmatmul.bf16.gmra.mxu0 %v797
      %v896 = vpop.f32.mrf.mxu0
      %v897 = vadd.f32 0.0, %v896
      %v898 = vpop.f32.mrf.mxu0
      %v899 = vadd.f32 0.0, %v898
      %900 = vmatmul.bf16.gmra.mxu0 %v806
      %v901 = vpop.f32.mrf.mxu0
      %v902 = vadd.f32 0.0, %v901
      %v903 = vpop.f32.mrf.mxu0
      %v904 = vadd.f32 0.0, %v903
      %905 = vmatmul.bf16.gmra.mxu0 %v815
      %v906 = vpop.f32.mrf.mxu0
      %v907 = vadd.f32 0.0, %v906
      %v908 = vpop.f32.mrf.mxu0
      %v909 = vadd.f32 0.0, %v908
      %910 = vmatmul.bf16.gmra.mxu0 %v824
      %v911 = vpop.f32.mrf.mxu0
      %v912 = vadd.f32 0.0, %v911
      %v913 = vpop.f32.mrf.mxu0
      %v914 = vadd.f32 0.0, %v913
      %915 = vmatmul.bf16.gmra.mxu0 %v833
      %v916 = vpop.f32.mrf.mxu0
      %v917 = vadd.f32 0.0, %v916
      %v918 = vpop.f32.mrf.mxu0
      %v919 = vadd.f32 0.0, %v918
      %920 = vdwg.mxu0
      %v921 = vadd.f32 %v749, %v897
      %v922 = vadd.f32 %v750, %v899
      %v923 = vadd.f32 %v751, %v902
      %v924 = vadd.f32 %v752, %v904
      %v925 = vadd.f32 %v753, %v907
      %v926 = vadd.f32 %v754, %v909
      %v927 = vadd.f32 %v755, %v912
      %v928 = vadd.f32 %v756, %v914
      %v929 = vadd.f32 %v757, %v917
      %v930 = vadd.f32 %v758, %v919
      %v931 = vld [vmem:[%s166 + $0x4] sm:$0xc]
      %s932 = scalar_lea.vmem %s1, 320
      %v933 = vld [vmem:[%s932] sm:$0xf]
      %v934 = vld [vmem:[%s932 + $0x4] sm:$0xf]
      %v935 = vld [vmem:[%s932 + $0x8] sm:$0xf]
      %v936 = vld [vmem:[%s932 + $0xc] sm:$0xf]
      %v937 = vld [vmem:[%s932 + $0x10] sm:$0xf]
      %v938 = vld [vmem:[%s932 + $0x14] sm:$0xf]
      %v939 = vld [vmem:[%s932 + $0x18] sm:$0xf]
      %v940 = vld [vmem:[%s932 + $0x1c] sm:$0xf]
      %v941 = vld [vmem:[%s932 + $0x20] sm:$0xf]
      %v942 = vld [vmem:[%s932 + $0x24] sm:$0xf]
      %v943 = vld [vmem:[%s932 + $0x28] sm:$0xf]
      %v944 = vld [vmem:[%s932 + $0x2c] sm:$0xf]
      %v945 = vld [vmem:[%s932 + $0x30] sm:$0xf]
      %v946 = vld [vmem:[%s932 + $0x34] sm:$0xf]
      %v947 = vld [vmem:[%s932 + $0x38] sm:$0xf]
      %v948 = vld [vmem:[%s932 + $0x3c] sm:$0xf]
      %v950 = vunpack.c.l.b16 %v931
      %v951 = vpack.c.b16 %v635, %v950
      %vm952 = vcmask 1045504
      %v953 = vrot.slane %v951, 2
      %v954 = vrot.slane %v646, 2
      %v955 = vsel %vm952, %v953, %v954
      %v956 = vrot.slane %v647, 2
      %v957 = vsel %vm952, %v954, %v956
      %v958 = vrot.slane %v648, 2
      %v959 = vsel %vm952, %v956, %v958
      %v960 = vrot.slane %v649, 2
      %v961 = vsel %vm952, %v958, %v960
      %v962 = vrot.slane %v779, 2
      %v963 = vsel %vm952, %v960, %v962
      %v985 = vunpack.c.l.b16 %v933
      %v986 = vunpack.c.l.b16 %v934
      %v987 = vunpack.c.l.b16 %v935
      %v988 = vunpack.c.l.b16 %v936
      %v989 = vunpack.c.l.b16 %v937
      %v990 = vunpack.c.l.b16 %v938
      %v991 = vunpack.c.l.b16 %v939
      %v992 = vunpack.c.l.b16 %v940
      %v993 = vunpack.c.l.b16 %v941
      %v994 = vunpack.c.l.b16 %v942
      %v995 = vunpack.c.l.b16 %v943
      %v996 = vunpack.c.l.b16 %v944
      %v997 = vunpack.c.l.b16 %v945
      %v998 = vunpack.c.l.b16 %v946
      %v999 = vunpack.c.l.b16 %v947
      %v1000 = vunpack.c.l.b16 %v948
      %v1001 = vpack.c.b16 %v986, %v985
      %v1002 = vpack.c.b16 %v988, %v987
      %v1003 = vpack.c.b16 %v990, %v989
      %v1004 = vpack.c.b16 %v992, %v991
      %v1005 = vpack.c.b16 %v994, %v993
      %v1006 = vpack.c.b16 %v996, %v995
      %v1007 = vpack.c.b16 %v998, %v997
      %v1008 = vpack.c.b16 %v1000, %v999
      %1017 = vmatpush.bf16.msra.mxu0 %v1008
      %1018 = vmatpush.bf16.msra.mxu0 %v1007
      %1019 = vmatpush.bf16.msra.mxu0 %v1006
      %1020 = vmatpush.bf16.msra.mxu0 %v1005
      %1021 = vmatpush.bf16.msra.mxu0 %v1004
      %1022 = vmatpush.bf16.msra.mxu0 %v1003
      %1023 = vmatpush.bf16.msra.mxu0 %v1002
      %1024 = vmatpush.bf16.msra.mxu0 %v1001
      %1025 = vmatmul.bf16.gmra.mxu0 %v955
      %v1026 = vpop.f32.mrf.mxu0
      %v1027 = vadd.f32 0.0, %v1026
      %v1028 = vpop.f32.mrf.mxu0
      %v1029 = vadd.f32 0.0, %v1028
      %1030 = vmatmul.bf16.gmra.mxu0 %v957
      %v1031 = vpop.f32.mrf.mxu0
      %v1032 = vadd.f32 0.0, %v1031
      %v1033 = vpop.f32.mrf.mxu0
      %v1034 = vadd.f32 0.0, %v1033
      %1035 = vmatmul.bf16.gmra.mxu0 %v959
      %v1036 = vpop.f32.mrf.mxu0
      %v1037 = vadd.f32 0.0, %v1036
      %v1038 = vpop.f32.mrf.mxu0
      %v1039 = vadd.f32 0.0, %v1038
      %1040 = vmatmul.bf16.gmra.mxu0 %v961
      %v1041 = vpop.f32.mrf.mxu0
      %v1042 = vadd.f32 0.0, %v1041
      %v1043 = vpop.f32.mrf.mxu0
      %v1044 = vadd.f32 0.0, %v1043
      %1045 = vmatmul.bf16.gmra.mxu0 %v963
      %v1046 = vpop.f32.mrf.mxu0
      %v1047 = vadd.f32 0.0, %v1046
      %v1048 = vpop.f32.mrf.mxu0
      %v1049 = vadd.f32 0.0, %v1048
      %1050 = vdwg.mxu0
      %v1051 = vadd.f32 %v921, %v1027
      %v1052 = vadd.f32 %v922, %v1029
      %v1053 = vadd.f32 %v923, %v1032
      %v1054 = vadd.f32 %v924, %v1034
      %v1055 = vadd.f32 %v925, %v1037
      %v1056 = vadd.f32 %v926, %v1039
      %v1057 = vadd.f32 %v927, %v1042
      %v1058 = vadd.f32 %v928, %v1044
      %v1059 = vadd.f32 %v929, %v1047
      %v1060 = vadd.f32 %v930, %v1049
      %v1061 = vld [vmem:[%s166 + $0x8] sm:$0xc]
      %v1062 = vld [vmem:[%s166 + $0xc] sm:$0xf]
      %v1063 = vld [vmem:[%s166 + $0x10] sm:$0xf]
      %v1064 = vld [vmem:[%s166 + $0x14] sm:$0xf]
      %v1065 = vld [vmem:[%s166 + $0x18] sm:$0xf]
      %v1066 = vld [vmem:[%s166 + $0x1c] sm:$0xf]
      %v1067 = vld [vmem:[%s166 + $0x20] sm:$0xf]
      %v1068 = vld [vmem:[%s166 + $0x24] sm:$0xf]
      %v1069 = vld [vmem:[%s166 + $0x28] sm:$0xf]
      %v1070 = vld [vmem:[%s166 + $0x2c] sm:$0xf]
      %v1071 = vld [vmem:[%s166 + $0x30] sm:$0x3]
      %s1072 = scalar_lea.vmem %s1, 384
      %v1073 = vld [vmem:[%s1072] sm:$0xf]
      %v1074 = vld [vmem:[%s1072 + $0x4] sm:$0xf]
      %v1075 = vld [vmem:[%s1072 + $0x8] sm:$0xf]
      %v1076 = vld [vmem:[%s1072 + $0xc] sm:$0xf]
      %v1077 = vld [vmem:[%s1072 + $0x10] sm:$0xf]
      %v1078 = vld [vmem:[%s1072 + $0x14] sm:$0xf]
      %v1079 = vld [vmem:[%s1072 + $0x18] sm:$0xf]
      %v1080 = vld [vmem:[%s1072 + $0x1c] sm:$0xf]
      %v1081 = vld [vmem:[%s1072 + $0x20] sm:$0xf]
      %v1082 = vld [vmem:[%s1072 + $0x24] sm:$0xf]
      %v1083 = vld [vmem:[%s1072 + $0x28] sm:$0xf]
      %v1084 = vld [vmem:[%s1072 + $0x2c] sm:$0xf]
      %v1085 = vld [vmem:[%s1072 + $0x30] sm:$0xf]
      %v1086 = vld [vmem:[%s1072 + $0x34] sm:$0xf]
      %v1087 = vld [vmem:[%s1072 + $0x38] sm:$0xf]
      %v1088 = vld [vmem:[%s1072 + $0x3c] sm:$0xf]
      %v1100 = vunpack.c.l.b16 %v1061
      %v1101 = vunpack.c.l.b16 %v1062
      %v1102 = vunpack.c.l.b16 %v1063
      %v1103 = vunpack.c.l.b16 %v1064
      %v1104 = vunpack.c.l.b16 %v1065
      %v1105 = vunpack.c.l.b16 %v1066
      %v1106 = vunpack.c.l.b16 %v1067
      %v1107 = vunpack.c.l.b16 %v1068
      %v1108 = vunpack.c.l.b16 %v1069
      %v1109 = vunpack.c.l.b16 %v1070
      %v1110 = vunpack.c.l.b16 %v1071
      %v1111 = vpack.c.b16 %v1101, %v1100
      %v1112 = vpack.c.b16 %v1103, %v1102
      %v1113 = vpack.c.b16 %v1105, %v1104
      %v1114 = vpack.c.b16 %v1107, %v1106
      %v1115 = vpack.c.b16 %v1109, %v1108
      %v1116 = vpack.c.b16 %v1110, %v1110
      %v1117 = vrot.slane %v1111, 2
      %v1118 = vrot.slane %v1112, 2
      %v1119 = vsel %vm952, %v1117, %v1118
      %v1120 = vrot.slane %v1113, 2
      %v1121 = vsel %vm952, %v1118, %v1120
      %v1122 = vrot.slane %v1114, 2
      %v1123 = vsel %vm952, %v1120, %v1122
      %v1124 = vrot.slane %v1115, 2
      %v1125 = vsel %vm952, %v1122, %v1124
      %v1126 = vrot.slane %v1116, 2
      %v1127 = vsel %vm952, %v1124, %v1126
      %v1149 = vunpack.c.l.b16 %v1073
      %v1150 = vunpack.c.l.b16 %v1074
      %v1151 = vunpack.c.l.b16 %v1075
      %v1152 = vunpack.c.l.b16 %v1076
      %v1153 = vunpack.c.l.b16 %v1077
      %v1154 = vunpack.c.l.b16 %v1078
      %v1155 = vunpack.c.l.b16 %v1079
      %v1156 = vunpack.c.l.b16 %v1080
      %v1157 = vunpack.c.l.b16 %v1081
      %v1158 = vunpack.c.l.b16 %v1082
      %v1159 = vunpack.c.l.b16 %v1083
      %v1160 = vunpack.c.l.b16 %v1084
      %v1161 = vunpack.c.l.b16 %v1085
      %v1162 = vunpack.c.l.b16 %v1086
      %v1163 = vunpack.c.l.b16 %v1087
      %v1164 = vunpack.c.l.b16 %v1088
      %v1165 = vpack.c.b16 %v1150, %v1149
      %v1166 = vpack.c.b16 %v1152, %v1151
      %v1167 = vpack.c.b16 %v1154, %v1153
      %v1168 = vpack.c.b16 %v1156, %v1155
      %v1169 = vpack.c.b16 %v1158, %v1157
      %v1170 = vpack.c.b16 %v1160, %v1159
      %v1171 = vpack.c.b16 %v1162, %v1161
      %v1172 = vpack.c.b16 %v1164, %v1163
      %1181 = vmatpush.bf16.msra.mxu0 %v1172
      %1182 = vmatpush.bf16.msra.mxu0 %v1171
      %1183 = vmatpush.bf16.msra.mxu0 %v1170
      %1184 = vmatpush.bf16.msra.mxu0 %v1169
      %1185 = vmatpush.bf16.msra.mxu0 %v1168
      %1186 = vmatpush.bf16.msra.mxu0 %v1167
      %1187 = vmatpush.bf16.msra.mxu0 %v1166
      %1188 = vmatpush.bf16.msra.mxu0 %v1165
      %1189 = vmatmul.bf16.gmra.mxu0 %v1119
      %v1190 = vpop.f32.mrf.mxu0
      %v1191 = vadd.f32 0.0, %v1190
      %v1192 = vpop.f32.mrf.mxu0
      %v1193 = vadd.f32 0.0, %v1192
      %1194 = vmatmul.bf16.gmra.mxu0 %v1121
      %v1195 = vpop.f32.mrf.mxu0
      %v1196 = vadd.f32 0.0, %v1195
      %v1197 = vpop.f32.mrf.mxu0
      %v1198 = vadd.f32 0.0, %v1197
      %1199 = vmatmul.bf16.gmra.mxu0 %v1123
      %v1200 = vpop.f32.mrf.mxu0
      %v1201 = vadd.f32 0.0, %v1200
      %v1202 = vpop.f32.mrf.mxu0
      %v1203 = vadd.f32 0.0, %v1202
      %1204 = vmatmul.bf16.gmra.mxu0 %v1125
      %v1205 = vpop.f32.mrf.mxu0
      %v1206 = vadd.f32 0.0, %v1205
      %v1207 = vpop.f32.mrf.mxu0
      %v1208 = vadd.f32 0.0, %v1207
      %1209 = vmatmul.bf16.gmra.mxu0 %v1127
      %v1210 = vpop.f32.mrf.mxu0
      %v1211 = vadd.f32 0.0, %v1210
      %v1212 = vpop.f32.mrf.mxu0
      %v1213 = vadd.f32 0.0, %v1212
      %1214 = vdwg.mxu0
      %v1215 = vadd.f32 %v1051, %v1191
      %v1216 = vadd.f32 %v1052, %v1193
      %v1217 = vadd.f32 %v1053, %v1196
      %v1218 = vadd.f32 %v1054, %v1198
      %v1219 = vadd.f32 %v1055, %v1201
      %v1220 = vadd.f32 %v1056, %v1203
      %v1221 = vadd.f32 %v1057, %v1206
      %v1222 = vadd.f32 %v1058, %v1208
      %v1223 = vadd.f32 %v1059, %v1211
      %v1224 = vadd.f32 %v1060, %v1213
      %v1225 = vld [vmem:[%s166 + $0x30] sm:$0x7]
      %s1226 = scalar_lea.vmem %s1, 448
      %v1227 = vld [vmem:[%s1226] sm:$0xf]
      %v1228 = vld [vmem:[%s1226 + $0x4] sm:$0xf]
      %v1229 = vld [vmem:[%s1226 + $0x8] sm:$0xf]
      %v1230 = vld [vmem:[%s1226 + $0xc] sm:$0xf]
      %v1231 = vld [vmem:[%s1226 + $0x10] sm:$0xf]
      %v1232 = vld [vmem:[%s1226 + $0x14] sm:$0xf]
      %v1233 = vld [vmem:[%s1226 + $0x18] sm:$0xf]
      %v1234 = vld [vmem:[%s1226 + $0x1c] sm:$0xf]
      %v1235 = vld [vmem:[%s1226 + $0x20] sm:$0xf]
      %v1236 = vld [vmem:[%s1226 + $0x24] sm:$0xf]
      %v1237 = vld [vmem:[%s1226 + $0x28] sm:$0xf]
      %v1238 = vld [vmem:[%s1226 + $0x2c] sm:$0xf]
      %v1239 = vld [vmem:[%s1226 + $0x30] sm:$0xf]
      %v1240 = vld [vmem:[%s1226 + $0x34] sm:$0xf]
      %v1241 = vld [vmem:[%s1226 + $0x38] sm:$0xf]
      %v1242 = vld [vmem:[%s1226 + $0x3c] sm:$0xf]
      %v1244 = vunpack.c.l.b16 %v1225
      %v1245 = vpack.c.b16 %v1244, %v1244
      %vm1246 = vsmask.f32 5376
      %v1248 = vshrl.u32 %v1111, 16
      %v1250 = vrot.slane %v1248, 2
      %v1251 = vshll.u32 %v1111, 16
      %v1253 = vrot.slane %v1251, 3
      %v1254 = vor.u32 %v1250, %v1253
      %v1256 = vshrl.u32 %v1112, 16
      %v1258 = vrot.slane %v1256, 2
      %v1259 = vshll.u32 %v1112, 16
      %v1261 = vrot.slane %v1259, 3
      %v1262 = vor.u32 %v1258, %v1261
      %v1263 = vsel %vm1246, %v1254, %v1262
      %v1265 = vshrl.u32 %v1113, 16
      %v1267 = vrot.slane %v1265, 2
      %v1268 = vshll.u32 %v1113, 16
      %v1270 = vrot.slane %v1268, 3
      %v1271 = vor.u32 %v1267, %v1270
      %v1272 = vsel %vm1246, %v1262, %v1271
      %v1274 = vshrl.u32 %v1114, 16
      %v1276 = vrot.slane %v1274, 2
      %v1277 = vshll.u32 %v1114, 16
      %v1279 = vrot.slane %v1277, 3
      %v1280 = vor.u32 %v1276, %v1279
      %v1281 = vsel %vm1246, %v1271, %v1280
      %v1283 = vshrl.u32 %v1115, 16
      %v1285 = vrot.slane %v1283, 2
      %v1286 = vshll.u32 %v1115, 16
      %v1288 = vrot.slane %v1286, 3
      %v1289 = vor.u32 %v1285, %v1288
      %v1290 = vsel %vm1246, %v1280, %v1289
      %v1292 = vshrl.u32 %v1245, 16
      %v1294 = vrot.slane %v1292, 2
      %v1295 = vshll.u32 %v1245, 16
      %v1297 = vrot.slane %v1295, 3
      %v1298 = vor.u32 %v1294, %v1297
      %v1299 = vsel %vm1246, %v1289, %v1298
      %v1321 = vunpack.c.l.b16 %v1227
      %v1322 = vunpack.c.l.b16 %v1228
      %v1323 = vunpack.c.l.b16 %v1229
      %v1324 = vunpack.c.l.b16 %v1230
      %v1325 = vunpack.c.l.b16 %v1231
      %v1326 = vunpack.c.l.b16 %v1232
      %v1327 = vunpack.c.l.b16 %v1233
      %v1328 = vunpack.c.l.b16 %v1234
      %v1329 = vunpack.c.l.b16 %v1235
      %v1330 = vunpack.c.l.b16 %v1236
      %v1331 = vunpack.c.l.b16 %v1237
      %v1332 = vunpack.c.l.b16 %v1238
      %v1333 = vunpack.c.l.b16 %v1239
      %v1334 = vunpack.c.l.b16 %v1240
      %v1335 = vunpack.c.l.b16 %v1241
      %v1336 = vunpack.c.l.b16 %v1242
      %v1337 = vpack.c.b16 %v1322, %v1321
      %v1338 = vpack.c.b16 %v1324, %v1323
      %v1339 = vpack.c.b16 %v1326, %v1325
      %v1340 = vpack.c.b16 %v1328, %v1327
      %v1341 = vpack.c.b16 %v1330, %v1329
      %v1342 = vpack.c.b16 %v1332, %v1331
      %v1343 = vpack.c.b16 %v1334, %v1333
      %v1344 = vpack.c.b16 %v1336, %v1335
      %1353 = vmatpush.bf16.msra.mxu0 %v1344
      %1354 = vmatpush.bf16.msra.mxu0 %v1343
      %1355 = vmatpush.bf16.msra.mxu0 %v1342
      %1356 = vmatpush.bf16.msra.mxu0 %v1341
      %1357 = vmatpush.bf16.msra.mxu0 %v1340
      %1358 = vmatpush.bf16.msra.mxu0 %v1339
      %1359 = vmatpush.bf16.msra.mxu0 %v1338
      %1360 = vmatpush.bf16.msra.mxu0 %v1337
      %1361 = vmatmul.bf16.gmra.mxu0 %v1263
      %v1362 = vpop.f32.mrf.mxu0
      %v1363 = vadd.f32 0.0, %v1362
      %v1364 = vpop.f32.mrf.mxu0
      %v1365 = vadd.f32 0.0, %v1364
      %1366 = vmatmul.bf16.gmra.mxu0 %v1272
      %v1367 = vpop.f32.mrf.mxu0
      %v1368 = vadd.f32 0.0, %v1367
      %v1369 = vpop.f32.mrf.mxu0
      %v1370 = vadd.f32 0.0, %v1369
      %1371 = vmatmul.bf16.gmra.mxu0 %v1281
      %v1372 = vpop.f32.mrf.mxu0
      %v1373 = vadd.f32 0.0, %v1372
      %v1374 = vpop.f32.mrf.mxu0
      %v1375 = vadd.f32 0.0, %v1374
      %1376 = vmatmul.bf16.gmra.mxu0 %v1290
      %v1377 = vpop.f32.mrf.mxu0
      %v1378 = vadd.f32 0.0, %v1377
      %v1379 = vpop.f32.mrf.mxu0
      %v1380 = vadd.f32 0.0, %v1379
      %1381 = vmatmul.bf16.gmra.mxu0 %v1299
      %v1382 = vpop.f32.mrf.mxu0
      %v1383 = vadd.f32 0.0, %v1382
      %v1384 = vpop.f32.mrf.mxu0
      %v1385 = vadd.f32 0.0, %v1384
      %1386 = vdwg.mxu0
      %v1387 = vadd.f32 %v1215, %v1363
      %v1388 = vadd.f32 %v1216, %v1365
      %v1389 = vadd.f32 %v1217, %v1368
      %v1390 = vadd.f32 %v1218, %v1370
      %v1391 = vadd.f32 %v1219, %v1373
      %v1392 = vadd.f32 %v1220, %v1375
      %v1393 = vadd.f32 %v1221, %v1378
      %v1394 = vadd.f32 %v1222, %v1380
      %v1395 = vadd.f32 %v1223, %v1383
      %v1396 = vadd.f32 %v1224, %v1385
      %v1397 = vld [vmem:[%s166 + $0x8] sm:$0x8]
      %s1398 = scalar_lea.vmem %s1, 512
      %v1399 = vld [vmem:[%s1398] sm:$0xf]
      %v1400 = vld [vmem:[%s1398 + $0x4] sm:$0xf]
      %v1401 = vld [vmem:[%s1398 + $0x8] sm:$0xf]
      %v1402 = vld [vmem:[%s1398 + $0xc] sm:$0xf]
      %v1403 = vld [vmem:[%s1398 + $0x10] sm:$0xf]
      %v1404 = vld [vmem:[%s1398 + $0x14] sm:$0xf]
      %v1405 = vld [vmem:[%s1398 + $0x18] sm:$0xf]
      %v1406 = vld [vmem:[%s1398 + $0x1c] sm:$0xf]
      %v1407 = vld [vmem:[%s1398 + $0x20] sm:$0xf]
      %v1408 = vld [vmem:[%s1398 + $0x24] sm:$0xf]
      %v1409 = vld [vmem:[%s1398 + $0x28] sm:$0xf]
      %v1410 = vld [vmem:[%s1398 + $0x2c] sm:$0xf]
      %v1411 = vld [vmem:[%s1398 + $0x30] sm:$0xf]
      %v1412 = vld [vmem:[%s1398 + $0x34] sm:$0xf]
      %v1413 = vld [vmem:[%s1398 + $0x38] sm:$0xf]
      %v1414 = vld [vmem:[%s1398 + $0x3c] sm:$0xf]
      %v1416 = vunpack.c.l.b16 %v1397
      %v1417 = vpack.c.b16 %v1101, %v1416
      %vm1418 = vcmask 1044480
      %v1419 = vrot.slane %v1417, 3
      %v1420 = vrot.slane %v1112, 3
      %v1421 = vsel %vm1418, %v1419, %v1420
      %v1422 = vrot.slane %v1113, 3
      %v1423 = vsel %vm1418, %v1420, %v1422
      %v1424 = vrot.slane %v1114, 3
      %v1425 = vsel %vm1418, %v1422, %v1424
      %v1426 = vrot.slane %v1115, 3
      %v1427 = vsel %vm1418, %v1424, %v1426
      %v1428 = vrot.slane %v1245, 3
      %v1429 = vsel %vm1418, %v1426, %v1428
      %v1451 = vunpack.c.l.b16 %v1399
      %v1452 = vunpack.c.l.b16 %v1400
      %v1453 = vunpack.c.l.b16 %v1401
      %v1454 = vunpack.c.l.b16 %v1402
      %v1455 = vunpack.c.l.b16 %v1403
      %v1456 = vunpack.c.l.b16 %v1404
      %v1457 = vunpack.c.l.b16 %v1405
      %v1458 = vunpack.c.l.b16 %v1406
      %v1459 = vunpack.c.l.b16 %v1407
      %v1460 = vunpack.c.l.b16 %v1408
      %v1461 = vunpack.c.l.b16 %v1409
      %v1462 = vunpack.c.l.b16 %v1410
      %v1463 = vunpack.c.l.b16 %v1411
      %v1464 = vunpack.c.l.b16 %v1412
      %v1465 = vunpack.c.l.b16 %v1413
      %v1466 = vunpack.c.l.b16 %v1414
      %v1467 = vpack.c.b16 %v1452, %v1451
      %v1468 = vpack.c.b16 %v1454, %v1453
      %v1469 = vpack.c.b16 %v1456, %v1455
      %v1470 = vpack.c.b16 %v1458, %v1457
      %v1471 = vpack.c.b16 %v1460, %v1459
      %v1472 = vpack.c.b16 %v1462, %v1461
      %v1473 = vpack.c.b16 %v1464, %v1463
      %v1474 = vpack.c.b16 %v1466, %v1465
      %1483 = vmatpush.bf16.msra.mxu0 %v1474
      %1484 = vmatpush.bf16.msra.mxu0 %v1473
      %1485 = vmatpush.bf16.msra.mxu0 %v1472
      %1486 = vmatpush.bf16.msra.mxu0 %v1471
      %1487 = vmatpush.bf16.msra.mxu0 %v1470
      %1488 = vmatpush.bf16.msra.mxu0 %v1469
      %1489 = vmatpush.bf16.msra.mxu0 %v1468
      %1490 = vmatpush.bf16.msra.mxu0 %v1467
      %1491 = vmatmul.bf16.gmra.mxu0 %v1421
      %v1492 = vpop.f32.mrf.mxu0
      %v1493 = vadd.f32 0.0, %v1492
      %v1494 = vpop.f32.mrf.mxu0
      %v1495 = vadd.f32 0.0, %v1494
      %1496 = vmatmul.bf16.gmra.mxu0 %v1423
      %v1497 = vpop.f32.mrf.mxu0
      %v1498 = vadd.f32 0.0, %v1497
      %v1499 = vpop.f32.mrf.mxu0
      %v1500 = vadd.f32 0.0, %v1499
      %1501 = vmatmul.bf16.gmra.mxu0 %v1425
      %v1502 = vpop.f32.mrf.mxu0
      %v1503 = vadd.f32 0.0, %v1502
      %v1504 = vpop.f32.mrf.mxu0
      %v1505 = vadd.f32 0.0, %v1504
      %1506 = vmatmul.bf16.gmra.mxu0 %v1427
      %v1507 = vpop.f32.mrf.mxu0
      %v1508 = vadd.f32 0.0, %v1507
      %v1509 = vpop.f32.mrf.mxu0
      %v1510 = vadd.f32 0.0, %v1509
      %1511 = vmatmul.bf16.gmra.mxu0 %v1429
      %v1512 = vpop.f32.mrf.mxu0
      %v1513 = vadd.f32 0.0, %v1512
      %v1514 = vpop.f32.mrf.mxu0
      %v1515 = vadd.f32 0.0, %v1514
      %1516 = vdwg.mxu0
      %v1517 = vadd.f32 %v1387, %v1493
      %v1518 = vadd.f32 %v1388, %v1495
      %v1519 = vadd.f32 %v1389, %v1498
      %v1520 = vadd.f32 %v1390, %v1500
      %v1521 = vadd.f32 %v1391, %v1503
      %v1522 = vadd.f32 %v1392, %v1505
      %v1523 = vadd.f32 %v1393, %v1508
      %v1524 = vadd.f32 %v1394, %v1510
      %v1525 = vadd.f32 %v1395, %v1513
      %v1526 = vadd.f32 %v1396, %v1515
      %v1527 = vld [vmem:[%s2] sm:$0x1]
      %v1529 = vperm.slane %v1527, 0
      %v1531 = vadd.f32 %v1517, %v1529
      %v1532 = vadd.f32 %v1518, %v1529
      %v1533 = vadd.f32 %v1519, %v1529
      %v1534 = vadd.f32 %v1520, %v1529
      %v1535 = vadd.f32 %v1521, %v1529
      %v1536 = vadd.f32 %v1522, %v1529
      %v1537 = vadd.f32 %v1523, %v1529
      %v1538 = vadd.f32 %v1524, %v1529
      %v1539 = vadd.f32 %v1525, %v1529
      %v1540 = vadd.f32 %v1526, %v1529
      %v1541 = vmin.f32 %v1531, 20.0
      %v1542 = vmin.f32 %v1532, 20.0
      %v1543 = vmin.f32 %v1533, 20.0
      %v1544 = vmin.f32 %v1534, 20.0
      %v1545 = vmin.f32 %v1535, 20.0
      %v1546 = vmin.f32 %v1536, 20.0
      %v1547 = vmin.f32 %v1537, 20.0
      %v1548 = vmin.f32 %v1538, 20.0
      %v1549 = vmin.f32 %v1539, 20.0
      %v1550 = vmin.f32 %v1540, 20.0
      %v1551 = vmul.f32 %v1541, 1.442695
      %v1552 = vpow.pop %v1551
      %v1553 = vmul.f32 %v1542, 1.442695
      %v1554 = vpow.pop %v1553
      %v1555 = vmul.f32 %v1543, 1.442695
      %v1556 = vpow.pop %v1555
      %v1557 = vmul.f32 %v1544, 1.442695
      %v1558 = vpow.pop %v1557
      %v1559 = vmul.f32 %v1545, 1.442695
      %v1560 = vpow.pop %v1559
      %v1561 = vmul.f32 %v1546, 1.442695
      %v1562 = vpow.pop %v1561
      %v1563 = vmul.f32 %v1547, 1.442695
      %v1564 = vpow.pop %v1563
      %v1565 = vmul.f32 %v1548, 1.442695
      %v1566 = vpow.pop %v1565
      %v1567 = vmul.f32 %v1549, 1.442695
      %v1568 = vpow.pop %v1567
      %v1569 = vmul.f32 %v1550, 1.442695
      %v1570 = vpow.pop %v1569
      %v1571 = vadd.f32 %v1552, 2.0
      %v1572 = vadd.f32 %v1554, 2.0
      %v1573 = vadd.f32 %v1556, 2.0
      %v1574 = vadd.f32 %v1558, 2.0
      %v1575 = vadd.f32 %v1560, 2.0
      %v1576 = vadd.f32 %v1562, 2.0
      %v1577 = vadd.f32 %v1564, 2.0
      %v1578 = vadd.f32 %v1566, 2.0
      %v1579 = vadd.f32 %v1568, 2.0
      %v1580 = vadd.f32 %v1570, 2.0
      %v1581 = vmul.f32 %v1552, %v1571
      %v1582 = vmul.f32 %v1554, %v1572
      %v1583 = vmul.f32 %v1556, %v1573
      %v1584 = vmul.f32 %v1558, %v1574
      %v1585 = vmul.f32 %v1560, %v1575
      %v1586 = vmul.f32 %v1562, %v1576
      %v1587 = vmul.f32 %v1564, %v1577
      %v1588 = vmul.f32 %v1566, %v1578
      %v1589 = vmul.f32 %v1568, %v1579
      %v1590 = vmul.f32 %v1570, %v1580
      %v1591 = vadd.f32 %v1581, 2.0
      %v1592 = vadd.f32 %v1582, 2.0
      %v1593 = vadd.f32 %v1583, 2.0
      %v1594 = vadd.f32 %v1584, 2.0
      %v1595 = vadd.f32 %v1585, 2.0
      %v1596 = vadd.f32 %v1586, 2.0
      %v1597 = vadd.f32 %v1587, 2.0
      %v1598 = vadd.f32 %v1588, 2.0
      %v1599 = vadd.f32 %v1589, 2.0
      %v1600 = vadd.f32 %v1590, 2.0
      %v1601 = vrcp.pop %v1591
      %v1602 = vmul.f32 %v1591, %v1601
      %v1603 = vsub.f32 1.0, %v1602
      %v1604 = vmul.f32 %v1601, %v1603
      %v1605 = vadd.f32 %v1601, %v1604
      %vm1606 = vweird.f32 %v1591
      %vm1607 = vweird.f32 %v1601
      %vm1608 = vmor %vm1606, %vm1607
      %v1609 = vsel %vm1608, %v1601, %v1605
      %v1610 = vand.u32 2147483647, %v1591
      %vm1611 = vcmp.eq.f32.partialorder %v1610, 8.507059e+37
      %v1612 = vand.u32 %v1591, 2147483648
      %v1613 = vor.u32 1.1754944e-38, %v1612
      %v1614 = vsel %vm1611, %v1613, %v1609
      %v1615 = vmul.f32 %v1581, %v1614
      %v1616 = vrcp.pop %v1592
      %v1617 = vmul.f32 %v1592, %v1616
      %v1618 = vsub.f32 1.0, %v1617
      %v1619 = vmul.f32 %v1616, %v1618
      %v1620 = vadd.f32 %v1616, %v1619
      %vm1621 = vweird.f32 %v1592
      %vm1622 = vweird.f32 %v1616
      %vm1623 = vmor %vm1621, %vm1622
      %v1624 = vsel %vm1623, %v1616, %v1620
      %v1625 = vand.u32 2147483647, %v1592
      %vm1626 = vcmp.eq.f32.partialorder %v1625, 8.507059e+37
      %v1627 = vand.u32 %v1592, 2147483648
      %v1628 = vor.u32 1.1754944e-38, %v1627
      %v1629 = vsel %vm1626, %v1628, %v1624
      %v1630 = vmul.f32 %v1582, %v1629
      %v1631 = vrcp.pop %v1593
      %v1632 = vmul.f32 %v1593, %v1631
      %v1633 = vsub.f32 1.0, %v1632
      %v1634 = vmul.f32 %v1631, %v1633
      %v1635 = vadd.f32 %v1631, %v1634
      %vm1636 = vweird.f32 %v1593
      %vm1637 = vweird.f32 %v1631
      %vm1638 = vmor %vm1636, %vm1637
      %v1639 = vsel %vm1638, %v1631, %v1635
      %v1640 = vand.u32 2147483647, %v1593
      %vm1641 = vcmp.eq.f32.partialorder %v1640, 8.507059e+37
      %v1642 = vand.u32 %v1593, 2147483648
      %v1643 = vor.u32 1.1754944e-38, %v1642
      %v1644 = vsel %vm1641, %v1643, %v1639
      %v1645 = vmul.f32 %v1583, %v1644
      %v1646 = vrcp.pop %v1594
      %v1647 = vmul.f32 %v1594, %v1646
      %v1648 = vsub.f32 1.0, %v1647
      %v1649 = vmul.f32 %v1646, %v1648
      %v1650 = vadd.f32 %v1646, %v1649
      %vm1651 = vweird.f32 %v1594
      %vm1652 = vweird.f32 %v1646
      %vm1653 = vmor %vm1651, %vm1652
      %v1654 = vsel %vm1653, %v1646, %v1650
      %v1655 = vand.u32 2147483647, %v1594
      %vm1656 = vcmp.eq.f32.partialorder %v1655, 8.507059e+37
      %v1657 = vand.u32 %v1594, 2147483648
      %v1658 = vor.u32 1.1754944e-38, %v1657
      %v1659 = vsel %vm1656, %v1658, %v1654
      %v1660 = vmul.f32 %v1584, %v1659
      %v1661 = vrcp.pop %v1595
      %v1662 = vmul.f32 %v1595, %v1661
      %v1663 = vsub.f32 1.0, %v1662
      %v1664 = vmul.f32 %v1661, %v1663
      %v1665 = vadd.f32 %v1661, %v1664
      %vm1666 = vweird.f32 %v1595
      %vm1667 = vweird.f32 %v1661
      %vm1668 = vmor %vm1666, %vm1667
      %v1669 = vsel %vm1668, %v1661, %v1665
      %v1670 = vand.u32 2147483647, %v1595
      %vm1671 = vcmp.eq.f32.partialorder %v1670, 8.507059e+37
      %v1672 = vand.u32 %v1595, 2147483648
      %v1673 = vor.u32 1.1754944e-38, %v1672
      %v1674 = vsel %vm1671, %v1673, %v1669
      %v1675 = vmul.f32 %v1585, %v1674
      %v1676 = vrcp.pop %v1596
      %v1677 = vmul.f32 %v1596, %v1676
      %v1678 = vsub.f32 1.0, %v1677
      %v1679 = vmul.f32 %v1676, %v1678
      %v1680 = vadd.f32 %v1676, %v1679
      %vm1681 = vweird.f32 %v1596
      %vm1682 = vweird.f32 %v1676
      %vm1683 = vmor %vm1681, %vm1682
      %v1684 = vsel %vm1683, %v1676, %v1680
      %v1685 = vand.u32 2147483647, %v1596
      %vm1686 = vcmp.eq.f32.partialorder %v1685, 8.507059e+37
      %v1687 = vand.u32 %v1596, 2147483648
      %v1688 = vor.u32 1.1754944e-38, %v1687
      %v1689 = vsel %vm1686, %v1688, %v1684
      %v1690 = vmul.f32 %v1586, %v1689
      %v1691 = vrcp.pop %v1597
      %v1692 = vmul.f32 %v1597, %v1691
      %v1693 = vsub.f32 1.0, %v1692
      %v1694 = vmul.f32 %v1691, %v1693
      %v1695 = vadd.f32 %v1691, %v1694
      %vm1696 = vweird.f32 %v1597
      %vm1697 = vweird.f32 %v1691
      %vm1698 = vmor %vm1696, %vm1697
      %v1699 = vsel %vm1698, %v1691, %v1695
      %v1700 = vand.u32 2147483647, %v1597
      %vm1701 = vcmp.eq.f32.partialorder %v1700, 8.507059e+37
      %v1702 = vand.u32 %v1597, 2147483648
      %v1703 = vor.u32 1.1754944e-38, %v1702
      %v1704 = vsel %vm1701, %v1703, %v1699
      %v1705 = vmul.f32 %v1587, %v1704
      %v1706 = vrcp.pop %v1598
      %v1707 = vmul.f32 %v1598, %v1706
      %v1708 = vsub.f32 1.0, %v1707
      %v1709 = vmul.f32 %v1706, %v1708
      %v1710 = vadd.f32 %v1706, %v1709
      %vm1711 = vweird.f32 %v1598
      %vm1712 = vweird.f32 %v1706
      %vm1713 = vmor %vm1711, %vm1712
      %v1714 = vsel %vm1713, %v1706, %v1710
      %v1715 = vand.u32 2147483647, %v1598
      %vm1716 = vcmp.eq.f32.partialorder %v1715, 8.507059e+37
      %v1717 = vand.u32 %v1598, 2147483648
      %v1718 = vor.u32 1.1754944e-38, %v1717
      %v1719 = vsel %vm1716, %v1718, %v1714
      %v1720 = vmul.f32 %v1588, %v1719
      %v1721 = vrcp.pop %v1599
      %v1722 = vmul.f32 %v1599, %v1721
      %v1723 = vsub.f32 1.0, %v1722
      %v1724 = vmul.f32 %v1721, %v1723
      %v1725 = vadd.f32 %v1721, %v1724
      %vm1726 = vweird.f32 %v1599
      %vm1727 = vweird.f32 %v1721
      %vm1728 = vmor %vm1726, %vm1727
      %v1729 = vsel %vm1728, %v1721, %v1725
      %v1730 = vand.u32 2147483647, %v1599
      %vm1731 = vcmp.eq.f32.partialorder %v1730, 8.507059e+37
      %v1732 = vand.u32 %v1599, 2147483648
      %v1733 = vor.u32 1.1754944e-38, %v1732
      %v1734 = vsel %vm1731, %v1733, %v1729
      %v1735 = vmul.f32 %v1589, %v1734
      %v1736 = vrcp.pop %v1600
      %v1737 = vmul.f32 %v1600, %v1736
      %v1738 = vsub.f32 1.0, %v1737
      %v1739 = vmul.f32 %v1736, %v1738
      %v1740 = vadd.f32 %v1736, %v1739
      %vm1741 = vweird.f32 %v1600
      %vm1742 = vweird.f32 %v1736
      %vm1743 = vmor %vm1741, %vm1742
      %v1744 = vsel %vm1743, %v1736, %v1740
      %v1745 = vand.u32 2147483647, %v1600
      %vm1746 = vcmp.eq.f32.partialorder %v1745, 8.507059e+37
      %v1747 = vand.u32 %v1600, 2147483648
      %v1748 = vor.u32 1.1754944e-38, %v1747
      %v1749 = vsel %vm1746, %v1748, %v1744
      %v1750 = vmul.f32 %v1590, %v1749
      %v1751 = vmul.f32 %v1531, %v1615
      %v1752 = vmul.f32 %v1532, %v1630
      %v1753 = vmul.f32 %v1533, %v1645
      %v1754 = vmul.f32 %v1534, %v1660
      %v1755 = vmul.f32 %v1535, %v1675
      %v1756 = vmul.f32 %v1536, %v1690
      %v1757 = vmul.f32 %v1537, %v1705
      %v1758 = vmul.f32 %v1538, %v1720
      %v1759 = vmul.f32 %v1539, %v1735
      %v1760 = vmul.f32 %v1540, %v1750
      %v1761 = vpack.c.bf16 %v1751, %v1751
      %v1762 = vpack.c.bf16 %v1752, %v1752
      %v1763 = vpack.c.bf16 %v1753, %v1753
      %v1764 = vpack.c.bf16 %v1754, %v1754
      %v1765 = vpack.c.bf16 %v1755, %v1755
      %v1766 = vpack.c.bf16 %v1756, %v1756
      %v1767 = vpack.c.bf16 %v1757, %v1757
      %v1768 = vpack.c.bf16 %v1758, %v1758
      %v1769 = vpack.c.bf16 %v1759, %v1759
      %v1770 = vpack.c.bf16 %v1760, %v1760
      %1771 = vst [vmem:[%s172] sm:$0xf] %v1761
      %1772 = vst [vmem:[%s172 + $0x4] sm:$0xf] %v1762
      %1773 = vst [vmem:[%s172 + $0x8] sm:$0xf] %v1763
      %1774 = vst [vmem:[%s172 + $0xc] sm:$0xf] %v1764
      %1775 = vst [vmem:[%s172 + $0x10] sm:$0xf] %v1765
      %1776 = vst [vmem:[%s172 + $0x14] sm:$0xf] %v1766
      %1777 = vst [vmem:[%s172 + $0x18] sm:$0xf] %v1767
      %1778 = vst [vmem:[%s172 + $0x1c] sm:$0xf] %v1768
      %1779 = vst [vmem:[%s172 + $0x20] sm:$0xf] %v1769
      %1780 = vst [vmem:[%s172 + $0x24] sm:$0xf] %v1770
      %s1781 = smul.u32 10, %s14
      %p1782 = scmp.lt.s32.totalorder %s1781, 19
      %s1783 = scalar_select %p1782, %s1781, 19
      %s1784 = smul.addr %s1783, 4
      %s1785 = scalar_lea.vmem %s3, %s1784
      // Predicated region
      $region33: #{resblock_body_forward.9} parent=31 // pred_check
        %p1786 = pneg %p100
      $region34: #{resblock_body_forward.9} parent=31 // pred_check_branch
        %1788 = sbr.rel (%p1786) target = $region36
      $region35: #{resblock_body_forward.9} parent=31 // pred_region
        %s1789 = smul.u32 10, %s14
      $region36: #{resblock_body_forward.9} parent=31 // pred_fallthru
        _
    $region32: #{resblock_body_forward.9} parent=5 // pred_fallthru
      _
    %p1790 = scmp.le.s32.totalorder 2, %s9
    // Predicated region
    $region37: #{resblock_body_forward.9} parent=5 // pred_check
      %p1791 = pneg %p1790
    $region38: #{resblock_body_forward.9} parent=5 // pred_check_branch
      %1793 = sbr.rel (%p1791) target = $region40
    $region39: #{resblock_body_forward.9} parent=5 // pred_region
      %s1794 = ssub.s32 %s9, 2
      // Predicated region
      $region41: #{resblock_body_forward.9} parent=39 // pred_check
        %p1795 = pneg %p106
      $region42: #{resblock_body_forward.9} parent=39 // pred_check_branch
        %1797 = sbr.rel (%p1795) target = $region44
      $region43: #{resblock_body_forward.9} parent=39 // pred_region
        %s1798 = smul.u32 10, %s15
        %p1799 = scmp.lt.s32.totalorder %s1798, 19
        %s1800 = scalar_select %p1799, %s1798, 19
        %s1801 = smul.addr %s1800, 4
        %s1802 = scalar_lea.vmem %s3, %s1801
      $region44: #{resblock_body_forward.9} parent=39 // pred_fallthru
        _
    $region40: #{resblock_body_forward.9} parent=5 // pred_fallthru
      _
  $region6: #{resblock_body_forward.9} parent=0 // loop_footer
    %s13 = sadd.s32 1, %s9
  $region7: #{resblock_body_forward.9} parent=0 // loop_footer_branch
    %8 = sbr.rel target = $region3
  $region8: #{resblock_body_forward.9} parent=0 // loop_exit
    _

</llo_original>
